<compile_context>
chip_gen: v7x
topology: tpu7x:2x2x1
jax: 0.10.0
libtpu: 0.0.40
codegen_flags: <defaults>
</compile_context>

<pallas_src>
import jax
import jax.numpy as jnp
from jax import lax
from jax.experimental import pallas as pl
from jax.experimental.pallas import tpu as pltpu

EMB_SIZE = 300
DROPOUT_RATE = 0.2  # eval-mode: identity
_NEG_BIG = -10000000.0
_LN_EPS = 1e-6


# ----------------------------------------------------------------------------------------
# Fully fused decoder-layer kernel (per batch element)
# ----------------------------------------------------------------------------------------
def _make_decoder_kernel(S, Se, E, H, dk, dv, Dh, temperature):
    inv_temp = 1.0 / float(temperature)

    def layernorm(y, gamma, beta):
        mu = jnp.mean(y, axis=-1, keepdims=True)
        var = jnp.mean((y - mu) ** 2, axis=-1, keepdims=True)
        return (y - mu) * lax.rsqrt(var + _LN_EPS) * gamma + beta

    def attend(q_all, k_all, v_all, mask, wo, residual, gamma, beta):
        # q_all: (S, H*dk)   k_all: (Sk, H*dk)   v_all: (Sk, H*dv)
        mask0 = mask == 0.0                              # computed once per attention block
        ctx, attn = [], []
        for h in range(H):                               # only the tiny (S,Sk) part is per-head
            q_h = q_all[:, h * dk:(h + 1) * dk]
            k_h = k_all[:, h * dk:(h + 1) * dk]
            v_h = v_all[:, h * dv:(h + 1) * dv]
            s_h = lax.dot_general(q_h, k_h, (((1,), (1,)), ((), ())),
                                  preferred_element_type=jnp.float32) * inv_temp
            s_h = jnp.where(mask0, jnp.float32(_NEG_BIG), s_h)     # masked_fill semantics
            m_h = jnp.max(s_h, axis=-1, keepdims=True)
            e_h = jnp.exp(s_h - m_h)
            a_h = e_h * pl.reciprocal(jnp.sum(e_h, axis=-1, keepdims=True), approx=True)
            attn.append(a_h)
            ctx.append(jnp.dot(a_h, v_h, preferred_element_type=jnp.float32))
        ctx_all = jnp.concatenate(ctx, axis=-1)          # (S, H*dv) lane-dense slab
        proj = jnp.dot(ctx_all, wo, preferred_element_type=jnp.float32)   # one matmul, N=E
        out = layernorm(proj + residual, gamma, beta)
        return out, jnp.concatenate(attn, axis=-1)       # (S, H*Sk) lane-packed attn

    def kernel(x_ref, enc_ref, ymask_ref, xmask_ref,
               wqkv_s_ref, wo_s_ref, g_s_ref, b_s_ref,
               wq_c_ref, wkv_c_ref, wo_c_ref, g_c_ref, b_c_ref,
               w1_ref, b1_ref, w2_ref, b2_ref, g_f_ref, b_f_ref,
               out_ref, slf_attn_ref, enc_attn_ref):
        x = x_ref[...]          # (S, E)   decoder input (also residual of self-attn)
        enc = enc_ref[...]      # (Se, E)  encoder output

        # ---- self-attention: one fused QKV projection (N = 2*H*dk + H*dv) ----
        qkv = jnp.dot(x, wqkv_s_ref[...], preferred_element_type=jnp.float32)
        y1, slf_attn = attend(qkv[:, :H * dk],
                              qkv[:, H * dk:2 * H * dk],
                              qkv[:, 2 * H * dk:],
                              ymask_ref[...], wo_s_ref[...],
                              x, g_s_ref[...], b_s_ref[...])
        slf_attn_ref[...] = slf_attn

        # ---- cross-attention: one Q projection + one fused KV projection ----
        q_all = jnp.dot(y1, wq_c_ref[...], preferred_element_type=jnp.float32)
        kv = jnp.dot(enc, wkv_c_ref[...], preferred_element_type=jnp.float32)
        y2, enc_attn = attend(q_all, kv[:, :H * dk], kv[:, H * dk:],
                              xmask_ref[...], wo_c_ref[...],
                              y1, g_c_ref[...], b_c_ref[...])
        enc_attn_ref[...] = enc_attn

        # ---- positionwise FFN + residual + LayerNorm ----
        hdn = jnp.maximum(jnp.dot(y2, w1_ref[...], preferred_element_type=jnp.float32)
                          + b1_ref[...], 0.0)
        y3 = jnp.dot(hdn, w2_ref[...], preferred_element_type=jnp.float32) + b2_ref[...] + y2
        out_ref[...] = layernorm(y3, g_f_ref[...], b_f_ref[...]).astype(out_ref.dtype)

    return kernel


def decoder_layer_forward(d_in, e_out, y_mask, x_mask, params, key_dim):
    B, S, E = d_in.shape
    Se = e_out.shape[1]
    slf, crs, ffn = params["slf_attn"], params["enc_attn"], params["pos_ffn"]
    H, _, dk = slf["wq"].shape
    dv = slf["wv"].shape[2]
    Dh = ffn["w1"].shape[1]

    # Layout plumbing (would be done once at parameter-setup time in a real deployment):
    # (H, E, d) head-major weights -> lane-dense (E, H*d) slabs; output proj -> (H*dv, E).
    def pack(w):
        return jnp.transpose(w, (1, 0, 2)).reshape(E, -1)

    wqkv_s = jnp.concatenate([pack(slf["wq"]), pack(slf["wk"]), pack(slf["wv"])], axis=1)
    wo_s = slf["wo"].reshape(H * dv, E)
    wq_c = pack(crs["wq"])
    wkv_c = jnp.concatenate([pack(crs["wk"]), pack(crs["wv"])], axis=1)
    wo_c = crs["wo"].reshape(H * dv, E)

    kernel = _make_decoder_kernel(S, Se, E, H, dk, dv, Dh, float(key_dim) ** 0.5)
    const2 = lambda b: (0, 0)

    out, slf_p, enc_p = pl.pallas_call(
        kernel,
        out_shape=(
            jax.ShapeDtypeStruct((B, S, E), d_in.dtype),
            jax.ShapeDtypeStruct((B, S, H * S), jnp.float32),
            jax.ShapeDtypeStruct((B, S, H * Se), jnp.float32),
        ),
        grid_spec=pltpu.PrefetchScalarGridSpec(
            num_scalar_prefetch=0,
            grid=(B,),
            in_specs=[
                pl.BlockSpec((None, S, E), lambda b: (b, 0, 0)),      # d_in
                pl.BlockSpec((None, Se, E), lambda b: (b, 0, 0)),     # e_out
                pl.BlockSpec((None, S, S), lambda b: (b, 0, 0)),      # y_mask
                pl.BlockSpec((None, S, Se), lambda b: (b, 0, 0)),     # x_mask
                pl.BlockSpec((E, 2 * H * dk + H * dv), const2),       # self Wqkv (resident)
                pl.BlockSpec((H * dv, E), const2),                    # self Wo
                pl.BlockSpec((1, E), const2),                         # self LN gamma
                pl.BlockSpec((1, E), const2),                         # self LN beta
                pl.BlockSpec((E, H * dk), const2),                    # cross Wq
                pl.BlockSpec((E, H * dk + H * dv), const2),           # cross Wkv
                pl.BlockSpec((H * dv, E), const2),                    # cross Wo
                pl.BlockSpec((1, E), const2),                         # cross LN gamma
                pl.BlockSpec((1, E), const2),                         # cross LN beta
                pl.BlockSpec((E, Dh), const2),                        # FFN W1
                pl.BlockSpec((1, Dh), const2),                        # FFN b1
                pl.BlockSpec((Dh, E), const2),                        # FFN W2
                pl.BlockSpec((1, E), const2),                         # FFN b2
                pl.BlockSpec((1, E), const2),                         # FFN LN gamma
                pl.BlockSpec((1, E), const2),                         # FFN LN beta
            ],
            out_specs=(
                pl.BlockSpec((None, S, E), lambda b: (b, 0, 0)),
                pl.BlockSpec((None, S, H * S), lambda b: (b, 0, 0)),
                pl.BlockSpec((None, S, H * Se), lambda b: (b, 0, 0)),
            ),
        ),
        compiler_params=pltpu.CompilerParams(dimension_semantics=("parallel",)),
    )(d_in, e_out, y_mask, x_mask,
      wqkv_s, wo_s, slf["gamma"], slf["beta"],
      wq_c, wkv_c, wo_c, crs["gamma"], crs["beta"],
      ffn["w1"], ffn["b1"], ffn["w2"], ffn["b2"], ffn["gamma"], ffn["beta"])

    # Unpack lane-packed attention maps back to the module's (B, H, S, Sk) layout.
    slf_attn = slf_p.reshape(B, S, H, S).transpose(0, 2, 1, 3)
    enc_attn = enc_p.reshape(B, S, H, Se).transpose(0, 2, 1, 3)
    return out, slf_attn, enc_attn


# ----------------------------------------------------------------------------------------
# Pure-JAX reference (mirrors the PyTorch eval-mode forward)
# ----------------------------------------------------------------------------------------
def _ref_layernorm(y, gamma, beta, eps=_LN_EPS):
    mu = jnp.mean(y, axis=-1, keepdims=True)
    var = jnp.mean((y - mu) ** 2, axis=-1, keepdims=True)
    return (y - mu) / jnp.sqrt(var + eps) * gamma.reshape(1, 1, -1) + beta.reshape(1, 1, -1)


def _ref_mha(q_in, kv_in, mask, p, key_dim):
    hp = lax.Precision.HIGHEST
    q = jnp.einsum("bse,hed->bhsd", q_in, p["wq"], precision=hp)
    k = jnp.einsum("bse,hed->bhsd", kv_in, p["wk"], precision=hp)
    v = jnp.einsum("bse,hed->bhsd", kv_in, p["wv"], precision=hp)
    scores = jnp.einsum("bhqd,bhkd->bhqk", q, k, precision=hp) / (float(key_dim) ** 0.5)
    scores = jnp.where(mask[:, None, :, :] == 0.0, _NEG_BIG, scores)
    attn = jax.nn.softmax(scores, axis=-1)
    ctx = jnp.einsum("bhqk,bhkd->bhqd", attn, v, precision=hp)
    proj = jnp.einsum("bhqd,hde->bqe", ctx, p["wo"], precision=hp)
    out = _ref_layernorm(proj + q_in, p["gamma"], p["beta"])
    return out, attn


def _ref_ffn(x, p):
    hp = lax.Precision.HIGHEST
    h = jnp.maximum(jnp.einsum("bse,eh->bsh", x, p["w1"], precision=hp)
                    + p["b1"].reshape(1, 1, -1), 0.0)
    y = jnp.einsum("bsh,he->bse", h, p["w2"], precision=hp) + p["b2"].reshape(1, 1, -1)
    return _ref_layernorm(y + x, p["gamma"], p["beta"])


def _ref_decoder_layer(d_in, e_out, y_mask, x_mask, params, key_dim):
    d_out, slf = _ref_mha(d_in, d_in, y_mask, params["slf_attn"], key_dim)
    d_out, enc = _ref_mha(d_out, e_out, x_mask, params["enc_attn"], key_dim)
    d_out = _ref_ffn(d_out, params["pos_ffn"])
    return d_out, slf, enc


# ----------------------------------------------------------------------------------------
# Param construction
# ----------------------------------------------------------------------------------------
def _make_mha_params(key, n_head, key_dim, value_dim, emb=EMB_SIZE):
    ks = jax.random.split(key, 6)
    sq = 1.0 / jnp.sqrt(jnp.float32(emb))
    so = 1.0 / jnp.sqrt(jnp.float32(n_head * value_dim))
    return {
        "wq": jax.random.normal(ks[0], (n_head, emb, key_dim), jnp.float32) * sq,
        "wk": jax.random.normal(ks[1], (n_head, emb, key_dim), jnp.float32) * sq,
        "wv": jax.random.normal(ks[2], (n_head, emb, value_dim), jnp.float32) * sq,
        "wo": jax.random.normal(ks[3], (n_head, value_dim, emb), jnp.float32) * so,
        "gamma": 1.0 + 0.1 * jax.random.normal(ks[4], (1, emb), jnp.float32),
        "beta": 0.1 * jax.random.normal(ks[5], (1, emb), jnp.float32),
    }


def _make_ffn_params(key, d_in, hidden):
    ks = jax.random.split(key, 6)
    s1 = 1.0 / jnp.sqrt(jnp.float32(d_in))
    s2 = 1.0 / jnp.sqrt(jnp.float32(hidden))
    return {
        "w1": jax.random.normal(ks[0], (d_in, hidden), jnp.float32) * s1,
        "b1": 0.1 * jax.random.normal(ks[1], (1, hidden), jnp.float32),
        "w2": jax.random.normal(ks[2], (hidden, d_in), jnp.float32) * s2,
        "b2": 0.1 * jax.random.normal(ks[3], (1, d_in), jnp.float32),
        "gamma": 1.0 + 0.1 * jax.random.normal(ks[4], (1, d_in), jnp.float32),
        "beta": 0.1 * jax.random.normal(ks[5], (1, d_in), jnp.float32),
    }


if __name__ == "__main__":
    key = jax.random.PRNGKey(0)
    B, S, Se, E = 2, 8, 8, EMB_SIZE
    n_head, key_dim, value_dim, d_inner = 4, 16, 16, 64

    k_in, k_enc, k_mask, k_slf, k_cross, k_ffn = jax.random.split(key, 6)

    d_in = jax.random.normal(k_in, (B, S, E), dtype=jnp.float32)
    e_out = jax.random.normal(k_enc, (B, Se, E), dtype=jnp.float32)

    # causal self-attention mask; random padding-style encoder mask (keep col 0 unmasked)
    y_mask = jnp.broadcast_to(jnp.tril(jnp.ones((S, S), jnp.float32)), (B, S, S))
    x_mask = jax.random.bernoulli(k_mask, 0.9, (B, S, Se)).astype(jnp.float32)
    x_mask = x_mask.at[:, :, 0].set(1.0)

    params = {
        "slf_attn": _make_mha_params(k_slf, n_head, key_dim, value_dim, E),
        "enc_attn": _make_mha_params(k_cross, n_head, key_dim, value_dim, E),
        "pos_ffn": _make_ffn_params(k_ffn, E, d_inner),
    }

    d_out, slf_attn, enc_attn = decoder_layer_forward(
        d_in, e_out, y_mask, x_mask, params, key_dim)
    d_out, slf_attn, enc_attn = jax.block_until_ready((d_out, slf_attn, enc_attn))

    # Reference check (pure JAX, eval-mode forward).
    r_out, r_slf, r_enc = _ref_decoder_layer(d_in, e_out, y_mask, x_mask, params, key_dim)

    assert d_out.shape == (B, S, E)
    assert slf_attn.shape == (B, n_head, S, S)
    assert enc_attn.shape == (B, n_head, S, Se)
    assert jnp.allclose(d_out, r_out, atol=3e-2, rtol=3e-2), "d_out mismatch vs reference"
    assert jnp.allclose(slf_attn, r_slf, atol=3e-2, rtol=3e-2), "slf_attn mismatch vs reference"
    assert jnp.allclose(enc_attn, r_enc, atol=3e-2, rtol=3e-2), "enc_attn mismatch vs reference"

    print("KERNEL_OK")
</pallas_src>

<mosaic_0001>
module attributes {stable_mosaic.version = 11 : i64} {
  func.func @kernel(%arg0: i32, %arg1: memref<1x8x300xf32, #tpu.memory_space<vmem>>, %arg2: memref<1x8x300xf32, #tpu.memory_space<vmem>>, %arg3: memref<1x8x8xf32, #tpu.memory_space<vmem>>, %arg4: memref<1x8x8xf32, #tpu.memory_space<vmem>>, %arg5: memref<300x192xf32, #tpu.memory_space<vmem>>, %arg6: memref<64x300xf32, #tpu.memory_space<vmem>>, %arg7: memref<1x300xf32, #tpu.memory_space<vmem>>, %arg8: memref<1x300xf32, #tpu.memory_space<vmem>>, %arg9: memref<300x64xf32, #tpu.memory_space<vmem>>, %arg10: memref<300x128xf32, #tpu.memory_space<vmem>>, %arg11: memref<64x300xf32, #tpu.memory_space<vmem>>, %arg12: memref<1x300xf32, #tpu.memory_space<vmem>>, %arg13: memref<1x300xf32, #tpu.memory_space<vmem>>, %arg14: memref<300x64xf32, #tpu.memory_space<vmem>>, %arg15: memref<1x64xf32, #tpu.memory_space<vmem>>, %arg16: memref<64x300xf32, #tpu.memory_space<vmem>>, %arg17: memref<1x300xf32, #tpu.memory_space<vmem>>, %arg18: memref<1x300xf32, #tpu.memory_space<vmem>>, %arg19: memref<1x300xf32, #tpu.memory_space<vmem>>, %arg20: memref<1x8x300xf32, #tpu.memory_space<vmem>>, %arg21: memref<1x8x32xf32, #tpu.memory_space<vmem>>, %arg22: memref<1x8x32xf32, #tpu.memory_space<vmem>>) attributes {dimension_semantics = [#tpu.dimension_semantics<parallel>], iteration_bounds = array<i64: 2>, scalar_prefetch = 0 : i64, scratch_operands = 0 : i64, tpu.core_type = #tpu.core_type<tc>, window_params = [{transform_indices = @transform_0, window_bounds = array<i64: 1, 8, 300>}, {transform_indices = @transform_1, window_bounds = array<i64: 1, 8, 300>}, {transform_indices = @transform_2, window_bounds = array<i64: 1, 8, 8>}, {transform_indices = @transform_3, window_bounds = array<i64: 1, 8, 8>}, {pipeline_mode = #tpu.pipeline_mode<synchronous>, transform_indices = @transform_4, window_bounds = array<i64: 300, 192>}, {pipeline_mode = #tpu.pipeline_mode<synchronous>, transform_indices = @transform_5, window_bounds = array<i64: 64, 300>}, {pipeline_mode = #tpu.pipeline_mode<synchronous>, transform_indices = @transform_6, window_bounds = array<i64: 1, 300>}, {pipeline_mode = #tpu.pipeline_mode<synchronous>, transform_indices = @transform_7, window_bounds = array<i64: 1, 300>}, {pipeline_mode = #tpu.pipeline_mode<synchronous>, transform_indices = @transform_8, window_bounds = array<i64: 300, 64>}, {pipeline_mode = #tpu.pipeline_mode<synchronous>, transform_indices = @transform_9, window_bounds = array<i64: 300, 128>}, {pipeline_mode = #tpu.pipeline_mode<synchronous>, transform_indices = @transform_10, window_bounds = array<i64: 64, 300>}, {pipeline_mode = #tpu.pipeline_mode<synchronous>, transform_indices = @transform_11, window_bounds = array<i64: 1, 300>}, {pipeline_mode = #tpu.pipeline_mode<synchronous>, transform_indices = @transform_12, window_bounds = array<i64: 1, 300>}, {pipeline_mode = #tpu.pipeline_mode<synchronous>, transform_indices = @transform_13, window_bounds = array<i64: 300, 64>}, {pipeline_mode = #tpu.pipeline_mode<synchronous>, transform_indices = @transform_14, window_bounds = array<i64: 1, 64>}, {pipeline_mode = #tpu.pipeline_mode<synchronous>, transform_indices = @transform_15, window_bounds = array<i64: 64, 300>}, {pipeline_mode = #tpu.pipeline_mode<synchronous>, transform_indices = @transform_16, window_bounds = array<i64: 1, 300>}, {pipeline_mode = #tpu.pipeline_mode<synchronous>, transform_indices = @transform_17, window_bounds = array<i64: 1, 300>}, {pipeline_mode = #tpu.pipeline_mode<synchronous>, transform_indices = @transform_18, window_bounds = array<i64: 1, 300>}, {transform_indices = @transform_19, window_bounds = array<i64: 1, 8, 300>}, {transform_indices = @transform_20, window_bounds = array<i64: 1, 8, 32>}, {transform_indices = @transform_21, window_bounds = array<i64: 1, 8, 32>}]} {
    %c0 = arith.constant 0 : index
    %c0_0 = arith.constant 0 : index
    %c0_1 = arith.constant 0 : index
    %0 = vector.load %arg1[%c0, %c0_0, %c0_1] : memref<1x8x300xf32, #tpu.memory_space<vmem>>, vector<1x8x300xf32>
    %1 = vector.shape_cast %0 : vector<1x8x300xf32> to vector<8x300xf32>
    %c0_2 = arith.constant 0 : index
    %c0_3 = arith.constant 0 : index
    %c0_4 = arith.constant 0 : index
    %2 = vector.load %arg2[%c0_2, %c0_3, %c0_4] : memref<1x8x300xf32, #tpu.memory_space<vmem>>, vector<1x8x300xf32>
    %3 = vector.shape_cast %2 : vector<1x8x300xf32> to vector<8x300xf32>
    %c0_5 = arith.constant 0 : index
    %c0_6 = arith.constant 0 : index
    %4 = vector.load %arg5[%c0_5, %c0_6] : memref<300x192xf32, #tpu.memory_space<vmem>>, vector<300x192xf32>
    %cst = arith.constant dense<0.000000e+00> : vector<8x192xf32>
    %5 = tpu.matmul %1, %4, %cst {dimension_numbers = #tpu.dot_dimension_numbers<[1], [0], [0], [1], [0, 0, 1, 1], [], []>} : vector<8x300xf32>, vector<300x192xf32>, vector<8x192xf32> -> vector<8x192xf32>
    %6 = vector.extract_strided_slice %5 {offsets = [0, 0], sizes = [8, 64], strides = [1, 1]} : vector<8x192xf32> to vector<8x64xf32>
    %7 = vector.extract_strided_slice %5 {offsets = [0, 64], sizes = [8, 64], strides = [1, 1]} : vector<8x192xf32> to vector<8x64xf32>
    %8 = vector.extract_strided_slice %5 {offsets = [0, 128], sizes = [8, 64], strides = [1, 1]} : vector<8x192xf32> to vector<8x64xf32>
    %c0_7 = arith.constant 0 : index
    %c0_8 = arith.constant 0 : index
    %c0_9 = arith.constant 0 : index
    %9 = vector.load %arg3[%c0_7, %c0_8, %c0_9] : memref<1x8x8xf32, #tpu.memory_space<vmem>>, vector<1x8x8xf32>
    %10 = vector.shape_cast %9 : vector<1x8x8xf32> to vector<8x8xf32>
    %c0_10 = arith.constant 0 : index
    %c0_11 = arith.constant 0 : index
    %11 = vector.load %arg6[%c0_10, %c0_11] : memref<64x300xf32, #tpu.memory_space<vmem>>, vector<64x300xf32>
    %c0_12 = arith.constant 0 : index
    %c0_13 = arith.constant 0 : index
    %12 = vector.load %arg7[%c0_12, %c0_13] : memref<1x300xf32, #tpu.memory_space<vmem>>, vector<1x300xf32>
    %c0_14 = arith.constant 0 : index
    %c0_15 = arith.constant 0 : index
    %13 = vector.load %arg8[%c0_14, %c0_15] : memref<1x300xf32, #tpu.memory_space<vmem>>, vector<1x300xf32>
    %cst_16 = arith.constant 0.000000e+00 : f32
    %14 = vector.broadcast %cst_16 : f32 to vector<8x8xf32>
    %15 = arith.cmpf oeq, %10, %14 : vector<8x8xf32>
    %16 = vector.extract_strided_slice %6 {offsets = [0, 0], sizes = [8, 16], strides = [1, 1]} : vector<8x64xf32> to vector<8x16xf32>
    %17 = vector.extract_strided_slice %7 {offsets = [0, 0], sizes = [8, 16], strides = [1, 1]} : vector<8x64xf32> to vector<8x16xf32>
    %18 = vector.extract_strided_slice %8 {offsets = [0, 0], sizes = [8, 16], strides = [1, 1]} : vector<8x64xf32> to vector<8x16xf32>
    %cst_17 = arith.constant dense<0.000000e+00> : vector<8x8xf32>
    %19 = tpu.matmul %16, %17, %cst_17 {dimension_numbers = #tpu.dot_dimension_numbers<[1], [1], [0], [0], [0, 0, 1, 0], [], []>} : vector<8x16xf32>, vector<8x16xf32>, vector<8x8xf32> -> vector<8x8xf32>
    %cst_18 = arith.constant 2.500000e-01 : f32
    %20 = vector.broadcast %cst_18 : f32 to vector<8x8xf32>
    %21 = arith.mulf %19, %20 : vector<8x8xf32>
    %cst_19 = arith.constant -1.000000e+07 : f32
    %22 = vector.broadcast %cst_19 : f32 to vector<8x8xf32>
    %23 = arith.select %15, %22, %21 : vector<8x8xi1>, vector<8x8xf32>
    %cst_20 = arith.constant dense<0xFF800000> : vector<8xf32>
    %24 = vector.multi_reduction <maximumf>, %23, %cst_20 [1] : vector<8x8xf32> to vector<8xf32>
    %25 = vector.shape_cast %24 : vector<8xf32> to vector<8x1xf32>
    %26 = vector.broadcast %25 : vector<8x1xf32> to vector<8x8xf32>
    %27 = arith.subf %23, %26 : vector<8x8xf32>
    %28 = math.exp %27 : vector<8x8xf32>
    %cst_21 = arith.constant dense<0.000000e+00> : vector<8xf32>
    %29 = vector.multi_reduction <add>, %28, %cst_21 [1] : vector<8x8xf32> to vector<8xf32>
    %30 = vector.shape_cast %29 : vector<8xf32> to vector<8x1xf32>
    %31 = tpu.reciprocal %30 {approx = true} : vector<8x1xf32> -> vector<8x1xf32>
    %32 = vector.broadcast %31 : vector<8x1xf32> to vector<8x8xf32>
    %33 = arith.mulf %28, %32 : vector<8x8xf32>
    %cst_22 = arith.constant dense<0.000000e+00> : vector<8x16xf32>
    %34 = tpu.matmul %33, %18, %cst_22 {dimension_numbers = #tpu.dot_dimension_numbers<[1], [0], [0], [1], [0, 0, 1, 1], [], []>} : vector<8x8xf32>, vector<8x16xf32>, vector<8x16xf32> -> vector<8x16xf32>
    %35 = vector.extract_strided_slice %6 {offsets = [0, 16], sizes = [8, 16], strides = [1, 1]} : vector<8x64xf32> to vector<8x16xf32>
    %36 = vector.extract_strided_slice %7 {offsets = [0, 16], sizes = [8, 16], strides = [1, 1]} : vector<8x64xf32> to vector<8x16xf32>
    %37 = vector.extract_strided_slice %8 {offsets = [0, 16], sizes = [8, 16], strides = [1, 1]} : vector<8x64xf32> to vector<8x16xf32>
    %cst_23 = arith.constant dense<0.000000e+00> : vector<8x8xf32>
    %38 = tpu.matmul %35, %36, %cst_23 {dimension_numbers = #tpu.dot_dimension_numbers<[1], [1], [0], [0], [0, 0, 1, 0], [], []>} : vector<8x16xf32>, vector<8x16xf32>, vector<8x8xf32> -> vector<8x8xf32>
    %cst_24 = arith.constant 2.500000e-01 : f32
    %39 = vector.broadcast %cst_24 : f32 to vector<8x8xf32>
    %40 = arith.mulf %38, %39 : vector<8x8xf32>
    %cst_25 = arith.constant -1.000000e+07 : f32
    %41 = vector.broadcast %cst_25 : f32 to vector<8x8xf32>
    %42 = arith.select %15, %41, %40 : vector<8x8xi1>, vector<8x8xf32>
    %cst_26 = arith.constant dense<0xFF800000> : vector<8xf32>
    %43 = vector.multi_reduction <maximumf>, %42, %cst_26 [1] : vector<8x8xf32> to vector<8xf32>
    %44 = vector.shape_cast %43 : vector<8xf32> to vector<8x1xf32>
    %45 = vector.broadcast %44 : vector<8x1xf32> to vector<8x8xf32>
    %46 = arith.subf %42, %45 : vector<8x8xf32>
    %47 = math.exp %46 : vector<8x8xf32>
    %cst_27 = arith.constant dense<0.000000e+00> : vector<8xf32>
    %48 = vector.multi_reduction <add>, %47, %cst_27 [1] : vector<8x8xf32> to vector<8xf32>
    %49 = vector.shape_cast %48 : vector<8xf32> to vector<8x1xf32>
    %50 = tpu.reciprocal %49 {approx = true} : vector<8x1xf32> -> vector<8x1xf32>
    %51 = vector.broadcast %50 : vector<8x1xf32> to vector<8x8xf32>
    %52 = arith.mulf %47, %51 : vector<8x8xf32>
    %cst_28 = arith.constant dense<0.000000e+00> : vector<8x16xf32>
    %53 = tpu.matmul %52, %37, %cst_28 {dimension_numbers = #tpu.dot_dimension_numbers<[1], [0], [0], [1], [0, 0, 1, 1], [], []>} : vector<8x8xf32>, vector<8x16xf32>, vector<8x16xf32> -> vector<8x16xf32>
    %54 = vector.extract_strided_slice %6 {offsets = [0, 32], sizes = [8, 16], strides = [1, 1]} : vector<8x64xf32> to vector<8x16xf32>
    %55 = vector.extract_strided_slice %7 {offsets = [0, 32], sizes = [8, 16], strides = [1, 1]} : vector<8x64xf32> to vector<8x16xf32>
    %56 = vector.extract_strided_slice %8 {offsets = [0, 32], sizes = [8, 16], strides = [1, 1]} : vector<8x64xf32> to vector<8x16xf32>
    %cst_29 = arith.constant dense<0.000000e+00> : vector<8x8xf32>
    %57 = tpu.matmul %54, %55, %cst_29 {dimension_numbers = #tpu.dot_dimension_numbers<[1], [1], [0], [0], [0, 0, 1, 0], [], []>} : vector<8x16xf32>, vector<8x16xf32>, vector<8x8xf32> -> vector<8x8xf32>
    %cst_30 = arith.constant 2.500000e-01 : f32
    %58 = vector.broadcast %cst_30 : f32 to vector<8x8xf32>
    %59 = arith.mulf %57, %58 : vector<8x8xf32>
    %cst_31 = arith.constant -1.000000e+07 : f32
    %60 = vector.broadcast %cst_31 : f32 to vector<8x8xf32>
    %61 = arith.select %15, %60, %59 : vector<8x8xi1>, vector<8x8xf32>
    %cst_32 = arith.constant dense<0xFF800000> : vector<8xf32>
    %62 = vector.multi_reduction <maximumf>, %61, %cst_32 [1] : vector<8x8xf32> to vector<8xf32>
    %63 = vector.shape_cast %62 : vector<8xf32> to vector<8x1xf32>
    %64 = vector.broadcast %63 : vector<8x1xf32> to vector<8x8xf32>
    %65 = arith.subf %61, %64 : vector<8x8xf32>
    %66 = math.exp %65 : vector<8x8xf32>
    %cst_33 = arith.constant dense<0.000000e+00> : vector<8xf32>
    %67 = vector.multi_reduction <add>, %66, %cst_33 [1] : vector<8x8xf32> to vector<8xf32>
    %68 = vector.shape_cast %67 : vector<8xf32> to vector<8x1xf32>
    %69 = tpu.reciprocal %68 {approx = true} : vector<8x1xf32> -> vector<8x1xf32>
    %70 = vector.broadcast %69 : vector<8x1xf32> to vector<8x8xf32>
    %71 = arith.mulf %66, %70 : vector<8x8xf32>
    %cst_34 = arith.constant dense<0.000000e+00> : vector<8x16xf32>
    %72 = tpu.matmul %71, %56, %cst_34 {dimension_numbers = #tpu.dot_dimension_numbers<[1], [0], [0], [1], [0, 0, 1, 1], [], []>} : vector<8x8xf32>, vector<8x16xf32>, vector<8x16xf32> -> vector<8x16xf32>
    %73 = vector.extract_strided_slice %6 {offsets = [0, 48], sizes = [8, 16], strides = [1, 1]} : vector<8x64xf32> to vector<8x16xf32>
    %74 = vector.extract_strided_slice %7 {offsets = [0, 48], sizes = [8, 16], strides = [1, 1]} : vector<8x64xf32> to vector<8x16xf32>
    %75 = vector.extract_strided_slice %8 {offsets = [0, 48], sizes = [8, 16], strides = [1, 1]} : vector<8x64xf32> to vector<8x16xf32>
    %cst_35 = arith.constant dense<0.000000e+00> : vector<8x8xf32>
    %76 = tpu.matmul %73, %74, %cst_35 {dimension_numbers = #tpu.dot_dimension_numbers<[1], [1], [0], [0], [0, 0, 1, 0], [], []>} : vector<8x16xf32>, vector<8x16xf32>, vector<8x8xf32> -> vector<8x8xf32>
    %cst_36 = arith.constant 2.500000e-01 : f32
    %77 = vector.broadcast %cst_36 : f32 to vector<8x8xf32>
    %78 = arith.mulf %76, %77 : vector<8x8xf32>
    %cst_37 = arith.constant -1.000000e+07 : f32
    %79 = vector.broadcast %cst_37 : f32 to vector<8x8xf32>
    %80 = arith.select %15, %79, %78 : vector<8x8xi1>, vector<8x8xf32>
    %cst_38 = arith.constant dense<0xFF800000> : vector<8xf32>
    %81 = vector.multi_reduction <maximumf>, %80, %cst_38 [1] : vector<8x8xf32> to vector<8xf32>
    %82 = vector.shape_cast %81 : vector<8xf32> to vector<8x1xf32>
    %83 = vector.broadcast %82 : vector<8x1xf32> to vector<8x8xf32>
    %84 = arith.subf %80, %83 : vector<8x8xf32>
    %85 = math.exp %84 : vector<8x8xf32>
    %cst_39 = arith.constant dense<0.000000e+00> : vector<8xf32>
    %86 = vector.multi_reduction <add>, %85, %cst_39 [1] : vector<8x8xf32> to vector<8xf32>
    %87 = vector.shape_cast %86 : vector<8xf32> to vector<8x1xf32>
    %88 = tpu.reciprocal %87 {approx = true} : vector<8x1xf32> -> vector<8x1xf32>
    %89 = vector.broadcast %88 : vector<8x1xf32> to vector<8x8xf32>
    %90 = arith.mulf %85, %89 : vector<8x8xf32>
    %cst_40 = arith.constant dense<0.000000e+00> : vector<8x16xf32>
    %91 = tpu.matmul %90, %75, %cst_40 {dimension_numbers = #tpu.dot_dimension_numbers<[1], [0], [0], [1], [0, 0, 1, 1], [], []>} : vector<8x8xf32>, vector<8x16xf32>, vector<8x16xf32> -> vector<8x16xf32>
    %92 = tpu.concatenate %34, %53, %72, %91 in 1 : vector<8x16xf32>, vector<8x16xf32>, vector<8x16xf32>, vector<8x16xf32> -> vector<8x64xf32>
    %cst_41 = arith.constant dense<0.000000e+00> : vector<8x300xf32>
    %93 = tpu.matmul %92, %11, %cst_41 {dimension_numbers = #tpu.dot_dimension_numbers<[1], [0], [0], [1], [0, 0, 1, 1], [], []>} : vector<8x64xf32>, vector<64x300xf32>, vector<8x300xf32> -> vector<8x300xf32>
    %94 = arith.addf %93, %1 : vector<8x300xf32>
    %cst_42 = arith.constant dense<0.000000e+00> : vector<8xf32>
    %95 = vector.multi_reduction <add>, %94, %cst_42 [1] : vector<8x300xf32> to vector<8xf32>
    %96 = vector.shape_cast %95 : vector<8xf32> to vector<8x1xf32>
    %cst_43 = arith.constant 3.000000e+02 : f32
    %97 = vector.broadcast %cst_43 : f32 to vector<8x1xf32>
    %98 = arith.divf %96, %97 : vector<8x1xf32>
    %99 = vector.broadcast %98 : vector<8x1xf32> to vector<8x300xf32>
    %100 = arith.subf %94, %99 : vector<8x300xf32>
    %101 = arith.mulf %100, %100 : vector<8x300xf32>
    %cst_44 = arith.constant dense<0.000000e+00> : vector<8xf32>
    %102 = vector.multi_reduction <add>, %101, %cst_44 [1] : vector<8x300xf32> to vector<8xf32>
    %103 = vector.shape_cast %102 : vector<8xf32> to vector<8x1xf32>
    %cst_45 = arith.constant 3.000000e+02 : f32
    %104 = vector.broadcast %cst_45 : f32 to vector<8x1xf32>
    %105 = arith.divf %103, %104 : vector<8x1xf32>
    %106 = vector.broadcast %98 : vector<8x1xf32> to vector<8x300xf32>
    %107 = arith.subf %94, %106 : vector<8x300xf32>
    %cst_46 = arith.constant 9.99999997E-7 : f32
    %108 = vector.broadcast %cst_46 : f32 to vector<8x1xf32>
    %109 = arith.addf %105, %108 : vector<8x1xf32>
    %110 = math.rsqrt %109 : vector<8x1xf32>
    %111 = vector.broadcast %110 : vector<8x1xf32> to vector<8x300xf32>
    %112 = arith.mulf %107, %111 : vector<8x300xf32>
    %113 = vector.broadcast %12 : vector<1x300xf32> to vector<8x300xf32>
    %114 = arith.mulf %112, %113 : vector<8x300xf32>
    %115 = vector.broadcast %13 : vector<1x300xf32> to vector<8x300xf32>
    %116 = arith.addf %114, %115 : vector<8x300xf32>
    %117 = tpu.concatenate %33, %52, %71, %90 in 1 : vector<8x8xf32>, vector<8x8xf32>, vector<8x8xf32>, vector<8x8xf32> -> vector<8x32xf32>
    %c0_47 = arith.constant 0 : index
    %c0_48 = arith.constant 0 : index
    %c0_49 = arith.constant 0 : index
    %118 = vector.load %arg21[%c0_47, %c0_48, %c0_49] : memref<1x8x32xf32, #tpu.memory_space<vmem>>, vector<1x8x32xf32>
    %119 = vector.shape_cast %118 : vector<1x8x32xf32> to vector<8x32xf32>
    %120 = vector.shape_cast %117 : vector<8x32xf32> to vector<1x8x32xf32>
    tpu.vector_store %arg21[%c0_47, %c0_48, %c0_49], %120 {strides = array<i32>} : memref<1x8x32xf32, #tpu.memory_space<vmem>>, vector<1x8x32xf32>,
    %c0_50 = arith.constant 0 : index
    %c0_51 = arith.constant 0 : index
    %121 = vector.load %arg9[%c0_50, %c0_51] : memref<300x64xf32, #tpu.memory_space<vmem>>, vector<300x64xf32>
    %cst_52 = arith.constant dense<0.000000e+00> : vector<8x64xf32>
    %122 = tpu.matmul %116, %121, %cst_52 {dimension_numbers = #tpu.dot_dimension_numbers<[1], [0], [0], [1], [0, 0, 1, 1], [], []>} : vector<8x300xf32>, vector<300x64xf32>, vector<8x64xf32> -> vector<8x64xf32>
    %c0_53 = arith.constant 0 : index
    %c0_54 = arith.constant 0 : index
    %123 = vector.load %arg10[%c0_53, %c0_54] : memref<300x128xf32, #tpu.memory_space<vmem>>, vector<300x128xf32>
    %cst_55 = arith.constant dense<0.000000e+00> : vector<8x128xf32>
    %124 = tpu.matmul %3, %123, %cst_55 {dimension_numbers = #tpu.dot_dimension_numbers<[1], [0], [0], [1], [0, 0, 1, 1], [], []>} : vector<8x300xf32>, vector<300x128xf32>, vector<8x128xf32> -> vector<8x128xf32>
    %125 = vector.extract_strided_slice %124 {offsets = [0, 0], sizes = [8, 64], strides = [1, 1]} : vector<8x128xf32> to vector<8x64xf32>
    %126 = vector.extract_strided_slice %124 {offsets = [0, 64], sizes = [8, 64], strides = [1, 1]} : vector<8x128xf32> to vector<8x64xf32>
    %c0_56 = arith.constant 0 : index
    %c0_57 = arith.constant 0 : index
    %c0_58 = arith.constant 0 : index
    %127 = vector.load %arg4[%c0_56, %c0_57, %c0_58] : memref<1x8x8xf32, #tpu.memory_space<vmem>>, vector<1x8x8xf32>
    %128 = vector.shape_cast %127 : vector<1x8x8xf32> to vector<8x8xf32>
    %c0_59 = arith.constant 0 : index
    %c0_60 = arith.constant 0 : index
    %129 = vector.load %arg11[%c0_59, %c0_60] : memref<64x300xf32, #tpu.memory_space<vmem>>, vector<64x300xf32>
    %c0_61 = arith.constant 0 : index
    %c0_62 = arith.constant 0 : index
    %130 = vector.load %arg12[%c0_61, %c0_62] : memref<1x300xf32, #tpu.memory_space<vmem>>, vector<1x300xf32>
    %c0_63 = arith.constant 0 : index
    %c0_64 = arith.constant 0 : index
    %131 = vector.load %arg13[%c0_63, %c0_64] : memref<1x300xf32, #tpu.memory_space<vmem>>, vector<1x300xf32>
    %cst_65 = arith.constant 0.000000e+00 : f32
    %132 = vector.broadcast %cst_65 : f32 to vector<8x8xf32>
    %133 = arith.cmpf oeq, %128, %132 : vector<8x8xf32>
    %134 = vector.extract_strided_slice %122 {offsets = [0, 0], sizes = [8, 16], strides = [1, 1]} : vector<8x64xf32> to vector<8x16xf32>
    %135 = vector.extract_strided_slice %125 {offsets = [0, 0], sizes = [8, 16], strides = [1, 1]} : vector<8x64xf32> to vector<8x16xf32>
    %136 = vector.extract_strided_slice %126 {offsets = [0, 0], sizes = [8, 16], strides = [1, 1]} : vector<8x64xf32> to vector<8x16xf32>
    %cst_66 = arith.constant dense<0.000000e+00> : vector<8x8xf32>
    %137 = tpu.matmul %134, %135, %cst_66 {dimension_numbers = #tpu.dot_dimension_numbers<[1], [1], [0], [0], [0, 0, 1, 0], [], []>} : vector<8x16xf32>, vector<8x16xf32>, vector<8x8xf32> -> vector<8x8xf32>
    %cst_67 = arith.constant 2.500000e-01 : f32
    %138 = vector.broadcast %cst_67 : f32 to vector<8x8xf32>
    %139 = arith.mulf %137, %138 : vector<8x8xf32>
    %cst_68 = arith.constant -1.000000e+07 : f32
    %140 = vector.broadcast %cst_68 : f32 to vector<8x8xf32>
    %141 = arith.select %133, %140, %139 : vector<8x8xi1>, vector<8x8xf32>
    %cst_69 = arith.constant dense<0xFF800000> : vector<8xf32>
    %142 = vector.multi_reduction <maximumf>, %141, %cst_69 [1] : vector<8x8xf32> to vector<8xf32>
    %143 = vector.shape_cast %142 : vector<8xf32> to vector<8x1xf32>
    %144 = vector.broadcast %143 : vector<8x1xf32> to vector<8x8xf32>
    %145 = arith.subf %141, %144 : vector<8x8xf32>
    %146 = math.exp %145 : vector<8x8xf32>
    %cst_70 = arith.constant dense<0.000000e+00> : vector<8xf32>
    %147 = vector.multi_reduction <add>, %146, %cst_70 [1] : vector<8x8xf32> to vector<8xf32>
    %148 = vector.shape_cast %147 : vector<8xf32> to vector<8x1xf32>
    %149 = tpu.reciprocal %148 {approx = true} : vector<8x1xf32> -> vector<8x1xf32>
    %150 = vector.broadcast %149 : vector<8x1xf32> to vector<8x8xf32>
    %151 = arith.mulf %146, %150 : vector<8x8xf32>
    %cst_71 = arith.constant dense<0.000000e+00> : vector<8x16xf32>
    %152 = tpu.matmul %151, %136, %cst_71 {dimension_numbers = #tpu.dot_dimension_numbers<[1], [0], [0], [1], [0, 0, 1, 1], [], []>} : vector<8x8xf32>, vector<8x16xf32>, vector<8x16xf32> -> vector<8x16xf32>
    %153 = vector.extract_strided_slice %122 {offsets = [0, 16], sizes = [8, 16], strides = [1, 1]} : vector<8x64xf32> to vector<8x16xf32>
    %154 = vector.extract_strided_slice %125 {offsets = [0, 16], sizes = [8, 16], strides = [1, 1]} : vector<8x64xf32> to vector<8x16xf32>
    %155 = vector.extract_strided_slice %126 {offsets = [0, 16], sizes = [8, 16], strides = [1, 1]} : vector<8x64xf32> to vector<8x16xf32>
    %cst_72 = arith.constant dense<0.000000e+00> : vector<8x8xf32>
    %156 = tpu.matmul %153, %154, %cst_72 {dimension_numbers = #tpu.dot_dimension_numbers<[1], [1], [0], [0], [0, 0, 1, 0], [], []>} : vector<8x16xf32>, vector<8x16xf32>, vector<8x8xf32> -> vector<8x8xf32>
    %cst_73 = arith.constant 2.500000e-01 : f32
    %157 = vector.broadcast %cst_73 : f32 to vector<8x8xf32>
    %158 = arith.mulf %156, %157 : vector<8x8xf32>
    %cst_74 = arith.constant -1.000000e+07 : f32
    %159 = vector.broadcast %cst_74 : f32 to vector<8x8xf32>
    %160 = arith.select %133, %159, %158 : vector<8x8xi1>, vector<8x8xf32>
    %cst_75 = arith.constant dense<0xFF800000> : vector<8xf32>
    %161 = vector.multi_reduction <maximumf>, %160, %cst_75 [1] : vector<8x8xf32> to vector<8xf32>
    %162 = vector.shape_cast %161 : vector<8xf32> to vector<8x1xf32>
    %163 = vector.broadcast %162 : vector<8x1xf32> to vector<8x8xf32>
    %164 = arith.subf %160, %163 : vector<8x8xf32>
    %165 = math.exp %164 : vector<8x8xf32>
    %cst_76 = arith.constant dense<0.000000e+00> : vector<8xf32>
    %166 = vector.multi_reduction <add>, %165, %cst_76 [1] : vector<8x8xf32> to vector<8xf32>
    %167 = vector.shape_cast %166 : vector<8xf32> to vector<8x1xf32>
    %168 = tpu.reciprocal %167 {approx = true} : vector<8x1xf32> -> vector<8x1xf32>
    %169 = vector.broadcast %168 : vector<8x1xf32> to vector<8x8xf32>
    %170 = arith.mulf %165, %169 : vector<8x8xf32>
    %cst_77 = arith.constant dense<0.000000e+00> : vector<8x16xf32>
    %171 = tpu.matmul %170, %155, %cst_77 {dimension_numbers = #tpu.dot_dimension_numbers<[1], [0], [0], [1], [0, 0, 1, 1], [], []>} : vector<8x8xf32>, vector<8x16xf32>, vector<8x16xf32> -> vector<8x16xf32>
    %172 = vector.extract_strided_slice %122 {offsets = [0, 32], sizes = [8, 16], strides = [1, 1]} : vector<8x64xf32> to vector<8x16xf32>
    %173 = vector.extract_strided_slice %125 {offsets = [0, 32], sizes = [8, 16], strides = [1, 1]} : vector<8x64xf32> to vector<8x16xf32>
    %174 = vector.extract_strided_slice %126 {offsets = [0, 32], sizes = [8, 16], strides = [1, 1]} : vector<8x64xf32> to vector<8x16xf32>
    %cst_78 = arith.constant dense<0.000000e+00> : vector<8x8xf32>
    %175 = tpu.matmul %172, %173, %cst_78 {dimension_numbers = #tpu.dot_dimension_numbers<[1], [1], [0], [0], [0, 0, 1, 0], [], []>} : vector<8x16xf32>, vector<8x16xf32>, vector<8x8xf32> -> vector<8x8xf32>
    %cst_79 = arith.constant 2.500000e-01 : f32
    %176 = vector.broadcast %cst_79 : f32 to vector<8x8xf32>
    %177 = arith.mulf %175, %176 : vector<8x8xf32>
    %cst_80 = arith.constant -1.000000e+07 : f32
    %178 = vector.broadcast %cst_80 : f32 to vector<8x8xf32>
    %179 = arith.select %133, %178, %177 : vector<8x8xi1>, vector<8x8xf32>
    %cst_81 = arith.constant dense<0xFF800000> : vector<8xf32>
    %180 = vector.multi_reduction <maximumf>, %179, %cst_81 [1] : vector<8x8xf32> to vector<8xf32>
    %181 = vector.shape_cast %180 : vector<8xf32> to vector<8x1xf32>
    %182 = vector.broadcast %181 : vector<8x1xf32> to vector<8x8xf32>
    %183 = arith.subf %179, %182 : vector<8x8xf32>
    %184 = math.exp %183 : vector<8x8xf32>
    %cst_82 = arith.constant dense<0.000000e+00> : vector<8xf32>
    %185 = vector.multi_reduction <add>, %184, %cst_82 [1] : vector<8x8xf32> to vector<8xf32>
    %186 = vector.shape_cast %185 : vector<8xf32> to vector<8x1xf32>
    %187 = tpu.reciprocal %186 {approx = true} : vector<8x1xf32> -> vector<8x1xf32>
    %188 = vector.broadcast %187 : vector<8x1xf32> to vector<8x8xf32>
    %189 = arith.mulf %184, %188 : vector<8x8xf32>
    %cst_83 = arith.constant dense<0.000000e+00> : vector<8x16xf32>
    %190 = tpu.matmul %189, %174, %cst_83 {dimension_numbers = #tpu.dot_dimension_numbers<[1], [0], [0], [1], [0, 0, 1, 1], [], []>} : vector<8x8xf32>, vector<8x16xf32>, vector<8x16xf32> -> vector<8x16xf32>
    %191 = vector.extract_strided_slice %122 {offsets = [0, 48], sizes = [8, 16], strides = [1, 1]} : vector<8x64xf32> to vector<8x16xf32>
    %192 = vector.extract_strided_slice %125 {offsets = [0, 48], sizes = [8, 16], strides = [1, 1]} : vector<8x64xf32> to vector<8x16xf32>
    %193 = vector.extract_strided_slice %126 {offsets = [0, 48], sizes = [8, 16], strides = [1, 1]} : vector<8x64xf32> to vector<8x16xf32>
    %cst_84 = arith.constant dense<0.000000e+00> : vector<8x8xf32>
    %194 = tpu.matmul %191, %192, %cst_84 {dimension_numbers = #tpu.dot_dimension_numbers<[1], [1], [0], [0], [0, 0, 1, 0], [], []>} : vector<8x16xf32>, vector<8x16xf32>, vector<8x8xf32> -> vector<8x8xf32>
    %cst_85 = arith.constant 2.500000e-01 : f32
    %195 = vector.broadcast %cst_85 : f32 to vector<8x8xf32>
    %196 = arith.mulf %194, %195 : vector<8x8xf32>
    %cst_86 = arith.constant -1.000000e+07 : f32
    %197 = vector.broadcast %cst_86 : f32 to vector<8x8xf32>
    %198 = arith.select %133, %197, %196 : vector<8x8xi1>, vector<8x8xf32>
    %cst_87 = arith.constant dense<0xFF800000> : vector<8xf32>
    %199 = vector.multi_reduction <maximumf>, %198, %cst_87 [1] : vector<8x8xf32> to vector<8xf32>
    %200 = vector.shape_cast %199 : vector<8xf32> to vector<8x1xf32>
    %201 = vector.broadcast %200 : vector<8x1xf32> to vector<8x8xf32>
    %202 = arith.subf %198, %201 : vector<8x8xf32>
    %203 = math.exp %202 : vector<8x8xf32>
    %cst_88 = arith.constant dense<0.000000e+00> : vector<8xf32>
    %204 = vector.multi_reduction <add>, %203, %cst_88 [1] : vector<8x8xf32> to vector<8xf32>
    %205 = vector.shape_cast %204 : vector<8xf32> to vector<8x1xf32>
    %206 = tpu.reciprocal %205 {approx = true} : vector<8x1xf32> -> vector<8x1xf32>
    %207 = vector.broadcast %206 : vector<8x1xf32> to vector<8x8xf32>
    %208 = arith.mulf %203, %207 : vector<8x8xf32>
    %cst_89 = arith.constant dense<0.000000e+00> : vector<8x16xf32>
    %209 = tpu.matmul %208, %193, %cst_89 {dimension_numbers = #tpu.dot_dimension_numbers<[1], [0], [0], [1], [0, 0, 1, 1], [], []>} : vector<8x8xf32>, vector<8x16xf32>, vector<8x16xf32> -> vector<8x16xf32>
    %210 = tpu.concatenate %152, %171, %190, %209 in 1 : vector<8x16xf32>, vector<8x16xf32>, vector<8x16xf32>, vector<8x16xf32> -> vector<8x64xf32>
    %cst_90 = arith.constant dense<0.000000e+00> : vector<8x300xf32>
    %211 = tpu.matmul %210, %129, %cst_90 {dimension_numbers = #tpu.dot_dimension_numbers<[1], [0], [0], [1], [0, 0, 1, 1], [], []>} : vector<8x64xf32>, vector<64x300xf32>, vector<8x300xf32> -> vector<8x300xf32>
    %212 = arith.addf %211, %116 : vector<8x300xf32>
    %cst_91 = arith.constant dense<0.000000e+00> : vector<8xf32>
    %213 = vector.multi_reduction <add>, %212, %cst_91 [1] : vector<8x300xf32> to vector<8xf32>
    %214 = vector.shape_cast %213 : vector<8xf32> to vector<8x1xf32>
    %cst_92 = arith.constant 3.000000e+02 : f32
    %215 = vector.broadcast %cst_92 : f32 to vector<8x1xf32>
    %216 = arith.divf %214, %215 : vector<8x1xf32>
    %217 = vector.broadcast %216 : vector<8x1xf32> to vector<8x300xf32>
    %218 = arith.subf %212, %217 : vector<8x300xf32>
    %219 = arith.mulf %218, %218 : vector<8x300xf32>
    %cst_93 = arith.constant dense<0.000000e+00> : vector<8xf32>
    %220 = vector.multi_reduction <add>, %219, %cst_93 [1] : vector<8x300xf32> to vector<8xf32>
    %221 = vector.shape_cast %220 : vector<8xf32> to vector<8x1xf32>
    %cst_94 = arith.constant 3.000000e+02 : f32
    %222 = vector.broadcast %cst_94 : f32 to vector<8x1xf32>
    %223 = arith.divf %221, %222 : vector<8x1xf32>
    %224 = vector.broadcast %216 : vector<8x1xf32> to vector<8x300xf32>
    %225 = arith.subf %212, %224 : vector<8x300xf32>
    %cst_95 = arith.constant 9.99999997E-7 : f32
    %226 = vector.broadcast %cst_95 : f32 to vector<8x1xf32>
    %227 = arith.addf %223, %226 : vector<8x1xf32>
    %228 = math.rsqrt %227 : vector<8x1xf32>
    %229 = vector.broadcast %228 : vector<8x1xf32> to vector<8x300xf32>
    %230 = arith.mulf %225, %229 : vector<8x300xf32>
    %231 = vector.broadcast %130 : vector<1x300xf32> to vector<8x300xf32>
    %232 = arith.mulf %230, %231 : vector<8x300xf32>
    %233 = vector.broadcast %131 : vector<1x300xf32> to vector<8x300xf32>
    %234 = arith.addf %232, %233 : vector<8x300xf32>
    %235 = tpu.concatenate %151, %170, %189, %208 in 1 : vector<8x8xf32>, vector<8x8xf32>, vector<8x8xf32>, vector<8x8xf32> -> vector<8x32xf32>
    %c0_96 = arith.constant 0 : index
    %c0_97 = arith.constant 0 : index
    %c0_98 = arith.constant 0 : index
    %236 = vector.load %arg22[%c0_96, %c0_97, %c0_98] : memref<1x8x32xf32, #tpu.memory_space<vmem>>, vector<1x8x32xf32>
    %237 = vector.shape_cast %236 : vector<1x8x32xf32> to vector<8x32xf32>
    %238 = vector.shape_cast %235 : vector<8x32xf32> to vector<1x8x32xf32>
    tpu.vector_store %arg22[%c0_96, %c0_97, %c0_98], %238 {strides = array<i32>} : memref<1x8x32xf32, #tpu.memory_space<vmem>>, vector<1x8x32xf32>,
    %c0_99 = arith.constant 0 : index
    %c0_100 = arith.constant 0 : index
    %239 = vector.load %arg14[%c0_99, %c0_100] : memref<300x64xf32, #tpu.memory_space<vmem>>, vector<300x64xf32>
    %cst_101 = arith.constant dense<0.000000e+00> : vector<8x64xf32>
    %240 = tpu.matmul %234, %239, %cst_101 {dimension_numbers = #tpu.dot_dimension_numbers<[1], [0], [0], [1], [0, 0, 1, 1], [], []>} : vector<8x300xf32>, vector<300x64xf32>, vector<8x64xf32> -> vector<8x64xf32>
    %c0_102 = arith.constant 0 : index
    %c0_103 = arith.constant 0 : index
    %241 = vector.load %arg15[%c0_102, %c0_103] : memref<1x64xf32, #tpu.memory_space<vmem>>, vector<1x64xf32>
    %242 = vector.broadcast %241 : vector<1x64xf32> to vector<8x64xf32>
    %243 = arith.addf %240, %242 : vector<8x64xf32>
    %cst_104 = arith.constant 0.000000e+00 : f32
    %244 = vector.broadcast %cst_104 : f32 to vector<8x64xf32>
    %245 = arith.maximumf %243, %244 : vector<8x64xf32>
    %c0_105 = arith.constant 0 : index
    %c0_106 = arith.constant 0 : index
    %246 = vector.load %arg16[%c0_105, %c0_106] : memref<64x300xf32, #tpu.memory_space<vmem>>, vector<64x300xf32>
    %cst_107 = arith.constant dense<0.000000e+00> : vector<8x300xf32>
    %247 = tpu.matmul %245, %246, %cst_107 {dimension_numbers = #tpu.dot_dimension_numbers<[1], [0], [0], [1], [0, 0, 1, 1], [], []>} : vector<8x64xf32>, vector<64x300xf32>, vector<8x300xf32> -> vector<8x300xf32>
    %c0_108 = arith.constant 0 : index
    %c0_109 = arith.constant 0 : index
    %248 = vector.load %arg17[%c0_108, %c0_109] : memref<1x300xf32, #tpu.memory_space<vmem>>, vector<1x300xf32>
    %249 = vector.broadcast %248 : vector<1x300xf32> to vector<8x300xf32>
    %250 = arith.addf %247, %249 : vector<8x300xf32>
    %251 = arith.addf %250, %234 : vector<8x300xf32>
    %c0_110 = arith.constant 0 : index
    %c0_111 = arith.constant 0 : index
    %252 = vector.load %arg18[%c0_110, %c0_111] : memref<1x300xf32, #tpu.memory_space<vmem>>, vector<1x300xf32>
    %c0_112 = arith.constant 0 : index
    %c0_113 = arith.constant 0 : index
    %253 = vector.load %arg19[%c0_112, %c0_113] : memref<1x300xf32, #tpu.memory_space<vmem>>, vector<1x300xf32>
    %cst_114 = arith.constant dense<0.000000e+00> : vector<8xf32>
    %254 = vector.multi_reduction <add>, %251, %cst_114 [1] : vector<8x300xf32> to vector<8xf32>
    %255 = vector.shape_cast %254 : vector<8xf32> to vector<8x1xf32>
    %cst_115 = arith.constant 3.000000e+02 : f32
    %256 = vector.broadcast %cst_115 : f32 to vector<8x1xf32>
    %257 = arith.divf %255, %256 : vector<8x1xf32>
    %258 = vector.broadcast %257 : vector<8x1xf32> to vector<8x300xf32>
    %259 = arith.subf %251, %258 : vector<8x300xf32>
    %260 = arith.mulf %259, %259 : vector<8x300xf32>
    %cst_116 = arith.constant dense<0.000000e+00> : vector<8xf32>
    %261 = vector.multi_reduction <add>, %260, %cst_116 [1] : vector<8x300xf32> to vector<8xf32>
    %262 = vector.shape_cast %261 : vector<8xf32> to vector<8x1xf32>
    %cst_117 = arith.constant 3.000000e+02 : f32
    %263 = vector.broadcast %cst_117 : f32 to vector<8x1xf32>
    %264 = arith.divf %262, %263 : vector<8x1xf32>
    %265 = vector.broadcast %257 : vector<8x1xf32> to vector<8x300xf32>
    %266 = arith.subf %251, %265 : vector<8x300xf32>
    %cst_118 = arith.constant 9.99999997E-7 : f32
    %267 = vector.broadcast %cst_118 : f32 to vector<8x1xf32>
    %268 = arith.addf %264, %267 : vector<8x1xf32>
    %269 = math.rsqrt %268 : vector<8x1xf32>
    %270 = vector.broadcast %269 : vector<8x1xf32> to vector<8x300xf32>
    %271 = arith.mulf %266, %270 : vector<8x300xf32>
    %272 = vector.broadcast %252 : vector<1x300xf32> to vector<8x300xf32>
    %273 = arith.mulf %271, %272 : vector<8x300xf32>
    %274 = vector.broadcast %253 : vector<1x300xf32> to vector<8x300xf32>
    %275 = arith.addf %273, %274 : vector<8x300xf32>
    %c0_119 = arith.constant 0 : index
    %c0_120 = arith.constant 0 : index
    %c0_121 = arith.constant 0 : index
    %276 = vector.load %arg20[%c0_119, %c0_120, %c0_121] : memref<1x8x300xf32, #tpu.memory_space<vmem>>, vector<1x8x300xf32>
    %277 = vector.shape_cast %276 : vector<1x8x300xf32> to vector<8x300xf32>
    %278 = vector.shape_cast %275 : vector<8x300xf32> to vector<1x8x300xf32>
    tpu.vector_store %arg20[%c0_119, %c0_120, %c0_121], %278 {strides = array<i32>} : memref<1x8x300xf32, #tpu.memory_space<vmem>>, vector<1x8x300xf32>,
    return
  }
  func.func @transform_0(%arg0: i32) -> (i32, i32, i32) {
    %c0_i32 = arith.constant 0 : i32
    %c0_i32_0 = arith.constant 0 : i32
    %c0_i32_1 = arith.constant 0 : i32
    return %arg0, %c0_i32, %c0_i32_0 : i32, i32, i32
  }
  func.func @transform_1(%arg0: i32) -> (i32, i32, i32) {
    %c0_i32 = arith.constant 0 : i32
    %c0_i32_0 = arith.constant 0 : i32
    %c0_i32_1 = arith.constant 0 : i32
    return %arg0, %c0_i32, %c0_i32_0 : i32, i32, i32
  }
  func.func @transform_2(%arg0: i32) -> (i32, i32, i32) {
    %c0_i32 = arith.constant 0 : i32
    %c0_i32_0 = arith.constant 0 : i32
    %c0_i32_1 = arith.constant 0 : i32
    return %arg0, %c0_i32, %c0_i32_0 : i32, i32, i32
  }
  func.func @transform_3(%arg0: i32) -> (i32, i32, i32) {
    %c0_i32 = arith.constant 0 : i32
    %c0_i32_0 = arith.constant 0 : i32
    %c0_i32_1 = arith.constant 0 : i32
    return %arg0, %c0_i32, %c0_i32_0 : i32, i32, i32
  }
  func.func @transform_4(%arg0: i32) -> (i32, i32) {
    %c0_i32 = arith.constant 0 : i32
    %c0_i32_0 = arith.constant 0 : i32
    %c0_i32_1 = arith.constant 0 : i32
    return %c0_i32, %c0_i32_0 : i32, i32
  }
  func.func @transform_5(%arg0: i32) -> (i32, i32) {
    %c0_i32 = arith.constant 0 : i32
    %c0_i32_0 = arith.constant 0 : i32
    %c0_i32_1 = arith.constant 0 : i32
    return %c0_i32, %c0_i32_0 : i32, i32
  }
  func.func @transform_6(%arg0: i32) -> (i32, i32) {
    %c0_i32 = arith.constant 0 : i32
    %c0_i32_0 = arith.constant 0 : i32
    %c0_i32_1 = arith.constant 0 : i32
    return %c0_i32, %c0_i32_0 : i32, i32
  }
  func.func @transform_7(%arg0: i32) -> (i32, i32) {
    %c0_i32 = arith.constant 0 : i32
    %c0_i32_0 = arith.constant 0 : i32
    %c0_i32_1 = arith.constant 0 : i32
    return %c0_i32, %c0_i32_0 : i32, i32
  }
  func.func @transform_8(%arg0: i32) -> (i32, i32) {
    %c0_i32 = arith.constant 0 : i32
    %c0_i32_0 = arith.constant 0 : i32
    %c0_i32_1 = arith.constant 0 : i32
    return %c0_i32, %c0_i32_0 : i32, i32
  }
  func.func @transform_9(%arg0: i32) -> (i32, i32) {
    %c0_i32 = arith.constant 0 : i32
    %c0_i32_0 = arith.constant 0 : i32
    %c0_i32_1 = arith.constant 0 : i32
    return %c0_i32, %c0_i32_0 : i32, i32
  }
  func.func @transform_10(%arg0: i32) -> (i32, i32) {
    %c0_i32 = arith.constant 0 : i32
    %c0_i32_0 = arith.constant 0 : i32
    %c0_i32_1 = arith.constant 0 : i32
    return %c0_i32, %c0_i32_0 : i32, i32
  }
  func.func @transform_11(%arg0: i32) -> (i32, i32) {
    %c0_i32 = arith.constant 0 : i32
    %c0_i32_0 = arith.constant 0 : i32
    %c0_i32_1 = arith.constant 0 : i32
    return %c0_i32, %c0_i32_0 : i32, i32
  }
  func.func @transform_12(%arg0: i32) -> (i32, i32) {
    %c0_i32 = arith.constant 0 : i32
    %c0_i32_0 = arith.constant 0 : i32
    %c0_i32_1 = arith.constant 0 : i32
    return %c0_i32, %c0_i32_0 : i32, i32
  }
  func.func @transform_13(%arg0: i32) -> (i32, i32) {
    %c0_i32 = arith.constant 0 : i32
    %c0_i32_0 = arith.constant 0 : i32
    %c0_i32_1 = arith.constant 0 : i32
    return %c0_i32, %c0_i32_0 : i32, i32
  }
  func.func @transform_14(%arg0: i32) -> (i32, i32) {
    %c0_i32 = arith.constant 0 : i32
    %c0_i32_0 = arith.constant 0 : i32
    %c0_i32_1 = arith.constant 0 : i32
    return %c0_i32, %c0_i32_0 : i32, i32
  }
  func.func @transform_15(%arg0: i32) -> (i32, i32) {
    %c0_i32 = arith.constant 0 : i32
    %c0_i32_0 = arith.constant 0 : i32
    %c0_i32_1 = arith.constant 0 : i32
    return %c0_i32, %c0_i32_0 : i32, i32
  }
  func.func @transform_16(%arg0: i32) -> (i32, i32) {
    %c0_i32 = arith.constant 0 : i32
    %c0_i32_0 = arith.constant 0 : i32
    %c0_i32_1 = arith.constant 0 : i32
    return %c0_i32, %c0_i32_0 : i32, i32
  }
  func.func @transform_17(%arg0: i32) -> (i32, i32) {
    %c0_i32 = arith.constant 0 : i32
    %c0_i32_0 = arith.constant 0 : i32
    %c0_i32_1 = arith.constant 0 : i32
    return %c0_i32, %c0_i32_0 : i32, i32
  }
  func.func @transform_18(%arg0: i32) -> (i32, i32) {
    %c0_i32 = arith.constant 0 : i32
    %c0_i32_0 = arith.constant 0 : i32
    %c0_i32_1 = arith.constant 0 : i32
    return %c0_i32, %c0_i32_0 : i32, i32
  }
  func.func @transform_19(%arg0: i32) -> (i32, i32, i32) {
    %c0_i32 = arith.constant 0 : i32
    %c0_i32_0 = arith.constant 0 : i32
    %c0_i32_1 = arith.constant 0 : i32
    return %arg0, %c0_i32, %c0_i32_0 : i32, i32, i32
  }
  func.func @transform_20(%arg0: i32) -> (i32, i32, i32) {
    %c0_i32 = arith.constant 0 : i32
    %c0_i32_0 = arith.constant 0 : i32
    %c0_i32_1 = arith.constant 0 : i32
    return %arg0, %c0_i32, %c0_i32_0 : i32, i32, i32
  }
  func.func @transform_21(%arg0: i32) -> (i32, i32, i32) {
    %c0_i32 = arith.constant 0 : i32
    %c0_i32_0 = arith.constant 0 : i32
    %c0_i32_1 = arith.constant 0 : i32
    return %arg0, %c0_i32, %c0_i32_0 : i32, i32, i32
  }
}

</mosaic_0001>

<llo_original>
// kernel: tpu_custom_call.1
$region0: #{tpu_custom_call.1}
  #allocation0 [shape = 'u32[]', space=smem, size = 0x4, offset = 0x4, fixed_abs, tag = 'smem constant byte address 0x4 - core index']
  #allocation1 [shape = 'u32[144,128]{1,0:T(1,128)}', space=vmem, size = 0x12000, scoped, tag = 'internal scratch']
  %s0 = inlined_call_operand.vmem [shape: f32[2,8,300], index: 0, kind: input, shape index: {}]
  %s1 = inlined_call_operand.vmem [shape: f32[2,8,300], index: 1, kind: input, shape index: {}]
  %s2 = inlined_call_operand.vmem [shape: f32[2,8,8], index: 2, kind: input, shape index: {}]
  %s3 = inlined_call_operand.vmem [shape: f32[2,8,8], index: 3, kind: input, shape index: {}]
  %s4 = inlined_call_operand.vmem [shape: f32[300,192], index: 4, kind: input, shape index: {}]
  %s5 = inlined_call_operand.vmem [shape: f32[64,300], index: 5, kind: input, shape index: {}]
  %s6 = inlined_call_operand.vmem [shape: f32[1,300], index: 6, kind: input, shape index: {}]
  %s7 = inlined_call_operand.vmem [shape: f32[1,300], index: 7, kind: input, shape index: {}]
  %s8 = inlined_call_operand.vmem [shape: f32[300,64], index: 8, kind: input, shape index: {}]
  %s9 = inlined_call_operand.vmem [shape: f32[300,128], index: 9, kind: input, shape index: {}]
  %s10 = inlined_call_operand.vmem [shape: f32[64,300], index: 10, kind: input, shape index: {}]
  %s11 = inlined_call_operand.vmem [shape: f32[1,300], index: 11, kind: input, shape index: {}]
  %s12 = inlined_call_operand.vmem [shape: f32[1,300], index: 12, kind: input, shape index: {}]
  %s13 = inlined_call_operand.vmem [shape: f32[300,64], index: 13, kind: input, shape index: {}]
  %s14 = inlined_call_operand.vmem [shape: f32[1,64], index: 14, kind: input, shape index: {}]
  %s15 = inlined_call_operand.vmem [shape: f32[64,300], index: 15, kind: input, shape index: {}]
  %s16 = inlined_call_operand.vmem [shape: f32[1,300], index: 16, kind: input, shape index: {}]
  %s17 = inlined_call_operand.vmem [shape: f32[1,300], index: 17, kind: input, shape index: {}]
  %s18 = inlined_call_operand.vmem [shape: f32[1,300], index: 18, kind: input, shape index: {}]
  %s19 = inlined_call_operand.hbm [shape: f32[2,8,300], index: 19, kind: output, shape index: {0}]
  %s20 = inlined_call_operand.hbm [shape: f32[2,8,32], index: 20, kind: output, shape index: {1}]
  %s21 = inlined_call_operand.hbm [shape: f32[2,8,32], index: 21, kind: output, shape index: {2}]
  %22 = xla_tuple %s19, %s20, %s21
  %s23 = sld [smem:[#allocation0]]
  $region125: #{tpu_custom_call.1} parent=0
    _
  %s25 = ssub.s32 1, %s23
  %s26 = scalar_select 0, %s25, %s23
  $region1: #{tpu_custom_call.1} parent=0
    #allocation2 [shape = 'u8[24576]{0}', space=vmem, size = 0x6000, scoped, tag = 'output window, operand 0']
    #allocation3 [shape = 's32[2]{0}', space=sflag, size = 0x8, scoped, tag = 'scoped memory for tpu_custom_call.1']
    #allocation4 [shape = 'u8[8192]{0}', space=vmem, size = 0x2000, scoped, tag = 'output window, operand 1']
    #allocation5 [shape = 's32[2]{0}', space=sflag, size = 0x8, scoped, tag = 'scoped memory for tpu_custom_call.1']
    #allocation6 [shape = 'u8[8192]{0}', space=vmem, size = 0x2000, scoped, tag = 'output window, operand 2']
    %27 = vsyncpa [#allocation3], 0
    %s28 = scalar_lea.sflag [#allocation3], 1
    %29 = vsyncpa %s28, 0
    %30 = vsyncpa [#allocation5], 0
    %s31 = scalar_lea.sflag [#allocation5], 1
    %32 = vsyncpa %s31, 0
    loop: start=0, step=1, limit=4
    $region2: #{tpu_custom_call.1} parent=1 // loop_pre_header
      _
    $region3: #{tpu_custom_call.1} parent=1 // loop_header
      %s34 = sphi 0, %s38
      %p35 = scmp.ge.s32.totalorder %s34, 4
      %s44 = sphi 0, %s46
      %s47 = sphi 0, %s44
      %s48 = sphi 0, %s47
      %s64 = sphi 0, %s48
      %s70 = sphi 0, %s72
      %s73 = sphi 0, %s70
      %s74 = sphi 0, %s73
      %s90 = sphi 0, %s74
      %s96 = sphi 0, %s98
      %s99 = sphi 0, %s96
      %s100 = sphi 0, %s99
      %s116 = sphi 0, %s100
      %s122 = sphi 0, %s124
      %s125 = sphi 0, %s122
      %s126 = sphi 0, %s125
      %s142 = sphi 0, %s126
      %s146 = sphi 0, %s146
      %s148 = sphi 0, %s146
      %s149 = sphi 0, %s148
      %s163 = sphi 0, %s149
      %s167 = sphi 0, %s167
      %s169 = sphi 0, %s167
      %s170 = sphi 0, %s169
      %s184 = sphi 0, %s170
      %s188 = sphi 0, %s188
      %s190 = sphi 0, %s188
      %s191 = sphi 0, %s190
      %s205 = sphi 0, %s191
      %s209 = sphi 0, %s209
      %s211 = sphi 0, %s209
      %s212 = sphi 0, %s211
      %s226 = sphi 0, %s212
      %s230 = sphi 0, %s230
      %s232 = sphi 0, %s230
      %s233 = sphi 0, %s232
      %s247 = sphi 0, %s233
      %s251 = sphi 0, %s251
      %s253 = sphi 0, %s251
      %s254 = sphi 0, %s253
      %s268 = sphi 0, %s254
      %s272 = sphi 0, %s272
      %s274 = sphi 0, %s272
      %s275 = sphi 0, %s274
      %s289 = sphi 0, %s275
      %s293 = sphi 0, %s293
      %s295 = sphi 0, %s293
      %s296 = sphi 0, %s295
      %s310 = sphi 0, %s296
      %s314 = sphi 0, %s314
      %s316 = sphi 0, %s314
      %s317 = sphi 0, %s316
      %s331 = sphi 0, %s317
      %s335 = sphi 0, %s335
      %s337 = sphi 0, %s335
      %s338 = sphi 0, %s337
      %s352 = sphi 0, %s338
      %s356 = sphi 0, %s356
      %s358 = sphi 0, %s356
      %s359 = sphi 0, %s358
      %s373 = sphi 0, %s359
      %s377 = sphi 0, %s377
      %s379 = sphi 0, %s377
      %s380 = sphi 0, %s379
      %s394 = sphi 0, %s380
      %s398 = sphi 0, %s398
      %s400 = sphi 0, %s398
      %s401 = sphi 0, %s400
      %s415 = sphi 0, %s401
      %s419 = sphi 0, %s419
      %s421 = sphi 0, %s419
      %s422 = sphi 0, %s421
      %s436 = sphi 0, %s422
      %s440 = sphi 0, %s440
      %s442 = sphi 0, %s440
      %s443 = sphi 0, %s442
      %s457 = sphi 0, %s443
      %s463 = sphi 0, %s465
      %s466 = sphi 0, %s463
      %s467 = sphi 0, %s466
      %s483 = sphi 0, %s467
      %s489 = sphi 0, %s491
      %s492 = sphi 0, %s489
      %s493 = sphi 0, %s492
      %s509 = sphi 0, %s493
      %s515 = sphi 0, %s517
      %s518 = sphi 0, %s515
      %s519 = sphi 0, %s518
      %s535 = sphi 0, %s519
    $region4: #{tpu_custom_call.1} parent=1 // loop_header_branch
      %37 = sbr.rel (%p35) target = $region8
    $region5: #{tpu_custom_call.1} parent=1 // loop_body
      %s39 = ssub.s32 %s34, 1
      %s40 = ssub.s32 %s34, 2
      %s41 = sadd.s32 %s34, 1
      %s42 = ssub.s32 %s34, %s41
      %p43 = scmp.eq.s32.totalorder %s42, 0
      %s45 = sadd.s32 %s44, 1
      %s46 = scalar_select %p43, %s44, %s45
      %p49 = pneg %p43
      %p50 = scmp.eq.s32.totalorder %s34, 1
      %p51 = por %p49, %p50
      %p52 = scmp.ne.s32.totalorder %s44, %s47
      %p53 = scmp.eq.s32.totalorder %s34, 0
      %p54 = por %p52, %p53
      %p55 = scmp.ne.s32.totalorder %s44, %s47
      %p56 = scmp.eq.s32.totalorder %s39, 1
      %p57 = por %p55, %p56
      %p58 = scmp.ne.s32.totalorder %s47, %s48
      %p59 = scmp.eq.s32.totalorder %s39, 0
      %p60 = por %p58, %p59
      %p61 = scmp.ne.s32.totalorder %s47, %s48
      %p62 = scmp.eq.s32.totalorder %s40, 1
      %p63 = por %p61, %p62
      %p65 = scmp.ne.s32.totalorder %s48, %s64
      %p66 = scmp.eq.s32.totalorder %s40, 0
      %p67 = por %p65, %p66
      %s68 = ssub.s32 %s34, %s41
      %p69 = scmp.eq.s32.totalorder %s68, 0
      %s71 = sadd.s32 %s70, 1
      %s72 = scalar_select %p69, %s70, %s71
      %p75 = pneg %p69
      %p76 = scmp.eq.s32.totalorder %s34, 1
      %p77 = por %p75, %p76
      %p78 = scmp.ne.s32.totalorder %s70, %s73
      %p79 = scmp.eq.s32.totalorder %s34, 0
      %p80 = por %p78, %p79
      %p81 = scmp.ne.s32.totalorder %s70, %s73
      %p82 = scmp.eq.s32.totalorder %s39, 1
      %p83 = por %p81, %p82
      %p84 = scmp.ne.s32.totalorder %s73, %s74
      %p85 = scmp.eq.s32.totalorder %s39, 0
      %p86 = por %p84, %p85
      %p87 = scmp.ne.s32.totalorder %s73, %s74
      %p88 = scmp.eq.s32.totalorder %s40, 1
      %p89 = por %p87, %p88
      %p91 = scmp.ne.s32.totalorder %s74, %s90
      %p92 = scmp.eq.s32.totalorder %s40, 0
      %p93 = por %p91, %p92
      %s94 = ssub.s32 %s34, %s41
      %p95 = scmp.eq.s32.totalorder %s94, 0
      %s97 = sadd.s32 %s96, 1
      %s98 = scalar_select %p95, %s96, %s97
      %p101 = pneg %p95
      %p102 = scmp.eq.s32.totalorder %s34, 1
      %p103 = por %p101, %p102
      %p104 = scmp.ne.s32.totalorder %s96, %s99
      %p105 = scmp.eq.s32.totalorder %s34, 0
      %p106 = por %p104, %p105
      %p107 = scmp.ne.s32.totalorder %s96, %s99
      %p108 = scmp.eq.s32.totalorder %s39, 1
      %p109 = por %p107, %p108
      %p110 = scmp.ne.s32.totalorder %s99, %s100
      %p111 = scmp.eq.s32.totalorder %s39, 0
      %p112 = por %p110, %p111
      %p113 = scmp.ne.s32.totalorder %s99, %s100
      %p114 = scmp.eq.s32.totalorder %s40, 1
      %p115 = por %p113, %p114
      %p117 = scmp.ne.s32.totalorder %s100, %s116
      %p118 = scmp.eq.s32.totalorder %s40, 0
      %p119 = por %p117, %p118
      %s120 = ssub.s32 %s34, %s41
      %p121 = scmp.eq.s32.totalorder %s120, 0
      %s123 = sadd.s32 %s122, 1
      %s124 = scalar_select %p121, %s122, %s123
      %p127 = pneg %p121
      %p128 = scmp.eq.s32.totalorder %s34, 1
      %p129 = por %p127, %p128
      %p130 = scmp.ne.s32.totalorder %s122, %s125
      %p131 = scmp.eq.s32.totalorder %s34, 0
      %p132 = por %p130, %p131
      %p133 = scmp.ne.s32.totalorder %s122, %s125
      %p134 = scmp.eq.s32.totalorder %s39, 1
      %p135 = por %p133, %p134
      %p136 = scmp.ne.s32.totalorder %s125, %s126
      %p137 = scmp.eq.s32.totalorder %s39, 0
      %p138 = por %p136, %p137
      %p139 = scmp.ne.s32.totalorder %s125, %s126
      %p140 = scmp.eq.s32.totalorder %s40, 1
      %p141 = por %p139, %p140
      %p143 = scmp.ne.s32.totalorder %s126, %s142
      %p144 = scmp.eq.s32.totalorder %s40, 0
      %p145 = por %p143, %p144
      %s147 = sadd.s32 %s146, 1
      %p150 = scmp.eq.s32.totalorder %s34, 1
      %p151 = scmp.ne.s32.totalorder %s146, %s148
      %p152 = scmp.eq.s32.totalorder %s34, 0
      %p153 = por %p151, %p152
      %p154 = scmp.ne.s32.totalorder %s146, %s148
      %p155 = scmp.eq.s32.totalorder %s39, 1
      %p156 = por %p154, %p155
      %p157 = scmp.ne.s32.totalorder %s148, %s149
      %p158 = scmp.eq.s32.totalorder %s39, 0
      %p159 = por %p157, %p158
      %p160 = scmp.ne.s32.totalorder %s148, %s149
      %p161 = scmp.eq.s32.totalorder %s40, 1
      %p162 = por %p160, %p161
      %p164 = scmp.ne.s32.totalorder %s149, %s163
      %p165 = scmp.eq.s32.totalorder %s40, 0
      %p166 = por %p164, %p165
      %s168 = sadd.s32 %s167, 1
      %p171 = scmp.eq.s32.totalorder %s34, 1
      %p172 = scmp.ne.s32.totalorder %s167, %s169
      %p173 = scmp.eq.s32.totalorder %s34, 0
      %p174 = por %p172, %p173
      %p175 = scmp.ne.s32.totalorder %s167, %s169
      %p176 = scmp.eq.s32.totalorder %s39, 1
      %p177 = por %p175, %p176
      %p178 = scmp.ne.s32.totalorder %s169, %s170
      %p179 = scmp.eq.s32.totalorder %s39, 0
      %p180 = por %p178, %p179
      %p181 = scmp.ne.s32.totalorder %s169, %s170
      %p182 = scmp.eq.s32.totalorder %s40, 1
      %p183 = por %p181, %p182
      %p185 = scmp.ne.s32.totalorder %s170, %s184
      %p186 = scmp.eq.s32.totalorder %s40, 0
      %p187 = por %p185, %p186
      %s189 = sadd.s32 %s188, 1
      %p192 = scmp.eq.s32.totalorder %s34, 1
      %p193 = scmp.ne.s32.totalorder %s188, %s190
      %p194 = scmp.eq.s32.totalorder %s34, 0
      %p195 = por %p193, %p194
      %p196 = scmp.ne.s32.totalorder %s188, %s190
      %p197 = scmp.eq.s32.totalorder %s39, 1
      %p198 = por %p196, %p197
      %p199 = scmp.ne.s32.totalorder %s190, %s191
      %p200 = scmp.eq.s32.totalorder %s39, 0
      %p201 = por %p199, %p200
      %p202 = scmp.ne.s32.totalorder %s190, %s191
      %p203 = scmp.eq.s32.totalorder %s40, 1
      %p204 = por %p202, %p203
      %p206 = scmp.ne.s32.totalorder %s191, %s205
      %p207 = scmp.eq.s32.totalorder %s40, 0
      %p208 = por %p206, %p207
      %s210 = sadd.s32 %s209, 1
      %p213 = scmp.eq.s32.totalorder %s34, 1
      %p214 = scmp.ne.s32.totalorder %s209, %s211
      %p215 = scmp.eq.s32.totalorder %s34, 0
      %p216 = por %p214, %p215
      %p217 = scmp.ne.s32.totalorder %s209, %s211
      %p218 = scmp.eq.s32.totalorder %s39, 1
      %p219 = por %p217, %p218
      %p220 = scmp.ne.s32.totalorder %s211, %s212
      %p221 = scmp.eq.s32.totalorder %s39, 0
      %p222 = por %p220, %p221
      %p223 = scmp.ne.s32.totalorder %s211, %s212
      %p224 = scmp.eq.s32.totalorder %s40, 1
      %p225 = por %p223, %p224
      %p227 = scmp.ne.s32.totalorder %s212, %s226
      %p228 = scmp.eq.s32.totalorder %s40, 0
      %p229 = por %p227, %p228
      %s231 = sadd.s32 %s230, 1
      %p234 = scmp.eq.s32.totalorder %s34, 1
      %p235 = scmp.ne.s32.totalorder %s230, %s232
      %p236 = scmp.eq.s32.totalorder %s34, 0
      %p237 = por %p235, %p236
      %p238 = scmp.ne.s32.totalorder %s230, %s232
      %p239 = scmp.eq.s32.totalorder %s39, 1
      %p240 = por %p238, %p239
      %p241 = scmp.ne.s32.totalorder %s232, %s233
      %p242 = scmp.eq.s32.totalorder %s39, 0
      %p243 = por %p241, %p242
      %p244 = scmp.ne.s32.totalorder %s232, %s233
      %p245 = scmp.eq.s32.totalorder %s40, 1
      %p246 = por %p244, %p245
      %p248 = scmp.ne.s32.totalorder %s233, %s247
      %p249 = scmp.eq.s32.totalorder %s40, 0
      %p250 = por %p248, %p249
      %s252 = sadd.s32 %s251, 1
      %p255 = scmp.eq.s32.totalorder %s34, 1
      %p256 = scmp.ne.s32.totalorder %s251, %s253
      %p257 = scmp.eq.s32.totalorder %s34, 0
      %p258 = por %p256, %p257
      %p259 = scmp.ne.s32.totalorder %s251, %s253
      %p260 = scmp.eq.s32.totalorder %s39, 1
      %p261 = por %p259, %p260
      %p262 = scmp.ne.s32.totalorder %s253, %s254
      %p263 = scmp.eq.s32.totalorder %s39, 0
      %p264 = por %p262, %p263
      %p265 = scmp.ne.s32.totalorder %s253, %s254
      %p266 = scmp.eq.s32.totalorder %s40, 1
      %p267 = por %p265, %p266
      %p269 = scmp.ne.s32.totalorder %s254, %s268
      %p270 = scmp.eq.s32.totalorder %s40, 0
      %p271 = por %p269, %p270
      %s273 = sadd.s32 %s272, 1
      %p276 = scmp.eq.s32.totalorder %s34, 1
      %p277 = scmp.ne.s32.totalorder %s272, %s274
      %p278 = scmp.eq.s32.totalorder %s34, 0
      %p279 = por %p277, %p278
      %p280 = scmp.ne.s32.totalorder %s272, %s274
      %p281 = scmp.eq.s32.totalorder %s39, 1
      %p282 = por %p280, %p281
      %p283 = scmp.ne.s32.totalorder %s274, %s275
      %p284 = scmp.eq.s32.totalorder %s39, 0
      %p285 = por %p283, %p284
      %p286 = scmp.ne.s32.totalorder %s274, %s275
      %p287 = scmp.eq.s32.totalorder %s40, 1
      %p288 = por %p286, %p287
      %p290 = scmp.ne.s32.totalorder %s275, %s289
      %p291 = scmp.eq.s32.totalorder %s40, 0
      %p292 = por %p290, %p291
      %s294 = sadd.s32 %s293, 1
      %p297 = scmp.eq.s32.totalorder %s34, 1
      %p298 = scmp.ne.s32.totalorder %s293, %s295
      %p299 = scmp.eq.s32.totalorder %s34, 0
      %p300 = por %p298, %p299
      %p301 = scmp.ne.s32.totalorder %s293, %s295
      %p302 = scmp.eq.s32.totalorder %s39, 1
      %p303 = por %p301, %p302
      %p304 = scmp.ne.s32.totalorder %s295, %s296
      %p305 = scmp.eq.s32.totalorder %s39, 0
      %p306 = por %p304, %p305
      %p307 = scmp.ne.s32.totalorder %s295, %s296
      %p308 = scmp.eq.s32.totalorder %s40, 1
      %p309 = por %p307, %p308
      %p311 = scmp.ne.s32.totalorder %s296, %s310
      %p312 = scmp.eq.s32.totalorder %s40, 0
      %p313 = por %p311, %p312
      %s315 = sadd.s32 %s314, 1
      %p318 = scmp.eq.s32.totalorder %s34, 1
      %p319 = scmp.ne.s32.totalorder %s314, %s316
      %p320 = scmp.eq.s32.totalorder %s34, 0
      %p321 = por %p319, %p320
      %p322 = scmp.ne.s32.totalorder %s314, %s316
      %p323 = scmp.eq.s32.totalorder %s39, 1
      %p324 = por %p322, %p323
      %p325 = scmp.ne.s32.totalorder %s316, %s317
      %p326 = scmp.eq.s32.totalorder %s39, 0
      %p327 = por %p325, %p326
      %p328 = scmp.ne.s32.totalorder %s316, %s317
      %p329 = scmp.eq.s32.totalorder %s40, 1
      %p330 = por %p328, %p329
      %p332 = scmp.ne.s32.totalorder %s317, %s331
      %p333 = scmp.eq.s32.totalorder %s40, 0
      %p334 = por %p332, %p333
      %s336 = sadd.s32 %s335, 1
      %p339 = scmp.eq.s32.totalorder %s34, 1
      %p340 = scmp.ne.s32.totalorder %s335, %s337
      %p341 = scmp.eq.s32.totalorder %s34, 0
      %p342 = por %p340, %p341
      %p343 = scmp.ne.s32.totalorder %s335, %s337
      %p344 = scmp.eq.s32.totalorder %s39, 1
      %p345 = por %p343, %p344
      %p346 = scmp.ne.s32.totalorder %s337, %s338
      %p347 = scmp.eq.s32.totalorder %s39, 0
      %p348 = por %p346, %p347
      %p349 = scmp.ne.s32.totalorder %s337, %s338
      %p350 = scmp.eq.s32.totalorder %s40, 1
      %p351 = por %p349, %p350
      %p353 = scmp.ne.s32.totalorder %s338, %s352
      %p354 = scmp.eq.s32.totalorder %s40, 0
      %p355 = por %p353, %p354
      %s357 = sadd.s32 %s356, 1
      %p360 = scmp.eq.s32.totalorder %s34, 1
      %p361 = scmp.ne.s32.totalorder %s356, %s358
      %p362 = scmp.eq.s32.totalorder %s34, 0
      %p363 = por %p361, %p362
      %p364 = scmp.ne.s32.totalorder %s356, %s358
      %p365 = scmp.eq.s32.totalorder %s39, 1
      %p366 = por %p364, %p365
      %p367 = scmp.ne.s32.totalorder %s358, %s359
      %p368 = scmp.eq.s32.totalorder %s39, 0
      %p369 = por %p367, %p368
      %p370 = scmp.ne.s32.totalorder %s358, %s359
      %p371 = scmp.eq.s32.totalorder %s40, 1
      %p372 = por %p370, %p371
      %p374 = scmp.ne.s32.totalorder %s359, %s373
      %p375 = scmp.eq.s32.totalorder %s40, 0
      %p376 = por %p374, %p375
      %s378 = sadd.s32 %s377, 1
      %p381 = scmp.eq.s32.totalorder %s34, 1
      %p382 = scmp.ne.s32.totalorder %s377, %s379
      %p383 = scmp.eq.s32.totalorder %s34, 0
      %p384 = por %p382, %p383
      %p385 = scmp.ne.s32.totalorder %s377, %s379
      %p386 = scmp.eq.s32.totalorder %s39, 1
      %p387 = por %p385, %p386
      %p388 = scmp.ne.s32.totalorder %s379, %s380
      %p389 = scmp.eq.s32.totalorder %s39, 0
      %p390 = por %p388, %p389
      %p391 = scmp.ne.s32.totalorder %s379, %s380
      %p392 = scmp.eq.s32.totalorder %s40, 1
      %p393 = por %p391, %p392
      %p395 = scmp.ne.s32.totalorder %s380, %s394
      %p396 = scmp.eq.s32.totalorder %s40, 0
      %p397 = por %p395, %p396
      %s399 = sadd.s32 %s398, 1
      %p402 = scmp.eq.s32.totalorder %s34, 1
      %p403 = scmp.ne.s32.totalorder %s398, %s400
      %p404 = scmp.eq.s32.totalorder %s34, 0
      %p405 = por %p403, %p404
      %p406 = scmp.ne.s32.totalorder %s398, %s400
      %p407 = scmp.eq.s32.totalorder %s39, 1
      %p408 = por %p406, %p407
      %p409 = scmp.ne.s32.totalorder %s400, %s401
      %p410 = scmp.eq.s32.totalorder %s39, 0
      %p411 = por %p409, %p410
      %p412 = scmp.ne.s32.totalorder %s400, %s401
      %p413 = scmp.eq.s32.totalorder %s40, 1
      %p414 = por %p412, %p413
      %p416 = scmp.ne.s32.totalorder %s401, %s415
      %p417 = scmp.eq.s32.totalorder %s40, 0
      %p418 = por %p416, %p417
      %s420 = sadd.s32 %s419, 1
      %p423 = scmp.eq.s32.totalorder %s34, 1
      %p424 = scmp.ne.s32.totalorder %s419, %s421
      %p425 = scmp.eq.s32.totalorder %s34, 0
      %p426 = por %p424, %p425
      %p427 = scmp.ne.s32.totalorder %s419, %s421
      %p428 = scmp.eq.s32.totalorder %s39, 1
      %p429 = por %p427, %p428
      %p430 = scmp.ne.s32.totalorder %s421, %s422
      %p431 = scmp.eq.s32.totalorder %s39, 0
      %p432 = por %p430, %p431
      %p433 = scmp.ne.s32.totalorder %s421, %s422
      %p434 = scmp.eq.s32.totalorder %s40, 1
      %p435 = por %p433, %p434
      %p437 = scmp.ne.s32.totalorder %s422, %s436
      %p438 = scmp.eq.s32.totalorder %s40, 0
      %p439 = por %p437, %p438
      %s441 = sadd.s32 %s440, 1
      %p444 = scmp.eq.s32.totalorder %s34, 1
      %p445 = scmp.ne.s32.totalorder %s440, %s442
      %p446 = scmp.eq.s32.totalorder %s34, 0
      %p447 = por %p445, %p446
      %p448 = scmp.ne.s32.totalorder %s440, %s442
      %p449 = scmp.eq.s32.totalorder %s39, 1
      %p450 = por %p448, %p449
      %p451 = scmp.ne.s32.totalorder %s442, %s443
      %p452 = scmp.eq.s32.totalorder %s39, 0
      %p453 = por %p451, %p452
      %p454 = scmp.ne.s32.totalorder %s442, %s443
      %p455 = scmp.eq.s32.totalorder %s40, 1
      %p456 = por %p454, %p455
      %p458 = scmp.ne.s32.totalorder %s443, %s457
      %p459 = scmp.eq.s32.totalorder %s40, 0
      %p460 = por %p458, %p459
      %s461 = ssub.s32 %s34, %s41
      %p462 = scmp.eq.s32.totalorder %s461, 0
      %s464 = sadd.s32 %s463, 1
      %s465 = scalar_select %p462, %s463, %s464
      %p468 = pneg %p462
      %p469 = scmp.eq.s32.totalorder %s34, 1
      %p470 = por %p468, %p469
      %p471 = scmp.ne.s32.totalorder %s463, %s466
      %p472 = scmp.eq.s32.totalorder %s34, 0
      %p473 = por %p471, %p472
      %p474 = scmp.ne.s32.totalorder %s463, %s466
      %p475 = scmp.eq.s32.totalorder %s39, 1
      %p476 = por %p474, %p475
      %p477 = scmp.ne.s32.totalorder %s466, %s467
      %p478 = scmp.eq.s32.totalorder %s39, 0
      %p479 = por %p477, %p478
      %p480 = scmp.ne.s32.totalorder %s466, %s467
      %p481 = scmp.eq.s32.totalorder %s40, 1
      %p482 = por %p480, %p481
      %p484 = scmp.ne.s32.totalorder %s467, %s483
      %p485 = scmp.eq.s32.totalorder %s40, 0
      %p486 = por %p484, %p485
      %s487 = ssub.s32 %s34, %s41
      %p488 = scmp.eq.s32.totalorder %s487, 0
      %s490 = sadd.s32 %s489, 1
      %s491 = scalar_select %p488, %s489, %s490
      %p494 = pneg %p488
      %p495 = scmp.eq.s32.totalorder %s34, 1
      %p496 = por %p494, %p495
      %p497 = scmp.ne.s32.totalorder %s489, %s492
      %p498 = scmp.eq.s32.totalorder %s34, 0
      %p499 = por %p497, %p498
      %p500 = scmp.ne.s32.totalorder %s489, %s492
      %p501 = scmp.eq.s32.totalorder %s39, 1
      %p502 = por %p500, %p501
      %p503 = scmp.ne.s32.totalorder %s492, %s493
      %p504 = scmp.eq.s32.totalorder %s39, 0
      %p505 = por %p503, %p504
      %p506 = scmp.ne.s32.totalorder %s492, %s493
      %p507 = scmp.eq.s32.totalorder %s40, 1
      %p508 = por %p506, %p507
      %p510 = scmp.ne.s32.totalorder %s493, %s509
      %p511 = scmp.eq.s32.totalorder %s40, 0
      %p512 = por %p510, %p511
      %s513 = ssub.s32 %s34, %s41
      %p514 = scmp.eq.s32.totalorder %s513, 0
      %s516 = sadd.s32 %s515, 1
      %s517 = scalar_select %p514, %s515, %s516
      %p520 = pneg %p514
      %p521 = scmp.eq.s32.totalorder %s34, 1
      %p522 = por %p520, %p521
      %p523 = scmp.ne.s32.totalorder %s515, %s518
      %p524 = scmp.eq.s32.totalorder %s34, 0
      %p525 = por %p523, %p524
      %p526 = scmp.ne.s32.totalorder %s515, %s518
      %p527 = scmp.eq.s32.totalorder %s39, 1
      %p528 = por %p526, %p527
      %p529 = scmp.ne.s32.totalorder %s518, %s519
      %p530 = scmp.eq.s32.totalorder %s39, 0
      %p531 = por %p529, %p530
      %p532 = scmp.ne.s32.totalorder %s518, %s519
      %p533 = scmp.eq.s32.totalorder %s40, 1
      %p534 = por %p532, %p533
      %p536 = scmp.ne.s32.totalorder %s519, %s535
      %p537 = scmp.eq.s32.totalorder %s40, 0
      %p538 = por %p536, %p537
      %p539 = scmp.le.s32.totalorder 1, %s34
      %p540 = scmp.lt.s32.totalorder %s34, 3
      %p541 = pnand %p539, %p540
      %p542 = pneg %p541
      // Predicated region
      $region9: #{tpu_custom_call.1} parent=5 // pred_check
        _
      $region10: #{tpu_custom_call.1} parent=5 // pred_check_branch
        %544 = sbr.rel (%p541) target = $region12
      $region11: #{tpu_custom_call.1} parent=5 // pred_region
        %s545 = ssub.s32 %s34, 1
        // Predicated region
        $region13: #{tpu_custom_call.1} parent=11 // pred_check
          %p546 = pneg %p159
        $region14: #{tpu_custom_call.1} parent=11 // pred_check_branch
          %548 = sbr.rel (%p546) target = $region16
        $region15: #{tpu_custom_call.1} parent=11 // pred_region
          _
        $region16: #{tpu_custom_call.1} parent=11 // pred_fallthru
          _
        // Predicated region
        $region17: #{tpu_custom_call.1} parent=11 // pred_check
          %p549 = pneg %p180
        $region18: #{tpu_custom_call.1} parent=11 // pred_check_branch
          %551 = sbr.rel (%p549) target = $region20
        $region19: #{tpu_custom_call.1} parent=11 // pred_region
          _
        $region20: #{tpu_custom_call.1} parent=11 // pred_fallthru
          _
        // Predicated region
        $region21: #{tpu_custom_call.1} parent=11 // pred_check
          %p552 = pneg %p201
        $region22: #{tpu_custom_call.1} parent=11 // pred_check_branch
          %554 = sbr.rel (%p552) target = $region24
        $region23: #{tpu_custom_call.1} parent=11 // pred_region
          _
        $region24: #{tpu_custom_call.1} parent=11 // pred_fallthru
          _
        // Predicated region
        $region25: #{tpu_custom_call.1} parent=11 // pred_check
          %p555 = pneg %p222
        $region26: #{tpu_custom_call.1} parent=11 // pred_check_branch
          %557 = sbr.rel (%p555) target = $region28
        $region27: #{tpu_custom_call.1} parent=11 // pred_region
          _
        $region28: #{tpu_custom_call.1} parent=11 // pred_fallthru
          _
        // Predicated region
        $region29: #{tpu_custom_call.1} parent=11 // pred_check
          %p558 = pneg %p243
        $region30: #{tpu_custom_call.1} parent=11 // pred_check_branch
          %560 = sbr.rel (%p558) target = $region32
        $region31: #{tpu_custom_call.1} parent=11 // pred_region
          _
        $region32: #{tpu_custom_call.1} parent=11 // pred_fallthru
          _
        // Predicated region
        $region33: #{tpu_custom_call.1} parent=11 // pred_check
          %p561 = pneg %p264
        $region34: #{tpu_custom_call.1} parent=11 // pred_check_branch
          %563 = sbr.rel (%p561) target = $region36
        $region35: #{tpu_custom_call.1} parent=11 // pred_region
          _
        $region36: #{tpu_custom_call.1} parent=11 // pred_fallthru
          _
        // Predicated region
        $region37: #{tpu_custom_call.1} parent=11 // pred_check
          %p564 = pneg %p285
        $region38: #{tpu_custom_call.1} parent=11 // pred_check_branch
          %566 = sbr.rel (%p564) target = $region40
        $region39: #{tpu_custom_call.1} parent=11 // pred_region
          _
        $region40: #{tpu_custom_call.1} parent=11 // pred_fallthru
          _
        // Predicated region
        $region41: #{tpu_custom_call.1} parent=11 // pred_check
          %p567 = pneg %p306
        $region42: #{tpu_custom_call.1} parent=11 // pred_check_branch
          %569 = sbr.rel (%p567) target = $region44
        $region43: #{tpu_custom_call.1} parent=11 // pred_region
          _
        $region44: #{tpu_custom_call.1} parent=11 // pred_fallthru
          _
        // Predicated region
        $region45: #{tpu_custom_call.1} parent=11 // pred_check
          %p570 = pneg %p327
        $region46: #{tpu_custom_call.1} parent=11 // pred_check_branch
          %572 = sbr.rel (%p570) target = $region48
        $region47: #{tpu_custom_call.1} parent=11 // pred_region
          _
        $region48: #{tpu_custom_call.1} parent=11 // pred_fallthru
          _
        // Predicated region
        $region49: #{tpu_custom_call.1} parent=11 // pred_check
          %p573 = pneg %p348
        $region50: #{tpu_custom_call.1} parent=11 // pred_check_branch
          %575 = sbr.rel (%p573) target = $region52
        $region51: #{tpu_custom_call.1} parent=11 // pred_region
          _
        $region52: #{tpu_custom_call.1} parent=11 // pred_fallthru
          _
        // Predicated region
        $region53: #{tpu_custom_call.1} parent=11 // pred_check
          %p576 = pneg %p369
        $region54: #{tpu_custom_call.1} parent=11 // pred_check_branch
          %578 = sbr.rel (%p576) target = $region56
        $region55: #{tpu_custom_call.1} parent=11 // pred_region
          _
        $region56: #{tpu_custom_call.1} parent=11 // pred_fallthru
          _
        // Predicated region
        $region57: #{tpu_custom_call.1} parent=11 // pred_check
          %p579 = pneg %p390
        $region58: #{tpu_custom_call.1} parent=11 // pred_check_branch
          %581 = sbr.rel (%p579) target = $region60
        $region59: #{tpu_custom_call.1} parent=11 // pred_region
          _
        $region60: #{tpu_custom_call.1} parent=11 // pred_fallthru
          _
        // Predicated region
        $region61: #{tpu_custom_call.1} parent=11 // pred_check
          %p582 = pneg %p411
        $region62: #{tpu_custom_call.1} parent=11 // pred_check_branch
          %584 = sbr.rel (%p582) target = $region64
        $region63: #{tpu_custom_call.1} parent=11 // pred_region
          _
        $region64: #{tpu_custom_call.1} parent=11 // pred_fallthru
          _
        // Predicated region
        $region65: #{tpu_custom_call.1} parent=11 // pred_check
          %p585 = pneg %p432
        $region66: #{tpu_custom_call.1} parent=11 // pred_check_branch
          %587 = sbr.rel (%p585) target = $region68
        $region67: #{tpu_custom_call.1} parent=11 // pred_region
          _
        $region68: #{tpu_custom_call.1} parent=11 // pred_fallthru
          _
        // Predicated region
        $region69: #{tpu_custom_call.1} parent=11 // pred_check
          %p588 = pneg %p453
        $region70: #{tpu_custom_call.1} parent=11 // pred_check_branch
          %590 = sbr.rel (%p588) target = $region72
        $region71: #{tpu_custom_call.1} parent=11 // pred_region
          _
        $region72: #{tpu_custom_call.1} parent=11 // pred_fallthru
          _
      $region12: #{tpu_custom_call.1} parent=5 // pred_fallthru
        _
      %p591 = scmp.lt.s32.totalorder %s34, 2
      // Predicated region
      $region73: #{tpu_custom_call.1} parent=5 // pred_check
        %p592 = pneg %p591
      $region74: #{tpu_custom_call.1} parent=5 // pred_check_branch
        %594 = sbr.rel (%p592) target = $region76
      $region75: #{tpu_custom_call.1} parent=5 // pred_region
        // Predicated region
        $region77: #{tpu_custom_call.1} parent=75 // pred_check
          %p595 = pneg %p54
        $region78: #{tpu_custom_call.1} parent=75 // pred_check_branch
          %597 = sbr.rel (%p595) target = $region80
        $region79: #{tpu_custom_call.1} parent=75 // pred_region
          %p598 = scmp.lt.s32.totalorder %s34, 1
          %s599 = scalar_select %p598, %s34, 1
          %s600 = smul.addr %s599, 3
          %s601 = smul.addr %s600, 8
          %s602 = scalar_lea.vmem %s0, %s601
        $region80: #{tpu_custom_call.1} parent=75 // pred_fallthru
          _
        // Predicated region
        $region81: #{tpu_custom_call.1} parent=75 // pred_check
          %p603 = pneg %p80
        $region82: #{tpu_custom_call.1} parent=75 // pred_check_branch
          %605 = sbr.rel (%p603) target = $region84
        $region83: #{tpu_custom_call.1} parent=75 // pred_region
          %p606 = scmp.lt.s32.totalorder %s34, 1
          %s607 = scalar_select %p606, %s34, 1
          %s608 = smul.addr %s607, 3
          %s609 = smul.addr %s608, 8
          %s610 = scalar_lea.vmem %s1, %s609
        $region84: #{tpu_custom_call.1} parent=75 // pred_fallthru
          _
        // Predicated region
        $region85: #{tpu_custom_call.1} parent=75 // pred_check
          %p611 = pneg %p106
        $region86: #{tpu_custom_call.1} parent=75 // pred_check_branch
          %613 = sbr.rel (%p611) target = $region88
        $region87: #{tpu_custom_call.1} parent=75 // pred_region
          %p614 = scmp.lt.s32.totalorder %s34, 1
          %s615 = scalar_select %p614, %s34, 1
          %s616 = smul.addr %s615, 8
          %s617 = scalar_lea.vmem %s2, %s616
        $region88: #{tpu_custom_call.1} parent=75 // pred_fallthru
          _
        // Predicated region
        $region89: #{tpu_custom_call.1} parent=75 // pred_check
          %p618 = pneg %p132
        $region90: #{tpu_custom_call.1} parent=75 // pred_check_branch
          %620 = sbr.rel (%p618) target = $region92
        $region91: #{tpu_custom_call.1} parent=75 // pred_region
          %p621 = scmp.lt.s32.totalorder %s34, 1
          %s622 = scalar_select %p621, %s34, 1
          %s623 = smul.addr %s622, 8
          %s624 = scalar_lea.vmem %s3, %s623
        $region92: #{tpu_custom_call.1} parent=75 // pred_fallthru
          _
      $region76: #{tpu_custom_call.1} parent=5 // pred_fallthru
        _
      %p625 = scmp.le.s32.totalorder 1, %s34
      %p626 = scmp.lt.s32.totalorder %s34, 3
      %p627 = pnand %p625, %p626
      %p628 = pneg %p627
      // Predicated region
      $region93: #{tpu_custom_call.1} parent=5 // pred_check
        _
      $region94: #{tpu_custom_call.1} parent=5 // pred_check_branch
        %630 = sbr.rel (%p627) target = $region96
      $region95: #{tpu_custom_call.1} parent=5 // pred_region
        %s631 = ssub.s32 %s34, 1
        %p632 = scmp.lt.s32.totalorder %s39, 1
        %s633 = scalar_select %p632, %s39, 1
        %s634 = smul.addr %s633, 3
        %s635 = smul.addr %s634, 8
        %s636 = scalar_lea.vmem %s0, %s635
        %p637 = pneg %p60
        %p638 = pneg %p57
        %p639 = scmp.lt.s32.totalorder %s39, 1
        %s640 = scalar_select %p639, %s39, 1
        %s641 = smul.addr %s640, 3
        %s642 = smul.addr %s641, 8
        %s643 = scalar_lea.vmem %s1, %s642
        %p644 = pneg %p86
        %p645 = pneg %p83
        %p646 = scmp.lt.s32.totalorder %s39, 1
        %s647 = scalar_select %p646, %s39, 1
        %s648 = smul.addr %s647, 8
        %s649 = scalar_lea.vmem %s2, %s648
        %p650 = pneg %p112
        %p651 = pneg %p109
        %p652 = scmp.lt.s32.totalorder %s39, 1
        %s653 = scalar_select %p652, %s39, 1
        %s654 = smul.addr %s653, 8
        %s655 = scalar_lea.vmem %s3, %s654
        %p656 = pneg %p138
        %p657 = pneg %p135
        %p658 = pneg %p159
        %p659 = pneg %p156
        %p660 = pneg %p180
        %p661 = pneg %p177
        %p662 = pneg %p201
        %p663 = pneg %p198
        %p664 = pneg %p222
        %p665 = pneg %p219
        %p666 = pneg %p243
        %p667 = pneg %p240
        %p668 = pneg %p264
        %p669 = pneg %p261
        %p670 = pneg %p285
        %p671 = pneg %p282
        %p672 = pneg %p306
        %p673 = pneg %p303
        %p674 = pneg %p327
        %p675 = pneg %p324
        %p676 = pneg %p348
        %p677 = pneg %p345
        %p678 = pneg %p369
        %p679 = pneg %p366
        %p680 = pneg %p390
        %p681 = pneg %p387
        %p682 = pneg %p411
        %p683 = pneg %p408
        %p684 = pneg %p432
        %p685 = pneg %p429
        %p686 = pneg %p453
        %p687 = pneg %p450
        %p688 = pneg %p479
        %p689 = pneg %p476
        %s690 = sand.u32 %s466, 1
        %s691 = scalar_lea.sflag [#allocation3], %s690
        %s692 = sand.u32 %s466, 1
        %s693 = smul.addr %s692, 24
        %s694 = scalar_lea.vmem [#allocation2], %s693
        %p695 = pneg %p505
        %p696 = pneg %p502
        %s697 = sand.u32 %s39, 1
        %s698 = scalar_lea.sflag [#allocation5], %s697
        %s699 = sand.u32 %s492, 1
        %s700 = smul.addr %s699, 8
        %s701 = scalar_lea.vmem [#allocation4], %s700
        %p702 = pneg %p531
        %p703 = pneg %p528
        %s704 = sand.u32 %s39, 1
        %s705 = scalar_lea.sflag [#allocation5], %s704
        %s706 = sand.u32 %s518, 1
        %s707 = smul.addr %s706, 8
        %s708 = scalar_lea.vmem [#allocation6], %s707
        %p709 = scmp.lt.s32.totalorder %s39, 1
        %s710 = scalar_select %p709, %s39, 1
        %s711 = smul.addr %s710, 3
        %s712 = smul.addr %s711, 8
        %s713 = scalar_lea.vmem %s0, %s712
        %p714 = scmp.lt.s32.totalorder %s39, 1
        %s715 = scalar_select %p714, %s39, 1
        %s716 = smul.addr %s715, 3
        %s717 = smul.addr %s716, 8
        %s718 = scalar_lea.vmem %s1, %s717
        %p719 = scmp.lt.s32.totalorder %s39, 1
        %s720 = scalar_select %p719, %s39, 1
        %s721 = smul.addr %s720, 8
        %s722 = scalar_lea.vmem %s2, %s721
        %p723 = scmp.lt.s32.totalorder %s39, 1
        %s724 = scalar_select %p723, %s39, 1
        %s725 = smul.addr %s724, 8
        %s726 = scalar_lea.vmem %s3, %s725
        %v727 = vld [vmem:[%s713] sm:$0xff]
        %v728 = vld [vmem:[%s713 + $0x8] sm:$0xff]
        %v729 = vld [vmem:[%s713 + $0x10] sm:$0xff]
        %v730 = vld [vmem:[%s718] sm:$0xff]
        %v731 = vld [vmem:[%s718 + $0x8] sm:$0xff]
        %v732 = vld [vmem:[%s718 + $0x10] sm:$0xff]
        %v733 = vld [vmem:[%s4] sm:$0xff]
        %v734 = vld [vmem:[%s4 + $0x8] sm:$0xff]
        %v735 = vld [vmem:[%s4 + $0x10] sm:$0xff]
        %v736 = vld [vmem:[%s4 + $0x18] sm:$0xff]
        %v737 = vld [vmem:[%s4 + $0x20] sm:$0xff]
        %v738 = vld [vmem:[%s4 + $0x28] sm:$0xff]
        %v739 = vld [vmem:[%s4 + $0x30] sm:$0xff]
        %v740 = vld [vmem:[%s4 + $0x38] sm:$0xff]
        %v741 = vld [vmem:[%s4 + $0x40] sm:$0xff]
        %v742 = vld [vmem:[%s4 + $0x48] sm:$0xff]
        %v743 = vld [vmem:[%s4 + $0x50] sm:$0xff]
        %v744 = vld [vmem:[%s4 + $0x58] sm:$0xff]
        %v745 = vld [vmem:[%s4 + $0x60] sm:$0xff]
        %v746 = vld [vmem:[%s4 + $0x68] sm:$0xff]
        %v747 = vld [vmem:[%s4 + $0x70] sm:$0xff]
        %v748 = vld [vmem:[%s4 + $0x78] sm:$0xff]
        %v749 = vld [vmem:[%s4 + $0x80] sm:$0xff]
        %v750 = vld [vmem:[%s4 + $0x88] sm:$0xff]
        %v751 = vld [vmem:[%s4 + $0x90] sm:$0xff]
        %v752 = vld [vmem:[%s4 + $0x98] sm:$0xff]
        %v753 = vld [vmem:[%s4 + $0xa0] sm:$0xff]
        %v754 = vld [vmem:[%s4 + $0xa8] sm:$0xff]
        %v755 = vld [vmem:[%s4 + $0xb0] sm:$0xff]
        %v756 = vld [vmem:[%s4 + $0xb8] sm:$0xff]
        %v757 = vld [vmem:[%s4 + $0xc0] sm:$0xff]
        %v758 = vld [vmem:[%s4 + $0xc8] sm:$0xff]
        %v759 = vld [vmem:[%s4 + $0xd0] sm:$0xff]
        %v760 = vld [vmem:[%s4 + $0xd8] sm:$0xff]
        %v761 = vld [vmem:[%s4 + $0xe0] sm:$0xff]
        %v762 = vld [vmem:[%s4 + $0xe8] sm:$0xff]
        %v763 = vld [vmem:[%s4 + $0xf0] sm:$0xff]
        %v764 = vld [vmem:[%s4 + $0xf8] sm:$0xff]
        %v765 = vld [vmem:[%s4 + $0x100] sm:$0xff]
        %v766 = vld [vmem:[%s4 + $0x108] sm:$0xff]
        %v767 = vld [vmem:[%s4 + $0x110] sm:$0xff]
        %v768 = vld [vmem:[%s4 + $0x118] sm:$0xff]
        %v769 = vld [vmem:[%s4 + $0x120] sm:$0xff]
        %v770 = vld [vmem:[%s4 + $0x128] sm:$0xff]
        %v771 = vld [vmem:[%s4 + $0x130] sm:$0xff]
        %v772 = vld [vmem:[%s4 + $0x138] sm:$0xff]
        %v773 = vld [vmem:[%s4 + $0x140] sm:$0xff]
        %v774 = vld [vmem:[%s4 + $0x148] sm:$0xff]
        %v775 = vld [vmem:[%s4 + $0x150] sm:$0xff]
        %v776 = vld [vmem:[%s4 + $0x158] sm:$0xff]
        %v777 = vld [vmem:[%s4 + $0x160] sm:$0xff]
        %v778 = vld [vmem:[%s4 + $0x168] sm:$0xff]
        %v779 = vld [vmem:[%s4 + $0x170] sm:$0xff]
        %v780 = vld [vmem:[%s4 + $0x178] sm:$0xff]
        %v781 = vld [vmem:[%s4 + $0x180] sm:$0xff]
        %v782 = vld [vmem:[%s4 + $0x188] sm:$0xff]
        %v783 = vld [vmem:[%s4 + $0x190] sm:$0xff]
        %v784 = vld [vmem:[%s4 + $0x198] sm:$0xff]
        %v785 = vld [vmem:[%s4 + $0x1a0] sm:$0xff]
        %v786 = vld [vmem:[%s4 + $0x1a8] sm:$0xff]
        %v787 = vld [vmem:[%s4 + $0x1b0] sm:$0xff]
        %v788 = vld [vmem:[%s4 + $0x1b8] sm:$0xff]
        %v789 = vld [vmem:[%s4 + $0x1c0] sm:$0xff]
        %v790 = vld [vmem:[%s4 + $0x1c8] sm:$0xff]
        %v791 = vld [vmem:[%s4 + $0x1d0] sm:$0xff]
        %v792 = vld [vmem:[%s4 + $0x1d8] sm:$0xff]
        %v793 = vld [vmem:[%s4 + $0x1e0] sm:$0xff]
        %v794 = vld [vmem:[%s4 + $0x1e8] sm:$0xff]
        %v795 = vld [vmem:[%s4 + $0x1f0] sm:$0xff]
        %v796 = vld [vmem:[%s4 + $0x1f8] sm:$0xff]
        %v797 = vld [vmem:[%s4 + $0x200] sm:$0xff]
        %v798 = vld [vmem:[%s4 + $0x208] sm:$0xff]
        %v799 = vld [vmem:[%s4 + $0x210] sm:$0xff]
        %v800 = vld [vmem:[%s4 + $0x218] sm:$0xff]
        %v801 = vld [vmem:[%s4 + $0x220] sm:$0xff]
        %v802 = vld [vmem:[%s4 + $0x228] sm:$0xff]
        %v803 = vld [vmem:[%s4 + $0x230] sm:$0xff]
        %v804 = vld [vmem:[%s4 + $0x238] sm:$0xff]
        %v805 = vld [vmem:[%s4 + $0x240] sm:$0xff]
        %v806 = vld [vmem:[%s4 + $0x248] sm:$0xff]
        %v807 = vld [vmem:[%s4 + $0x250] sm:$0xf]
        %v808 = vld [vmem:[%s4 + $0x258] sm:$0xf]
        %vm809 = vcmask 359424
        %v811 = vsel %vm809, %v729, 0
        %vm813 = vcmask 1043456
        %v815 = vsel %vm813, %v807, 0
        %v818 = vsel %vm813, %v808, 0
        %820 = vmatprep.subr.mxu0 %v734
        %821 = vmatpush1.msra.mxu0 %v733
        %822 = vmatprep.subr.mxu0 %v736
        %823 = vmatpush1.msra.mxu0 %v735
        %824 = vmatprep.subr.mxu0 %v738
        %825 = vmatpush1.msra.mxu0 %v737
        %826 = vmatprep.subr.mxu0 %v740
        %827 = vmatpush1.msra.mxu0 %v739
        %828 = vmatprep.subr.mxu0 %v742
        %829 = vmatpush1.msra.mxu0 %v741
        %830 = vmatprep.subr.mxu0 %v744
        %831 = vmatpush1.msra.mxu0 %v743
        %832 = vmatprep.subr.mxu0 %v746
        %833 = vmatpush1.msra.mxu0 %v745
        %834 = vmatprep.subr.mxu0 %v748
        %835 = vmatpush1.msra.mxu0 %v747
        %836 = vmatprep.subr.mxu0 %v750
        %837 = vmatpush1.msra.mxu0 %v749
        %838 = vmatprep.subr.mxu0 %v752
        %839 = vmatpush1.msra.mxu0 %v751
        %840 = vmatprep.subr.mxu0 %v754
        %841 = vmatpush1.msra.mxu0 %v753
        %842 = vmatprep.subr.mxu0 %v756
        %843 = vmatpush1.msra.mxu0 %v755
        %844 = vmatprep.subr.mxu0 %v758
        %845 = vmatpush1.msra.mxu0 %v757
        %846 = vmatprep.subr.mxu0 %v760
        %847 = vmatpush1.msra.mxu0 %v759
        %848 = vmatprep.subr.mxu0 %v762
        %849 = vmatpush1.msra.mxu0 %v761
        %850 = vmatprep.subr.mxu0 %v764
        %851 = vmatpush1.msra.mxu0 %v763
        %852 = vmatprep.subr.mxu0 %v766
        %853 = vmatpush1.msra.mxu0 %v765
        %854 = vmatprep.subr.mxu0 %v768
        %855 = vmatpush1.msra.mxu0 %v767
        %856 = vmatprep.subr.mxu0 %v770
        %857 = vmatpush1.msra.mxu0 %v769
        %858 = vmatprep.subr.mxu0 %v772
        %859 = vmatpush1.msra.mxu0 %v771
        %860 = vmatprep.subr.mxu0 %v774
        %861 = vmatpush1.msra.mxu0 %v773
        %862 = vmatprep.subr.mxu0 %v776
        %863 = vmatpush1.msra.mxu0 %v775
        %864 = vmatprep.subr.mxu0 %v778
        %865 = vmatpush1.msra.mxu0 %v777
        %866 = vmatprep.subr.mxu0 %v780
        %867 = vmatpush1.msra.mxu0 %v779
        %868 = vmatprep.subr.mxu0 %v782
        %869 = vmatpush1.msra.mxu0 %v781
        %870 = vmatprep.subr.mxu0 %v784
        %871 = vmatpush1.msra.mxu0 %v783
        %872 = vmatprep.subr.mxu0 %v786
        %873 = vmatpush1.msra.mxu0 %v785
        %874 = vmatprep.subr.mxu0 %v788
        %875 = vmatpush1.msra.mxu0 %v787
        %876 = vmatprep.subr.mxu0 %v790
        %877 = vmatpush1.msra.mxu0 %v789
        %878 = vmatprep.subr.mxu0 %v792
        %879 = vmatpush1.msra.mxu0 %v791
        %880 = vmatprep.subr.mxu0 %v794
        %881 = vmatpush1.msra.mxu0 %v793
        %882 = vmatprep.subr.mxu0 %v796
        %883 = vmatpush1.msra.mxu0 %v795
        %884 = vmatprep.mubr.f32.mxu0 %v728
        %885 = vmatmul.mubr.f32.gmra.mrb[0].mxu0 %v727
        %v886 = vpop.f32.mrb[0].mxu0
        %v887 = vadd.f32 0.0, %v886
        %v888 = vpop.f32.mrb[0].mxu0
        %v889 = vadd.f32 0.0, %v888
        %890 = vdwg.mxu0
        %891 = vmatprep.subr.mxu0 %v798
        %892 = vmatpush1.msra.mxu0 %v797
        %893 = vmatprep.subr.mxu0 %v800
        %894 = vmatpush1.msra.mxu0 %v799
        %895 = vmatprep.subr.mxu0 %v802
        %896 = vmatpush1.msra.mxu0 %v801
        %897 = vmatprep.subr.mxu0 %v804
        %898 = vmatpush1.msra.mxu0 %v803
        %899 = vmatprep.subr.mxu0 %v806
        %900 = vmatpush1.msra.mxu0 %v805
        %901 = vmatprep.subr.mxu0 %v818
        %902 = vmatpush1.msra.mxu0 %v815
        %903 = vmatprep.subr.mxu0 0.0
        %904 = vmatpush1.msra.mxu0 0.0
        %905 = vmatprep.subr.mxu0 0.0
        %906 = vmatpush1.msra.mxu0 0.0
        %907 = vmatprep.subr.mxu0 0.0
        %908 = vmatpush1.msra.mxu0 0.0
        %909 = vmatprep.subr.mxu0 0.0
        %910 = vmatpush1.msra.mxu0 0.0
        %911 = vmatprep.subr.mxu0 0.0
        %912 = vmatpush1.msra.mxu0 0.0
        %913 = vmatprep.subr.mxu0 0.0
        %914 = vmatpush1.msra.mxu0 0.0
        %915 = vmatprep.subr.mxu0 0.0
        %916 = vmatpush1.msra.mxu0 0.0
        %917 = vmatprep.subr.mxu0 0.0
        %918 = vmatpush1.msra.mxu0 0.0
        %919 = vmatprep.subr.mxu0 0.0
        %920 = vmatpush1.msra.mxu0 0.0
        %921 = vmatprep.subr.mxu0 0.0
        %922 = vmatpush1.msra.mxu0 0.0
        %923 = vmatprep.subr.mxu0 0.0
        %924 = vmatpush1.msra.mxu0 0.0
        %925 = vmatprep.subr.mxu0 0.0
        %926 = vmatpush1.msra.mxu0 0.0
        %927 = vmatprep.subr.mxu0 0.0
        %928 = vmatpush1.msra.mxu0 0.0
        %929 = vmatprep.subr.mxu0 0.0
        %930 = vmatpush1.msra.mxu0 0.0
        %931 = vmatprep.subr.mxu0 0.0
        %932 = vmatpush1.msra.mxu0 0.0
        %933 = vmatprep.subr.mxu0 0.0
        %934 = vmatpush1.msra.mxu0 0.0
        %935 = vmatprep.subr.mxu0 0.0
        %936 = vmatpush1.msra.mxu0 0.0
        %937 = vmatprep.subr.mxu0 0.0
        %938 = vmatpush1.msra.mxu0 0.0
        %939 = vmatprep.subr.mxu0 0.0
        %940 = vmatpush1.msra.mxu0 0.0
        %941 = vmatprep.subr.mxu0 0.0
        %942 = vmatpush1.msra.mxu0 0.0
        %943 = vmatprep.subr.mxu0 0.0
        %944 = vmatpush1.msra.mxu0 0.0
        %945 = vmatprep.subr.mxu0 0.0
        %946 = vmatpush1.msra.mxu0 0.0
        %947 = vmatprep.subr.mxu0 0.0
        %948 = vmatpush1.msra.mxu0 0.0
        %949 = vmatprep.subr.mxu0 0.0
        %950 = vmatpush1.msra.mxu0 0.0
        %951 = vmatprep.subr.mxu0 0.0
        %952 = vmatpush1.msra.mxu0 0.0
        %953 = vmatprep.subr.mxu0 0.0
        %954 = vmatpush1.msra.mxu0 0.0
        %955 = vmatprep.mubr.f32.mxu0 0.0
        %956 = vmatmul.mubr.f32.gmra.mrb[0].mxu0 %v811
        %v957 = vpop.f32.mrb[0].mxu0
        %v958 = vadd.f32 %v887, %v957
        %v959 = vpop.f32.mrb[0].mxu0
        %v960 = vadd.f32 %v889, %v959
        %961 = vdwg.mxu0
        %v962 = vld [vmem:[%s722] sm:$0xff]
        %v963 = vld [vmem:[%s5] sm:$0xff]
        %v964 = vld [vmem:[%s5 + $0x8] sm:$0xff]
        %v965 = vld [vmem:[%s5 + $0x10] sm:$0xff]
        %v966 = vld [vmem:[%s5 + $0x18] sm:$0xff]
        %v967 = vld [vmem:[%s5 + $0x20] sm:$0xff]
        %v968 = vld [vmem:[%s5 + $0x28] sm:$0xff]
        %v969 = vld [vmem:[%s5 + $0x30] sm:$0xff]
        %v970 = vld [vmem:[%s5 + $0x38] sm:$0xff]
        %v971 = vld [vmem:[%s5 + $0x40] sm:$0xff]
        %v972 = vld [vmem:[%s5 + $0x48] sm:$0xff]
        %v973 = vld [vmem:[%s5 + $0x50] sm:$0xff]
        %v974 = vld [vmem:[%s5 + $0x58] sm:$0xff]
        %v975 = vld [vmem:[%s5 + $0x60] sm:$0xff]
        %v976 = vld [vmem:[%s5 + $0x68] sm:$0xff]
        %v977 = vld [vmem:[%s5 + $0x70] sm:$0xff]
        %v978 = vld [vmem:[%s5 + $0x78] sm:$0xff]
        %v979 = vld [vmem:[%s5 + $0x80] sm:$0xff]
        %v980 = vld [vmem:[%s5 + $0x88] sm:$0xff]
        %v981 = vld [vmem:[%s5 + $0x90] sm:$0xff]
        %v982 = vld [vmem:[%s5 + $0x98] sm:$0xff]
        %v983 = vld [vmem:[%s5 + $0xa0] sm:$0xff]
        %v984 = vld [vmem:[%s5 + $0xa8] sm:$0xff]
        %v985 = vld [vmem:[%s5 + $0xb0] sm:$0xff]
        %v986 = vld [vmem:[%s5 + $0xb8] sm:$0xff]
        %v987 = vld [vmem:[%s6] sm:$0x7]
        %v988 = vld [vmem:[%s7] sm:$0x7]
        %vm989 = vcmp.eq.f32.partialorder %v962, 0.0
        %991 = vrot.lane.b32.xlu0 %v958, 64
        %v992 = vpop.permute.xlu0 %991
        %vm993 = vcmask 130048
        %v994 = vsel %vm993, %v958, 0
        %v996 = vsel %vm993, %v992, 0
        %998 = vmatprep.subr.mxu0 0.0
        %999 = vmatpush1.xpose.msra.mxu0 %v996
        %1000 = vmatprep.subr.mxu0 0.0
        %1001 = vmatpush1.xpose.msra.mxu0 0.0
        %1002 = vmatprep.subr.mxu0 0.0
        %1003 = vmatpush1.xpose.msra.mxu0 0.0
        %1004 = vmatprep.subr.mxu0 0.0
        %1005 = vmatpush1.xpose.msra.mxu0 0.0
        %1006 = vmatprep.subr.mxu0 0.0
        %1007 = vmatpush1.xpose.msra.mxu0 0.0
        %1008 = vmatprep.subr.mxu0 0.0
        %1009 = vmatpush1.xpose.msra.mxu0 0.0
        %1010 = vmatprep.subr.mxu0 0.0
        %1011 = vmatpush1.xpose.msra.mxu0 0.0
        %1012 = vmatprep.subr.mxu0 0.0
        %1013 = vmatpush1.xpose.msra.mxu0 0.0
        %1014 = vmatprep.subr.mxu0 0.0
        %1015 = vmatpush1.xpose.msra.mxu0 0.0
        %1016 = vmatprep.subr.mxu0 0.0
        %1017 = vmatpush1.xpose.msra.mxu0 0.0
        %1018 = vmatprep.subr.mxu0 0.0
        %1019 = vmatpush1.xpose.msra.mxu0 0.0
        %1020 = vmatprep.subr.mxu0 0.0
        %1021 = vmatpush1.xpose.msra.mxu0 0.0
        %1022 = vmatprep.subr.mxu0 0.0
        %1023 = vmatpush1.xpose.msra.mxu0 0.0
        %1024 = vmatprep.subr.mxu0 0.0
        %1025 = vmatpush1.xpose.msra.mxu0 0.0
        %1026 = vmatprep.subr.mxu0 0.0
        %1027 = vmatpush1.xpose.msra.mxu0 0.0
        %1028 = vmatprep.subr.mxu0 0.0
        %1029 = vmatpush1.xpose.msra.mxu0 0.0
        %1030 = vmatprep.subr.mxu0 0.0
        %1031 = vmatpush1.xpose.msra.mxu0 0.0
        %1032 = vmatprep.subr.mxu0 0.0
        %1033 = vmatpush1.xpose.msra.mxu0 0.0
        %1034 = vmatprep.subr.mxu0 0.0
        %1035 = vmatpush1.xpose.msra.mxu0 0.0
        %1036 = vmatprep.subr.mxu0 0.0
        %1037 = vmatpush1.xpose.msra.mxu0 0.0
        %1038 = vmatprep.subr.mxu0 0.0
        %1039 = vmatpush1.xpose.msra.mxu0 0.0
        %1040 = vmatprep.subr.mxu0 0.0
        %1041 = vmatpush1.xpose.msra.mxu0 0.0
        %1042 = vmatprep.subr.mxu0 0.0
        %1043 = vmatpush1.xpose.msra.mxu0 0.0
        %1044 = vmatprep.subr.mxu0 0.0
        %1045 = vmatpush1.xpose.msra.mxu0 0.0
        %1046 = vmatprep.subr.mxu0 0.0
        %1047 = vmatpush1.xpose.msra.mxu0 0.0
        %1048 = vmatprep.subr.mxu0 0.0
        %1049 = vmatpush1.xpose.msra.mxu0 0.0
        %1050 = vmatprep.subr.mxu0 0.0
        %1051 = vmatpush1.xpose.msra.mxu0 0.0
        %1052 = vmatprep.subr.mxu0 0.0
        %1053 = vmatpush1.xpose.msra.mxu0 0.0
        %1054 = vmatprep.subr.mxu0 0.0
        %1055 = vmatpush1.xpose.msra.mxu0 0.0
        %1056 = vmatprep.subr.mxu0 0.0
        %1057 = vmatpush1.xpose.msra.mxu0 0.0
        %1058 = vmatprep.subr.mxu0 0.0
        %1059 = vmatpush1.xpose.msra.mxu0 0.0
        %1060 = vmatprep.subr.mxu0 0.0
        %1061 = vmatpush1.xpose.msra.mxu0 0.0
        %1062 = vmatprep.mubr.f32.mxu0 0.0
        %1063 = vmatmul.mubr.f32.gmra.mrb[0].mxu0 %v994
        %v1064 = vpop.f32.mrb[0].mxu0
        %v1065 = vadd.f32 0.0, %v1064
        %v1066 = vpop.f32.mrb[0].mxu0
        %1067 = vdwg.mxu0
        %v1068 = vmul.f32 %v1065, 0.25
        %v1069 = vsel %vm989, -10000000.0, %v1068
        %vm1070 = vcmask 64512
        %v1071 = vsel %vm1070, %v1069, -inf
        %1072 = vmax.xlane.f32.xlu0 %v1071
        %v1073 = vpop.xlane.xlu0 %1072
        %v1074 = vsub.f32 %v1069, %v1073
        %v1075 = vmul.f32 %v1074, 1.442695
        %v1076 = vpow.pop %v1075
        %v1077 = vsel %vm1070, %v1076, 0.0
        %1078 = vadd.xlane.f32.xlu0 %v1077
        %v1079 = vpop.xlane.xlu0 %1078
        %v1080 = vrcp.pop %v1079
        %v1081 = vmul.f32 %v1076, %v1080
        %v1083 = vsel %vm1070, %v1081, 0
        %1085 = vmatprep.subr.mxu0 0.0
        %1086 = vmatpush1.msra.mxu0 %v960
        %1087 = vmatprep.subr.mxu0 0.0
        %1088 = vmatpush1.msra.mxu0 0.0
        %1089 = vmatprep.subr.mxu0 0.0
        %1090 = vmatpush1.msra.mxu0 0.0
        %1091 = vmatprep.subr.mxu0 0.0
        %1092 = vmatpush1.msra.mxu0 0.0
        %1093 = vmatprep.subr.mxu0 0.0
        %1094 = vmatpush1.msra.mxu0 0.0
        %1095 = vmatprep.subr.mxu0 0.0
        %1096 = vmatpush1.msra.mxu0 0.0
        %1097 = vmatprep.subr.mxu0 0.0
        %1098 = vmatpush1.msra.mxu0 0.0
        %1099 = vmatprep.subr.mxu0 0.0
        %1100 = vmatpush1.msra.mxu0 0.0
        %1101 = vmatprep.subr.mxu0 0.0
        %1102 = vmatpush1.msra.mxu0 0.0
        %1103 = vmatprep.subr.mxu0 0.0
        %1104 = vmatpush1.msra.mxu0 0.0
        %1105 = vmatprep.subr.mxu0 0.0
        %1106 = vmatpush1.msra.mxu0 0.0
        %1107 = vmatprep.subr.mxu0 0.0
        %1108 = vmatpush1.msra.mxu0 0.0
        %1109 = vmatprep.subr.mxu0 0.0
        %1110 = vmatpush1.msra.mxu0 0.0
        %1111 = vmatprep.subr.mxu0 0.0
        %1112 = vmatpush1.msra.mxu0 0.0
        %1113 = vmatprep.subr.mxu0 0.0
        %1114 = vmatpush1.msra.mxu0 0.0
        %1115 = vmatprep.subr.mxu0 0.0
        %1116 = vmatpush1.msra.mxu0 0.0
        %1117 = vmatprep.subr.mxu0 0.0
        %1118 = vmatpush1.msra.mxu0 0.0
        %1119 = vmatprep.subr.mxu0 0.0
        %1120 = vmatpush1.msra.mxu0 0.0
        %1121 = vmatprep.subr.mxu0 0.0
        %1122 = vmatpush1.msra.mxu0 0.0
        %1123 = vmatprep.subr.mxu0 0.0
        %1124 = vmatpush1.msra.mxu0 0.0
        %1125 = vmatprep.subr.mxu0 0.0
        %1126 = vmatpush1.msra.mxu0 0.0
        %1127 = vmatprep.subr.mxu0 0.0
        %1128 = vmatpush1.msra.mxu0 0.0
        %1129 = vmatprep.subr.mxu0 0.0
        %1130 = vmatpush1.msra.mxu0 0.0
        %1131 = vmatprep.subr.mxu0 0.0
        %1132 = vmatpush1.msra.mxu0 0.0
        %1133 = vmatprep.subr.mxu0 0.0
        %1134 = vmatpush1.msra.mxu0 0.0
        %1135 = vmatprep.subr.mxu0 0.0
        %1136 = vmatpush1.msra.mxu0 0.0
        %1137 = vmatprep.subr.mxu0 0.0
        %1138 = vmatpush1.msra.mxu0 0.0
        %1139 = vmatprep.subr.mxu0 0.0
        %1140 = vmatpush1.msra.mxu0 0.0
        %1141 = vmatprep.subr.mxu0 0.0
        %1142 = vmatpush1.msra.mxu0 0.0
        %1143 = vmatprep.subr.mxu0 0.0
        %1144 = vmatpush1.msra.mxu0 0.0
        %1145 = vmatprep.subr.mxu0 0.0
        %1146 = vmatpush1.msra.mxu0 0.0
        %1147 = vmatprep.subr.mxu0 0.0
        %1148 = vmatpush1.msra.mxu0 0.0
        %1149 = vmatprep.mubr.f32.mxu0 0.0
        %1150 = vmatmul.mubr.f32.gmra.mrb[0].mxu0 %v1083
        %v1151 = vpop.f32.mrb[0].mxu0
        %v1152 = vadd.f32 0.0, %v1151
        %v1153 = vpop.f32.mrb[0].mxu0
        %1154 = vdwg.mxu0
        %1155 = vrot.lane.b32.xlu0 %v958, 112
        %v1156 = vpop.permute.xlu0 %1155
        %1157 = vrot.lane.b32.xlu0 %v958, 48
        %v1158 = vpop.permute.xlu0 %1157
        %v1159 = vsel %vm993, %v1156, 0
        %v1161 = vsel %vm993, %v1158, 0
        %1163 = vmatprep.subr.mxu0 0.0
        %1164 = vmatpush1.xpose.msra.mxu0 %v1161
        %1165 = vmatprep.subr.mxu0 0.0
        %1166 = vmatpush1.xpose.msra.mxu0 0.0
        %1167 = vmatprep.subr.mxu0 0.0
        %1168 = vmatpush1.xpose.msra.mxu0 0.0
        %1169 = vmatprep.subr.mxu0 0.0
        %1170 = vmatpush1.xpose.msra.mxu0 0.0
        %1171 = vmatprep.subr.mxu0 0.0
        %1172 = vmatpush1.xpose.msra.mxu0 0.0
        %1173 = vmatprep.subr.mxu0 0.0
        %1174 = vmatpush1.xpose.msra.mxu0 0.0
        %1175 = vmatprep.subr.mxu0 0.0
        %1176 = vmatpush1.xpose.msra.mxu0 0.0
        %1177 = vmatprep.subr.mxu0 0.0
        %1178 = vmatpush1.xpose.msra.mxu0 0.0
        %1179 = vmatprep.subr.mxu0 0.0
        %1180 = vmatpush1.xpose.msra.mxu0 0.0
        %1181 = vmatprep.subr.mxu0 0.0
        %1182 = vmatpush1.xpose.msra.mxu0 0.0
        %1183 = vmatprep.subr.mxu0 0.0
        %1184 = vmatpush1.xpose.msra.mxu0 0.0
        %1185 = vmatprep.subr.mxu0 0.0
        %1186 = vmatpush1.xpose.msra.mxu0 0.0
        %1187 = vmatprep.subr.mxu0 0.0
        %1188 = vmatpush1.xpose.msra.mxu0 0.0
        %1189 = vmatprep.subr.mxu0 0.0
        %1190 = vmatpush1.xpose.msra.mxu0 0.0
        %1191 = vmatprep.subr.mxu0 0.0
        %1192 = vmatpush1.xpose.msra.mxu0 0.0
        %1193 = vmatprep.subr.mxu0 0.0
        %1194 = vmatpush1.xpose.msra.mxu0 0.0
        %1195 = vmatprep.subr.mxu0 0.0
        %1196 = vmatpush1.xpose.msra.mxu0 0.0
        %1197 = vmatprep.subr.mxu0 0.0
        %1198 = vmatpush1.xpose.msra.mxu0 0.0
        %1199 = vmatprep.subr.mxu0 0.0
        %1200 = vmatpush1.xpose.msra.mxu0 0.0
        %1201 = vmatprep.subr.mxu0 0.0
        %1202 = vmatpush1.xpose.msra.mxu0 0.0
        %1203 = vmatprep.subr.mxu0 0.0
        %1204 = vmatpush1.xpose.msra.mxu0 0.0
        %1205 = vmatprep.subr.mxu0 0.0
        %1206 = vmatpush1.xpose.msra.mxu0 0.0
        %1207 = vmatprep.subr.mxu0 0.0
        %1208 = vmatpush1.xpose.msra.mxu0 0.0
        %1209 = vmatprep.subr.mxu0 0.0
        %1210 = vmatpush1.xpose.msra.mxu0 0.0
        %1211 = vmatprep.subr.mxu0 0.0
        %1212 = vmatpush1.xpose.msra.mxu0 0.0
        %1213 = vmatprep.subr.mxu0 0.0
        %1214 = vmatpush1.xpose.msra.mxu0 0.0
        %1215 = vmatprep.subr.mxu0 0.0
        %1216 = vmatpush1.xpose.msra.mxu0 0.0
        %1217 = vmatprep.subr.mxu0 0.0
        %1218 = vmatpush1.xpose.msra.mxu0 0.0
        %1219 = vmatprep.subr.mxu0 0.0
        %1220 = vmatpush1.xpose.msra.mxu0 0.0
        %1221 = vmatprep.subr.mxu0 0.0
        %1222 = vmatpush1.xpose.msra.mxu0 0.0
        %1223 = vmatprep.subr.mxu0 0.0
        %1224 = vmatpush1.xpose.msra.mxu0 0.0
        %1225 = vmatprep.subr.mxu0 0.0
        %1226 = vmatpush1.xpose.msra.mxu0 0.0
        %1227 = vmatprep.mubr.f32.mxu0 0.0
        %1228 = vmatmul.mubr.f32.gmra.mrb[0].mxu0 %v1159
        %v1229 = vpop.f32.mrb[0].mxu0
        %v1230 = vadd.f32 0.0, %v1229
        %v1231 = vpop.f32.mrb[0].mxu0
        %1232 = vdwg.mxu0
        %v1233 = vmul.f32 %v1230, 0.25
        %v1234 = vsel %vm989, -10000000.0, %v1233
        %v1235 = vsel %vm1070, %v1234, -inf
        %1236 = vmax.xlane.f32.xlu0 %v1235
        %v1237 = vpop.xlane.xlu0 %1236
        %v1238 = vsub.f32 %v1234, %v1237
        %v1239 = vmul.f32 %v1238, 1.442695
        %v1240 = vpow.pop %v1239
        %v1241 = vsel %vm1070, %v1240, 0.0
        %1242 = vadd.xlane.f32.xlu0 %v1241
        %v1243 = vpop.xlane.xlu0 %1242
        %v1244 = vrcp.pop %v1243
        %v1245 = vmul.f32 %v1240, %v1244
        %1247 = vrot.lane.b32.xlu0 %v960, 112
        %v1248 = vpop.permute.xlu0 %1247
        %v1251 = vsel %vm1070, %v1245, 0
        %1253 = vmatprep.subr.mxu0 0.0
        %1254 = vmatpush1.msra.mxu0 %v1248
        %1255 = vmatprep.subr.mxu0 0.0
        %1256 = vmatpush1.msra.mxu0 0.0
        %1257 = vmatprep.subr.mxu0 0.0
        %1258 = vmatpush1.msra.mxu0 0.0
        %1259 = vmatprep.subr.mxu0 0.0
        %1260 = vmatpush1.msra.mxu0 0.0
        %1261 = vmatprep.subr.mxu0 0.0
        %1262 = vmatpush1.msra.mxu0 0.0
        %1263 = vmatprep.subr.mxu0 0.0
        %1264 = vmatpush1.msra.mxu0 0.0
        %1265 = vmatprep.subr.mxu0 0.0
        %1266 = vmatpush1.msra.mxu0 0.0
        %1267 = vmatprep.subr.mxu0 0.0
        %1268 = vmatpush1.msra.mxu0 0.0
        %1269 = vmatprep.subr.mxu0 0.0
        %1270 = vmatpush1.msra.mxu0 0.0
        %1271 = vmatprep.subr.mxu0 0.0
        %1272 = vmatpush1.msra.mxu0 0.0
        %1273 = vmatprep.subr.mxu0 0.0
        %1274 = vmatpush1.msra.mxu0 0.0
        %1275 = vmatprep.subr.mxu0 0.0
        %1276 = vmatpush1.msra.mxu0 0.0
        %1277 = vmatprep.subr.mxu0 0.0
        %1278 = vmatpush1.msra.mxu0 0.0
        %1279 = vmatprep.subr.mxu0 0.0
        %1280 = vmatpush1.msra.mxu0 0.0
        %1281 = vmatprep.subr.mxu0 0.0
        %1282 = vmatpush1.msra.mxu0 0.0
        %1283 = vmatprep.subr.mxu0 0.0
        %1284 = vmatpush1.msra.mxu0 0.0
        %1285 = vmatprep.subr.mxu0 0.0
        %1286 = vmatpush1.msra.mxu0 0.0
        %1287 = vmatprep.subr.mxu0 0.0
        %1288 = vmatpush1.msra.mxu0 0.0
        %1289 = vmatprep.subr.mxu0 0.0
        %1290 = vmatpush1.msra.mxu0 0.0
        %1291 = vmatprep.subr.mxu0 0.0
        %1292 = vmatpush1.msra.mxu0 0.0
        %1293 = vmatprep.subr.mxu0 0.0
        %1294 = vmatpush1.msra.mxu0 0.0
        %1295 = vmatprep.subr.mxu0 0.0
        %1296 = vmatpush1.msra.mxu0 0.0
        %1297 = vmatprep.subr.mxu0 0.0
        %1298 = vmatpush1.msra.mxu0 0.0
        %1299 = vmatprep.subr.mxu0 0.0
        %1300 = vmatpush1.msra.mxu0 0.0
        %1301 = vmatprep.subr.mxu0 0.0
        %1302 = vmatpush1.msra.mxu0 0.0
        %1303 = vmatprep.subr.mxu0 0.0
        %1304 = vmatpush1.msra.mxu0 0.0
        %1305 = vmatprep.subr.mxu0 0.0
        %1306 = vmatpush1.msra.mxu0 0.0
        %1307 = vmatprep.subr.mxu0 0.0
        %1308 = vmatpush1.msra.mxu0 0.0
        %1309 = vmatprep.subr.mxu0 0.0
        %1310 = vmatpush1.msra.mxu0 0.0
        %1311 = vmatprep.subr.mxu0 0.0
        %1312 = vmatpush1.msra.mxu0 0.0
        %1313 = vmatprep.subr.mxu0 0.0
        %1314 = vmatpush1.msra.mxu0 0.0
        %1315 = vmatprep.subr.mxu0 0.0
        %1316 = vmatpush1.msra.mxu0 0.0
        %1317 = vmatprep.mubr.f32.mxu0 0.0
        %1318 = vmatmul.mubr.f32.gmra.mrb[0].mxu0 %v1251
        %v1319 = vpop.f32.mrb[0].mxu0
        %v1320 = vadd.f32 0.0, %v1319
        %v1321 = vpop.f32.mrb[0].mxu0
        %1322 = vdwg.mxu0
        %1323 = vrot.lane.b32.xlu0 %v958, 96
        %v1324 = vpop.permute.xlu0 %1323
        %1325 = vrot.lane.b32.xlu0 %v958, 32
        %v1326 = vpop.permute.xlu0 %1325
        %v1327 = vsel %vm993, %v1324, 0
        %v1329 = vsel %vm993, %v1326, 0
        %1331 = vmatprep.subr.mxu0 0.0
        %1332 = vmatpush1.xpose.msra.mxu0 %v1329
        %1333 = vmatprep.subr.mxu0 0.0
        %1334 = vmatpush1.xpose.msra.mxu0 0.0
        %1335 = vmatprep.subr.mxu0 0.0
        %1336 = vmatpush1.xpose.msra.mxu0 0.0
        %1337 = vmatprep.subr.mxu0 0.0
        %1338 = vmatpush1.xpose.msra.mxu0 0.0
        %1339 = vmatprep.subr.mxu0 0.0
        %1340 = vmatpush1.xpose.msra.mxu0 0.0
        %1341 = vmatprep.subr.mxu0 0.0
        %1342 = vmatpush1.xpose.msra.mxu0 0.0
        %1343 = vmatprep.subr.mxu0 0.0
        %1344 = vmatpush1.xpose.msra.mxu0 0.0
        %1345 = vmatprep.subr.mxu0 0.0
        %1346 = vmatpush1.xpose.msra.mxu0 0.0
        %1347 = vmatprep.subr.mxu0 0.0
        %1348 = vmatpush1.xpose.msra.mxu0 0.0
        %1349 = vmatprep.subr.mxu0 0.0
        %1350 = vmatpush1.xpose.msra.mxu0 0.0
        %1351 = vmatprep.subr.mxu0 0.0
        %1352 = vmatpush1.xpose.msra.mxu0 0.0
        %1353 = vmatprep.subr.mxu0 0.0
        %1354 = vmatpush1.xpose.msra.mxu0 0.0
        %1355 = vmatprep.subr.mxu0 0.0
        %1356 = vmatpush1.xpose.msra.mxu0 0.0
        %1357 = vmatprep.subr.mxu0 0.0
        %1358 = vmatpush1.xpose.msra.mxu0 0.0
        %1359 = vmatprep.subr.mxu0 0.0
        %1360 = vmatpush1.xpose.msra.mxu0 0.0
        %1361 = vmatprep.subr.mxu0 0.0
        %1362 = vmatpush1.xpose.msra.mxu0 0.0
        %1363 = vmatprep.subr.mxu0 0.0
        %1364 = vmatpush1.xpose.msra.mxu0 0.0
        %1365 = vmatprep.subr.mxu0 0.0
        %1366 = vmatpush1.xpose.msra.mxu0 0.0
        %1367 = vmatprep.subr.mxu0 0.0
        %1368 = vmatpush1.xpose.msra.mxu0 0.0
        %1369 = vmatprep.subr.mxu0 0.0
        %1370 = vmatpush1.xpose.msra.mxu0 0.0
        %1371 = vmatprep.subr.mxu0 0.0
        %1372 = vmatpush1.xpose.msra.mxu0 0.0
        %1373 = vmatprep.subr.mxu0 0.0
        %1374 = vmatpush1.xpose.msra.mxu0 0.0
        %1375 = vmatprep.subr.mxu0 0.0
        %1376 = vmatpush1.xpose.msra.mxu0 0.0
        %1377 = vmatprep.subr.mxu0 0.0
        %1378 = vmatpush1.xpose.msra.mxu0 0.0
        %1379 = vmatprep.subr.mxu0 0.0
        %1380 = vmatpush1.xpose.msra.mxu0 0.0
        %1381 = vmatprep.subr.mxu0 0.0
        %1382 = vmatpush1.xpose.msra.mxu0 0.0
        %1383 = vmatprep.subr.mxu0 0.0
        %1384 = vmatpush1.xpose.msra.mxu0 0.0
        %1385 = vmatprep.subr.mxu0 0.0
        %1386 = vmatpush1.xpose.msra.mxu0 0.0
        %1387 = vmatprep.subr.mxu0 0.0
        %1388 = vmatpush1.xpose.msra.mxu0 0.0
        %1389 = vmatprep.subr.mxu0 0.0
        %1390 = vmatpush1.xpose.msra.mxu0 0.0
        %1391 = vmatprep.subr.mxu0 0.0
        %1392 = vmatpush1.xpose.msra.mxu0 0.0
        %1393 = vmatprep.subr.mxu0 0.0
        %1394 = vmatpush1.xpose.msra.mxu0 0.0
        %1395 = vmatprep.mubr.f32.mxu0 0.0
        %1396 = vmatmul.mubr.f32.gmra.mrb[0].mxu0 %v1327
        %v1397 = vpop.f32.mrb[0].mxu0
        %v1398 = vadd.f32 0.0, %v1397
        %v1399 = vpop.f32.mrb[0].mxu0
        %1400 = vdwg.mxu0
        %v1401 = vmul.f32 %v1398, 0.25
        %v1402 = vsel %vm989, -10000000.0, %v1401
        %v1403 = vsel %vm1070, %v1402, -inf
        %1404 = vmax.xlane.f32.xlu0 %v1403
        %v1405 = vpop.xlane.xlu0 %1404
        %v1406 = vsub.f32 %v1402, %v1405
        %v1407 = vmul.f32 %v1406, 1.442695
        %v1408 = vpow.pop %v1407
        %v1409 = vsel %vm1070, %v1408, 0.0
        %1410 = vadd.xlane.f32.xlu0 %v1409
        %v1411 = vpop.xlane.xlu0 %1410
        %v1412 = vrcp.pop %v1411
        %v1413 = vmul.f32 %v1408, %v1412
        %1414 = vrot.lane.b32.xlu0 %v960, 96
        %v1415 = vpop.permute.xlu0 %1414
        %v1418 = vsel %vm1070, %v1413, 0
        %1420 = vmatprep.subr.mxu0 0.0
        %1421 = vmatpush1.msra.mxu0 %v1415
        %1422 = vmatprep.subr.mxu0 0.0
        %1423 = vmatpush1.msra.mxu0 0.0
        %1424 = vmatprep.subr.mxu0 0.0
        %1425 = vmatpush1.msra.mxu0 0.0
        %1426 = vmatprep.subr.mxu0 0.0
        %1427 = vmatpush1.msra.mxu0 0.0
        %1428 = vmatprep.subr.mxu0 0.0
        %1429 = vmatpush1.msra.mxu0 0.0
        %1430 = vmatprep.subr.mxu0 0.0
        %1431 = vmatpush1.msra.mxu0 0.0
        %1432 = vmatprep.subr.mxu0 0.0
        %1433 = vmatpush1.msra.mxu0 0.0
        %1434 = vmatprep.subr.mxu0 0.0
        %1435 = vmatpush1.msra.mxu0 0.0
        %1436 = vmatprep.subr.mxu0 0.0
        %1437 = vmatpush1.msra.mxu0 0.0
        %1438 = vmatprep.subr.mxu0 0.0
        %1439 = vmatpush1.msra.mxu0 0.0
        %1440 = vmatprep.subr.mxu0 0.0
        %1441 = vmatpush1.msra.mxu0 0.0
        %1442 = vmatprep.subr.mxu0 0.0
        %1443 = vmatpush1.msra.mxu0 0.0
        %1444 = vmatprep.subr.mxu0 0.0
        %1445 = vmatpush1.msra.mxu0 0.0
        %1446 = vmatprep.subr.mxu0 0.0
        %1447 = vmatpush1.msra.mxu0 0.0
        %1448 = vmatprep.subr.mxu0 0.0
        %1449 = vmatpush1.msra.mxu0 0.0
        %1450 = vmatprep.subr.mxu0 0.0
        %1451 = vmatpush1.msra.mxu0 0.0
        %1452 = vmatprep.subr.mxu0 0.0
        %1453 = vmatpush1.msra.mxu0 0.0
        %1454 = vmatprep.subr.mxu0 0.0
        %1455 = vmatpush1.msra.mxu0 0.0
        %1456 = vmatprep.subr.mxu0 0.0
        %1457 = vmatpush1.msra.mxu0 0.0
        %1458 = vmatprep.subr.mxu0 0.0
        %1459 = vmatpush1.msra.mxu0 0.0
        %1460 = vmatprep.subr.mxu0 0.0
        %1461 = vmatpush1.msra.mxu0 0.0
        %1462 = vmatprep.subr.mxu0 0.0
        %1463 = vmatpush1.msra.mxu0 0.0
        %1464 = vmatprep.subr.mxu0 0.0
        %1465 = vmatpush1.msra.mxu0 0.0
        %1466 = vmatprep.subr.mxu0 0.0
        %1467 = vmatpush1.msra.mxu0 0.0
        %1468 = vmatprep.subr.mxu0 0.0
        %1469 = vmatpush1.msra.mxu0 0.0
        %1470 = vmatprep.subr.mxu0 0.0
        %1471 = vmatpush1.msra.mxu0 0.0
        %1472 = vmatprep.subr.mxu0 0.0
        %1473 = vmatpush1.msra.mxu0 0.0
        %1474 = vmatprep.subr.mxu0 0.0
        %1475 = vmatpush1.msra.mxu0 0.0
        %1476 = vmatprep.subr.mxu0 0.0
        %1477 = vmatpush1.msra.mxu0 0.0
        %1478 = vmatprep.subr.mxu0 0.0
        %1479 = vmatpush1.msra.mxu0 0.0
        %1480 = vmatprep.subr.mxu0 0.0
        %1481 = vmatpush1.msra.mxu0 0.0
        %1482 = vmatprep.subr.mxu0 0.0
        %1483 = vmatpush1.msra.mxu0 0.0
        %1484 = vmatprep.mubr.f32.mxu0 0.0
        %1485 = vmatmul.mubr.f32.gmra.mrb[0].mxu0 %v1418
        %v1486 = vpop.f32.mrb[0].mxu0
        %v1487 = vadd.f32 0.0, %v1486
        %v1488 = vpop.f32.mrb[0].mxu0
        %1489 = vdwg.mxu0
        %1490 = vrot.lane.b32.xlu0 %v958, 80
        %v1491 = vpop.permute.xlu0 %1490
        %1492 = vrot.lane.b32.xlu0 %v958, 16
        %v1493 = vpop.permute.xlu0 %1492
        %v1494 = vsel %vm993, %v1491, 0
        %v1496 = vsel %vm993, %v1493, 0
        %1498 = vmatprep.subr.mxu0 0.0
        %1499 = vmatpush1.xpose.msra.mxu0 %v1496
        %1500 = vmatprep.subr.mxu0 0.0
        %1501 = vmatpush1.xpose.msra.mxu0 0.0
        %1502 = vmatprep.subr.mxu0 0.0
        %1503 = vmatpush1.xpose.msra.mxu0 0.0
        %1504 = vmatprep.subr.mxu0 0.0
        %1505 = vmatpush1.xpose.msra.mxu0 0.0
        %1506 = vmatprep.subr.mxu0 0.0
        %1507 = vmatpush1.xpose.msra.mxu0 0.0
        %1508 = vmatprep.subr.mxu0 0.0
        %1509 = vmatpush1.xpose.msra.mxu0 0.0
        %1510 = vmatprep.subr.mxu0 0.0
        %1511 = vmatpush1.xpose.msra.mxu0 0.0
        %1512 = vmatprep.subr.mxu0 0.0
        %1513 = vmatpush1.xpose.msra.mxu0 0.0
        %1514 = vmatprep.subr.mxu0 0.0
        %1515 = vmatpush1.xpose.msra.mxu0 0.0
        %1516 = vmatprep.subr.mxu0 0.0
        %1517 = vmatpush1.xpose.msra.mxu0 0.0
        %1518 = vmatprep.subr.mxu0 0.0
        %1519 = vmatpush1.xpose.msra.mxu0 0.0
        %1520 = vmatprep.subr.mxu0 0.0
        %1521 = vmatpush1.xpose.msra.mxu0 0.0
        %1522 = vmatprep.subr.mxu0 0.0
        %1523 = vmatpush1.xpose.msra.mxu0 0.0
        %1524 = vmatprep.subr.mxu0 0.0
        %1525 = vmatpush1.xpose.msra.mxu0 0.0
        %1526 = vmatprep.subr.mxu0 0.0
        %1527 = vmatpush1.xpose.msra.mxu0 0.0
        %1528 = vmatprep.subr.mxu0 0.0
        %1529 = vmatpush1.xpose.msra.mxu0 0.0
        %1530 = vmatprep.subr.mxu0 0.0
        %1531 = vmatpush1.xpose.msra.mxu0 0.0
        %1532 = vmatprep.subr.mxu0 0.0
        %1533 = vmatpush1.xpose.msra.mxu0 0.0
        %1534 = vmatprep.subr.mxu0 0.0
        %1535 = vmatpush1.xpose.msra.mxu0 0.0
        %1536 = vmatprep.subr.mxu0 0.0
        %1537 = vmatpush1.xpose.msra.mxu0 0.0
        %1538 = vmatprep.subr.mxu0 0.0
        %1539 = vmatpush1.xpose.msra.mxu0 0.0
        %1540 = vmatprep.subr.mxu0 0.0
        %1541 = vmatpush1.xpose.msra.mxu0 0.0
        %1542 = vmatprep.subr.mxu0 0.0
        %1543 = vmatpush1.xpose.msra.mxu0 0.0
        %1544 = vmatprep.subr.mxu0 0.0
        %1545 = vmatpush1.xpose.msra.mxu0 0.0
        %1546 = vmatprep.subr.mxu0 0.0
        %1547 = vmatpush1.xpose.msra.mxu0 0.0
        %1548 = vmatprep.subr.mxu0 0.0
        %1549 = vmatpush1.xpose.msra.mxu0 0.0
        %1550 = vmatprep.subr.mxu0 0.0
        %1551 = vmatpush1.xpose.msra.mxu0 0.0
        %1552 = vmatprep.subr.mxu0 0.0
        %1553 = vmatpush1.xpose.msra.mxu0 0.0
        %1554 = vmatprep.subr.mxu0 0.0
        %1555 = vmatpush1.xpose.msra.mxu0 0.0
        %1556 = vmatprep.subr.mxu0 0.0
        %1557 = vmatpush1.xpose.msra.mxu0 0.0
        %1558 = vmatprep.subr.mxu0 0.0
        %1559 = vmatpush1.xpose.msra.mxu0 0.0
        %1560 = vmatprep.subr.mxu0 0.0
        %1561 = vmatpush1.xpose.msra.mxu0 0.0
        %1562 = vmatprep.mubr.f32.mxu0 0.0
        %1563 = vmatmul.mubr.f32.gmra.mrb[0].mxu0 %v1494
        %v1564 = vpop.f32.mrb[0].mxu0
        %v1565 = vadd.f32 0.0, %v1564
        %v1566 = vpop.f32.mrb[0].mxu0
        %1567 = vdwg.mxu0
        %v1568 = vmul.f32 %v1565, 0.25
        %v1569 = vsel %vm989, -10000000.0, %v1568
        %v1570 = vsel %vm1070, %v1569, -inf
        %1571 = vmax.xlane.f32.xlu0 %v1570
        %v1572 = vpop.xlane.xlu0 %1571
        %v1573 = vsub.f32 %v1569, %v1572
        %v1574 = vmul.f32 %v1573, 1.442695
        %v1575 = vpow.pop %v1574
        %v1576 = vsel %vm1070, %v1575, 0.0
        %1577 = vadd.xlane.f32.xlu0 %v1576
        %v1578 = vpop.xlane.xlu0 %1577
        %v1579 = vrcp.pop %v1578
        %v1580 = vmul.f32 %v1575, %v1579
        %1581 = vrot.lane.b32.xlu0 %v960, 80
        %v1582 = vpop.permute.xlu0 %1581
        %v1585 = vsel %vm1070, %v1580, 0
        %1587 = vmatprep.subr.mxu0 0.0
        %1588 = vmatpush1.msra.mxu0 %v1582
        %1589 = vmatprep.subr.mxu0 0.0
        %1590 = vmatpush1.msra.mxu0 0.0
        %1591 = vmatprep.subr.mxu0 0.0
        %1592 = vmatpush1.msra.mxu0 0.0
        %1593 = vmatprep.subr.mxu0 0.0
        %1594 = vmatpush1.msra.mxu0 0.0
        %1595 = vmatprep.subr.mxu0 0.0
        %1596 = vmatpush1.msra.mxu0 0.0
        %1597 = vmatprep.subr.mxu0 0.0
        %1598 = vmatpush1.msra.mxu0 0.0
        %1599 = vmatprep.subr.mxu0 0.0
        %1600 = vmatpush1.msra.mxu0 0.0
        %1601 = vmatprep.subr.mxu0 0.0
        %1602 = vmatpush1.msra.mxu0 0.0
        %1603 = vmatprep.subr.mxu0 0.0
        %1604 = vmatpush1.msra.mxu0 0.0
        %1605 = vmatprep.subr.mxu0 0.0
        %1606 = vmatpush1.msra.mxu0 0.0
        %1607 = vmatprep.subr.mxu0 0.0
        %1608 = vmatpush1.msra.mxu0 0.0
        %1609 = vmatprep.subr.mxu0 0.0
        %1610 = vmatpush1.msra.mxu0 0.0
        %1611 = vmatprep.subr.mxu0 0.0
        %1612 = vmatpush1.msra.mxu0 0.0
        %1613 = vmatprep.subr.mxu0 0.0
        %1614 = vmatpush1.msra.mxu0 0.0
        %1615 = vmatprep.subr.mxu0 0.0
        %1616 = vmatpush1.msra.mxu0 0.0
        %1617 = vmatprep.subr.mxu0 0.0
        %1618 = vmatpush1.msra.mxu0 0.0
        %1619 = vmatprep.subr.mxu0 0.0
        %1620 = vmatpush1.msra.mxu0 0.0
        %1621 = vmatprep.subr.mxu0 0.0
        %1622 = vmatpush1.msra.mxu0 0.0
        %1623 = vmatprep.subr.mxu0 0.0
        %1624 = vmatpush1.msra.mxu0 0.0
        %1625 = vmatprep.subr.mxu0 0.0
        %1626 = vmatpush1.msra.mxu0 0.0
        %1627 = vmatprep.subr.mxu0 0.0
        %1628 = vmatpush1.msra.mxu0 0.0
        %1629 = vmatprep.subr.mxu0 0.0
        %1630 = vmatpush1.msra.mxu0 0.0
        %1631 = vmatprep.subr.mxu0 0.0
        %1632 = vmatpush1.msra.mxu0 0.0
        %1633 = vmatprep.subr.mxu0 0.0
        %1634 = vmatpush1.msra.mxu0 0.0
        %1635 = vmatprep.subr.mxu0 0.0
        %1636 = vmatpush1.msra.mxu0 0.0
        %1637 = vmatprep.subr.mxu0 0.0
        %1638 = vmatpush1.msra.mxu0 0.0
        %1639 = vmatprep.subr.mxu0 0.0
        %1640 = vmatpush1.msra.mxu0 0.0
        %1641 = vmatprep.subr.mxu0 0.0
        %1642 = vmatpush1.msra.mxu0 0.0
        %1643 = vmatprep.subr.mxu0 0.0
        %1644 = vmatpush1.msra.mxu0 0.0
        %1645 = vmatprep.subr.mxu0 0.0
        %1646 = vmatpush1.msra.mxu0 0.0
        %1647 = vmatprep.subr.mxu0 0.0
        %1648 = vmatpush1.msra.mxu0 0.0
        %1649 = vmatprep.subr.mxu0 0.0
        %1650 = vmatpush1.msra.mxu0 0.0
        %1651 = vmatprep.mubr.f32.mxu0 0.0
        %1652 = vmatmul.mubr.f32.gmra.mrb[0].mxu0 %v1585
        %v1653 = vpop.f32.mrb[0].mxu0
        %v1654 = vadd.f32 0.0, %v1653
        %v1655 = vpop.f32.mrb[0].mxu0
        %1656 = vdwg.mxu0
        %1658 = vrot.lane.b32.xlu0 %v1320, 16
        %v1659 = vpop.permute.xlu0 %1658
        %1662 = vrot.lane.b32.xlu0 %v1487, 32
        %v1663 = vpop.permute.xlu0 %1662
        %1666 = vrot.lane.b32.xlu0 %v1654, 48
        %v1667 = vpop.permute.xlu0 %1666
        %v1669 = vsel %vm993, %v1152, %v1659
        %vm1670 = vcmask 261120
        %v1671 = vsel %vm1670, %v1669, %v1663
        %vm1672 = vcmask 392192
        %v1673 = vsel %vm1672, %v1671, %v1667
        %vm1674 = vcmask 523264
        %v1676 = vsel %vm1674, %v1673, 0
        %1678 = vmatprep.subr.mxu0 %v964
        %1679 = vmatpush1.msra.mxu0 %v963
        %1680 = vmatprep.subr.mxu0 %v967
        %1681 = vmatpush1.msra.mxu0 %v966
        %1682 = vmatprep.subr.mxu0 %v970
        %1683 = vmatpush1.msra.mxu0 %v969
        %1684 = vmatprep.subr.mxu0 %v973
        %1685 = vmatpush1.msra.mxu0 %v972
        %1686 = vmatprep.subr.mxu0 %v976
        %1687 = vmatpush1.msra.mxu0 %v975
        %1688 = vmatprep.subr.mxu0 %v979
        %1689 = vmatpush1.msra.mxu0 %v978
        %1690 = vmatprep.subr.mxu0 %v982
        %1691 = vmatpush1.msra.mxu0 %v981
        %1692 = vmatprep.subr.mxu0 %v985
        %1693 = vmatpush1.msra.mxu0 %v984
        %1694 = vmatprep.subr.mxu0 0.0
        %1695 = vmatpush1.msra.mxu0 0.0
        %1696 = vmatprep.subr.mxu0 0.0
        %1697 = vmatpush1.msra.mxu0 0.0
        %1698 = vmatprep.subr.mxu0 0.0
        %1699 = vmatpush1.msra.mxu0 0.0
        %1700 = vmatprep.subr.mxu0 0.0
        %1701 = vmatpush1.msra.mxu0 0.0
        %1702 = vmatprep.subr.mxu0 0.0
        %1703 = vmatpush1.msra.mxu0 0.0
        %1704 = vmatprep.subr.mxu0 0.0
        %1705 = vmatpush1.msra.mxu0 0.0
        %1706 = vmatprep.subr.mxu0 0.0
        %1707 = vmatpush1.msra.mxu0 0.0
        %1708 = vmatprep.subr.mxu0 0.0
        %1709 = vmatpush1.msra.mxu0 0.0
        %1710 = vmatprep.subr.mxu0 0.0
        %1711 = vmatpush1.msra.mxu0 0.0
        %1712 = vmatprep.subr.mxu0 0.0
        %1713 = vmatpush1.msra.mxu0 0.0
        %1714 = vmatprep.subr.mxu0 0.0
        %1715 = vmatpush1.msra.mxu0 0.0
        %1716 = vmatprep.subr.mxu0 0.0
        %1717 = vmatpush1.msra.mxu0 0.0
        %1718 = vmatprep.subr.mxu0 0.0
        %1719 = vmatpush1.msra.mxu0 0.0
        %1720 = vmatprep.subr.mxu0 0.0
        %1721 = vmatpush1.msra.mxu0 0.0
        %1722 = vmatprep.subr.mxu0 0.0
        %1723 = vmatpush1.msra.mxu0 0.0
        %1724 = vmatprep.subr.mxu0 0.0
        %1725 = vmatpush1.msra.mxu0 0.0
        %1726 = vmatprep.subr.mxu0 0.0
        %1727 = vmatpush1.msra.mxu0 0.0
        %1728 = vmatprep.subr.mxu0 0.0
        %1729 = vmatpush1.msra.mxu0 0.0
        %1730 = vmatprep.subr.mxu0 0.0
        %1731 = vmatpush1.msra.mxu0 0.0
        %1732 = vmatprep.subr.mxu0 0.0
        %1733 = vmatpush1.msra.mxu0 0.0
        %1734 = vmatprep.subr.mxu0 0.0
        %1735 = vmatpush1.msra.mxu0 0.0
        %1736 = vmatprep.subr.mxu0 0.0
        %1737 = vmatpush1.msra.mxu0 0.0
        %1738 = vmatprep.subr.mxu0 0.0
        %1739 = vmatpush1.msra.mxu0 0.0
        %1740 = vmatprep.subr.mxu0 0.0
        %1741 = vmatpush1.msra.mxu0 0.0
        %1742 = vmatprep.mubr.f32.mxu0 0.0
        %1743 = vmatmul.mubr.f32.gmra.mrb[0].mxu0 %v1676
        %v1744 = vpop.f32.mrb[0].mxu0
        %v1745 = vadd.f32 %v727, %v1744
        %v1746 = vpop.f32.mrb[0].mxu0
        %v1747 = vadd.f32 %v728, %v1746
        %1748 = vdwg.mxu0
        %1749 = vmatprep.subr.mxu0 0.0
        %1750 = vmatpush1.msra.mxu0 %v965
        %1751 = vmatprep.subr.mxu0 0.0
        %1752 = vmatpush1.msra.mxu0 %v968
        %1753 = vmatprep.subr.mxu0 0.0
        %1754 = vmatpush1.msra.mxu0 %v971
        %1755 = vmatprep.subr.mxu0 0.0
        %1756 = vmatpush1.msra.mxu0 %v974
        %1757 = vmatprep.subr.mxu0 0.0
        %1758 = vmatpush1.msra.mxu0 %v977
        %1759 = vmatprep.subr.mxu0 0.0
        %1760 = vmatpush1.msra.mxu0 %v980
        %1761 = vmatprep.subr.mxu0 0.0
        %1762 = vmatpush1.msra.mxu0 %v983
        %1763 = vmatprep.subr.mxu0 0.0
        %1764 = vmatpush1.msra.mxu0 %v986
        %1765 = vmatprep.subr.mxu0 0.0
        %1766 = vmatpush1.msra.mxu0 0.0
        %1767 = vmatprep.subr.mxu0 0.0
        %1768 = vmatpush1.msra.mxu0 0.0
        %1769 = vmatprep.subr.mxu0 0.0
        %1770 = vmatpush1.msra.mxu0 0.0
        %1771 = vmatprep.subr.mxu0 0.0
        %1772 = vmatpush1.msra.mxu0 0.0
        %1773 = vmatprep.subr.mxu0 0.0
        %1774 = vmatpush1.msra.mxu0 0.0
        %1775 = vmatprep.subr.mxu0 0.0
        %1776 = vmatpush1.msra.mxu0 0.0
        %1777 = vmatprep.subr.mxu0 0.0
        %1778 = vmatpush1.msra.mxu0 0.0
        %1779 = vmatprep.subr.mxu0 0.0
        %1780 = vmatpush1.msra.mxu0 0.0
        %1781 = vmatprep.subr.mxu0 0.0
        %1782 = vmatpush1.msra.mxu0 0.0
        %1783 = vmatprep.subr.mxu0 0.0
        %1784 = vmatpush1.msra.mxu0 0.0
        %1785 = vmatprep.subr.mxu0 0.0
        %1786 = vmatpush1.msra.mxu0 0.0
        %1787 = vmatprep.subr.mxu0 0.0
        %1788 = vmatpush1.msra.mxu0 0.0
        %1789 = vmatprep.subr.mxu0 0.0
        %1790 = vmatpush1.msra.mxu0 0.0
        %1791 = vmatprep.subr.mxu0 0.0
        %1792 = vmatpush1.msra.mxu0 0.0
        %1793 = vmatprep.subr.mxu0 0.0
        %1794 = vmatpush1.msra.mxu0 0.0
        %1795 = vmatprep.subr.mxu0 0.0
        %1796 = vmatpush1.msra.mxu0 0.0
        %1797 = vmatprep.subr.mxu0 0.0
        %1798 = vmatpush1.msra.mxu0 0.0
        %1799 = vmatprep.subr.mxu0 0.0
        %1800 = vmatpush1.msra.mxu0 0.0
        %1801 = vmatprep.subr.mxu0 0.0
        %1802 = vmatpush1.msra.mxu0 0.0
        %1803 = vmatprep.subr.mxu0 0.0
        %1804 = vmatpush1.msra.mxu0 0.0
        %1805 = vmatprep.subr.mxu0 0.0
        %1806 = vmatpush1.msra.mxu0 0.0
        %1807 = vmatprep.subr.mxu0 0.0
        %1808 = vmatpush1.msra.mxu0 0.0
        %1809 = vmatprep.subr.mxu0 0.0
        %1810 = vmatpush1.msra.mxu0 0.0
        %1811 = vmatprep.subr.mxu0 0.0
        %1812 = vmatpush1.msra.mxu0 0.0
        %1813 = vmatprep.mubr.f32.mxu0 0.0
        %1814 = vmatmul.mubr.f32.gmra.mrb[0].mxu0 %v1676
        %v1815 = vpop.f32.mrb[0].mxu0
        %v1816 = vadd.f32 %v729, %v1815
        %v1817 = vpop.f32.mrb[0].mxu0
        %1818 = vdwg.mxu0
        %v1819 = vadd.f32 %v1745, %v1747
        %v1820 = vsel %vm809, %v1816, 0.0
        %v1821 = vadd.f32 %v1819, %v1820
        %1822 = vadd.xlane.f32.xlu0 %v1821
        %v1823 = vpop.xlane.xlu0 %1822
        %v1824 = vrcp.pop 300.0
        %v1825 = vmul.f32 %v1823, %v1824
        %v1826 = vsub.f32 %v1745, %v1825
        %v1827 = vsub.f32 %v1747, %v1825
        %v1828 = vsub.f32 %v1816, %v1825
        %v1829 = vmul.f32 %v1826, %v1826
        %v1830 = vmul.f32 %v1827, %v1827
        %v1831 = vmul.f32 %v1828, %v1828
        %v1832 = vadd.f32 %v1829, %v1830
        %v1833 = vsel %vm809, %v1831, 0.0
        %v1834 = vadd.f32 %v1832, %v1833
        %1835 = vadd.xlane.f32.xlu0 %v1834
        %v1836 = vpop.xlane.xlu0 %1835
        %v1837 = vmul.f32 %v1836, %v1824
        %v1838 = vadd.f32 %v1837, 1e-06
        %v1839 = vrsqrt.pop %v1838
        %v1840 = vmul.f32 %v1826, %v1839
        %v1841 = vmul.f32 %v1827, %v1839
        %v1842 = vmul.f32 %v1828, %v1839
        %v1844 = vlaneseq
        %v1845 = vshrl.u32 %v1844, 7
        %v1846 = vsub.s32 0, %v1845
        %v1847 = vrot.slane %v987, %v1846
        %v1848 = vlaneseq
        %v1849 = vshrl.u32 %v1848, 7
        %v1850 = vsub.s32 1, %v1849
        %v1851 = vrot.slane %v987, %v1850
        %v1852 = vlaneseq
        %v1853 = vshrl.u32 %v1852, 7
        %v1854 = vsub.s32 2, %v1853
        %v1855 = vrot.slane %v987, %v1854
        %v1859 = vmul.f32 %v1840, %v1847
        %v1860 = vmul.f32 %v1841, %v1851
        %v1861 = vmul.f32 %v1842, %v1855
        %v1863 = vlaneseq
        %v1864 = vshrl.u32 %v1863, 7
        %v1865 = vsub.s32 0, %v1864
        %v1866 = vrot.slane %v988, %v1865
        %v1867 = vlaneseq
        %v1868 = vshrl.u32 %v1867, 7
        %v1869 = vsub.s32 1, %v1868
        %v1870 = vrot.slane %v988, %v1869
        %v1871 = vlaneseq
        %v1872 = vshrl.u32 %v1871, 7
        %v1873 = vsub.s32 2, %v1872
        %v1874 = vrot.slane %v988, %v1873
        %v1878 = vadd.f32 %v1859, %v1866
        %v1879 = vadd.f32 %v1860, %v1870
        %v1880 = vadd.f32 %v1861, %v1874
        %1881 = vrot.lane.b32.xlu0 %v1245, 8
        %v1882 = vpop.permute.xlu0 %1881
        %1884 = vrot.lane.b32.xlu0 %v1413, 16
        %v1885 = vpop.permute.xlu0 %1884
        %1887 = vrot.lane.b32.xlu0 %v1580, 24
        %v1888 = vpop.permute.xlu0 %1887
        %v1890 = vsel %vm1070, %v1081, %v1882
        %v1891 = vsel %vm993, %v1890, %v1885
        %vm1892 = vcmask 195584
        %v1893 = vsel %vm1892, %v1891, %v1888
        %1894 = vst.msk [vmem:[%s701] sm:$0xff] %vm1670, %v1893
        %v1895 = vld [vmem:[%s8] sm:$0xff]
        %v1896 = vld [vmem:[%s8 + $0x8] sm:$0xff]
        %v1897 = vld [vmem:[%s8 + $0x10] sm:$0xff]
        %v1898 = vld [vmem:[%s8 + $0x18] sm:$0xff]
        %v1899 = vld [vmem:[%s8 + $0x20] sm:$0xff]
        %v1900 = vld [vmem:[%s8 + $0x28] sm:$0xff]
        %v1901 = vld [vmem:[%s8 + $0x30] sm:$0xff]
        %v1902 = vld [vmem:[%s8 + $0x38] sm:$0xff]
        %v1903 = vld [vmem:[%s8 + $0x40] sm:$0xff]
        %v1904 = vld [vmem:[%s8 + $0x48] sm:$0xff]
        %v1905 = vld [vmem:[%s8 + $0x50] sm:$0xff]
        %v1906 = vld [vmem:[%s8 + $0x58] sm:$0xff]
        %v1907 = vld [vmem:[%s8 + $0x60] sm:$0xff]
        %v1908 = vld [vmem:[%s8 + $0x68] sm:$0xff]
        %v1909 = vld [vmem:[%s8 + $0x70] sm:$0xff]
        %v1910 = vld [vmem:[%s8 + $0x78] sm:$0xff]
        %v1911 = vld [vmem:[%s8 + $0x80] sm:$0xff]
        %v1912 = vld [vmem:[%s8 + $0x88] sm:$0xff]
        %v1913 = vld [vmem:[%s8 + $0x90] sm:$0xff]
        %v1914 = vld [vmem:[%s8 + $0x98] sm:$0xff]
        %v1915 = vld [vmem:[%s8 + $0xa0] sm:$0xff]
        %v1916 = vld [vmem:[%s8 + $0xa8] sm:$0xff]
        %v1917 = vld [vmem:[%s8 + $0xb0] sm:$0xff]
        %v1918 = vld [vmem:[%s8 + $0xb8] sm:$0xff]
        %v1919 = vld [vmem:[%s8 + $0xc0] sm:$0xff]
        %v1920 = vld [vmem:[%s8 + $0xc8] sm:$0xff]
        %v1921 = vld [vmem:[%s8 + $0xd0] sm:$0xff]
        %v1922 = vld [vmem:[%s8 + $0xd8] sm:$0xff]
        %v1923 = vld [vmem:[%s8 + $0xe0] sm:$0xff]
        %v1924 = vld [vmem:[%s8 + $0xe8] sm:$0xff]
        %v1925 = vld [vmem:[%s8 + $0xf0] sm:$0xff]
        %v1926 = vld [vmem:[%s8 + $0xf8] sm:$0xff]
        %v1927 = vld [vmem:[%s8 + $0x100] sm:$0xff]
        %v1928 = vld [vmem:[%s8 + $0x108] sm:$0xff]
        %v1929 = vld [vmem:[%s8 + $0x110] sm:$0xff]
        %v1930 = vld [vmem:[%s8 + $0x118] sm:$0xff]
        %v1931 = vld [vmem:[%s8 + $0x120] sm:$0xff]
        %v1932 = vld [vmem:[%s8 + $0x128] sm:$0xf]
        %v1934 = vsel %vm809, %v1880, 0
        %v1937 = vsel %vm813, %v1932, 0
        %1939 = vmatprep.subr.mxu0 0.0
        %1940 = vmatpush1.msra.mxu0 %v1895
        %1941 = vmatprep.subr.mxu0 0.0
        %1942 = vmatpush1.msra.mxu0 %v1896
        %1943 = vmatprep.subr.mxu0 0.0
        %1944 = vmatpush1.msra.mxu0 %v1897
        %1945 = vmatprep.subr.mxu0 0.0
        %1946 = vmatpush1.msra.mxu0 %v1898
        %1947 = vmatprep.subr.mxu0 0.0
        %1948 = vmatpush1.msra.mxu0 %v1899
        %1949 = vmatprep.subr.mxu0 0.0
        %1950 = vmatpush1.msra.mxu0 %v1900
        %1951 = vmatprep.subr.mxu0 0.0
        %1952 = vmatpush1.msra.mxu0 %v1901
        %1953 = vmatprep.subr.mxu0 0.0
        %1954 = vmatpush1.msra.mxu0 %v1902
        %1955 = vmatprep.subr.mxu0 0.0
        %1956 = vmatpush1.msra.mxu0 %v1903
        %1957 = vmatprep.subr.mxu0 0.0
        %1958 = vmatpush1.msra.mxu0 %v1904
        %1959 = vmatprep.subr.mxu0 0.0
        %1960 = vmatpush1.msra.mxu0 %v1905
        %1961 = vmatprep.subr.mxu0 0.0
        %1962 = vmatpush1.msra.mxu0 %v1906
        %1963 = vmatprep.subr.mxu0 0.0
        %1964 = vmatpush1.msra.mxu0 %v1907
        %1965 = vmatprep.subr.mxu0 0.0
        %1966 = vmatpush1.msra.mxu0 %v1908
        %1967 = vmatprep.subr.mxu0 0.0
        %1968 = vmatpush1.msra.mxu0 %v1909
        %1969 = vmatprep.subr.mxu0 0.0
        %1970 = vmatpush1.msra.mxu0 %v1910
        %1971 = vmatprep.subr.mxu0 0.0
        %1972 = vmatpush1.msra.mxu0 %v1911
        %1973 = vmatprep.subr.mxu0 0.0
        %1974 = vmatpush1.msra.mxu0 %v1912
        %1975 = vmatprep.subr.mxu0 0.0
        %1976 = vmatpush1.msra.mxu0 %v1913
        %1977 = vmatprep.subr.mxu0 0.0
        %1978 = vmatpush1.msra.mxu0 %v1914
        %1979 = vmatprep.subr.mxu0 0.0
        %1980 = vmatpush1.msra.mxu0 %v1915
        %1981 = vmatprep.subr.mxu0 0.0
        %1982 = vmatpush1.msra.mxu0 %v1916
        %1983 = vmatprep.subr.mxu0 0.0
        %1984 = vmatpush1.msra.mxu0 %v1917
        %1985 = vmatprep.subr.mxu0 0.0
        %1986 = vmatpush1.msra.mxu0 %v1918
        %1987 = vmatprep.subr.mxu0 0.0
        %1988 = vmatpush1.msra.mxu0 %v1919
        %1989 = vmatprep.subr.mxu0 0.0
        %1990 = vmatpush1.msra.mxu0 %v1920
        %1991 = vmatprep.subr.mxu0 0.0
        %1992 = vmatpush1.msra.mxu0 %v1921
        %1993 = vmatprep.subr.mxu0 0.0
        %1994 = vmatpush1.msra.mxu0 %v1922
        %1995 = vmatprep.subr.mxu0 0.0
        %1996 = vmatpush1.msra.mxu0 %v1923
        %1997 = vmatprep.subr.mxu0 0.0
        %1998 = vmatpush1.msra.mxu0 %v1924
        %1999 = vmatprep.subr.mxu0 0.0
        %2000 = vmatpush1.msra.mxu0 %v1925
        %2001 = vmatprep.subr.mxu0 0.0
        %2002 = vmatpush1.msra.mxu0 %v1926
        %2003 = vmatprep.mubr.f32.mxu0 %v1879
        %2004 = vmatmul.mubr.f32.gmra.mrb[0].mxu0 %v1878
        %v2005 = vpop.f32.mrb[0].mxu0
        %v2006 = vadd.f32 0.0, %v2005
        %v2007 = vpop.f32.mrb[0].mxu0
        %2008 = vdwg.mxu0
        %2009 = vmatprep.subr.mxu0 0.0
        %2010 = vmatpush1.msra.mxu0 %v1927
        %2011 = vmatprep.subr.mxu0 0.0
        %2012 = vmatpush1.msra.mxu0 %v1928
        %2013 = vmatprep.subr.mxu0 0.0
        %2014 = vmatpush1.msra.mxu0 %v1929
        %2015 = vmatprep.subr.mxu0 0.0
        %2016 = vmatpush1.msra.mxu0 %v1930
        %2017 = vmatprep.subr.mxu0 0.0
        %2018 = vmatpush1.msra.mxu0 %v1931
        %2019 = vmatprep.subr.mxu0 0.0
        %2020 = vmatpush1.msra.mxu0 %v1937
        %2021 = vmatprep.subr.mxu0 0.0
        %2022 = vmatpush1.msra.mxu0 0.0
        %2023 = vmatprep.subr.mxu0 0.0
        %2024 = vmatpush1.msra.mxu0 0.0
        %2025 = vmatprep.subr.mxu0 0.0
        %2026 = vmatpush1.msra.mxu0 0.0
        %2027 = vmatprep.subr.mxu0 0.0
        %2028 = vmatpush1.msra.mxu0 0.0
        %2029 = vmatprep.subr.mxu0 0.0
        %2030 = vmatpush1.msra.mxu0 0.0
        %2031 = vmatprep.subr.mxu0 0.0
        %2032 = vmatpush1.msra.mxu0 0.0
        %2033 = vmatprep.subr.mxu0 0.0
        %2034 = vmatpush1.msra.mxu0 0.0
        %2035 = vmatprep.subr.mxu0 0.0
        %2036 = vmatpush1.msra.mxu0 0.0
        %2037 = vmatprep.subr.mxu0 0.0
        %2038 = vmatpush1.msra.mxu0 0.0
        %2039 = vmatprep.subr.mxu0 0.0
        %2040 = vmatpush1.msra.mxu0 0.0
        %2041 = vmatprep.subr.mxu0 0.0
        %2042 = vmatpush1.msra.mxu0 0.0
        %2043 = vmatprep.subr.mxu0 0.0
        %2044 = vmatpush1.msra.mxu0 0.0
        %2045 = vmatprep.subr.mxu0 0.0
        %2046 = vmatpush1.msra.mxu0 0.0
        %2047 = vmatprep.subr.mxu0 0.0
        %2048 = vmatpush1.msra.mxu0 0.0
        %2049 = vmatprep.subr.mxu0 0.0
        %2050 = vmatpush1.msra.mxu0 0.0
        %2051 = vmatprep.subr.mxu0 0.0
        %2052 = vmatpush1.msra.mxu0 0.0
        %2053 = vmatprep.subr.mxu0 0.0
        %2054 = vmatpush1.msra.mxu0 0.0
        %2055 = vmatprep.subr.mxu0 0.0
        %2056 = vmatpush1.msra.mxu0 0.0
        %2057 = vmatprep.subr.mxu0 0.0
        %2058 = vmatpush1.msra.mxu0 0.0
        %2059 = vmatprep.subr.mxu0 0.0
        %2060 = vmatpush1.msra.mxu0 0.0
        %2061 = vmatprep.subr.mxu0 0.0
        %2062 = vmatpush1.msra.mxu0 0.0
        %2063 = vmatprep.subr.mxu0 0.0
        %2064 = vmatpush1.msra.mxu0 0.0
        %2065 = vmatprep.subr.mxu0 0.0
        %2066 = vmatpush1.msra.mxu0 0.0
        %2067 = vmatprep.subr.mxu0 0.0
        %2068 = vmatpush1.msra.mxu0 0.0
        %2069 = vmatprep.subr.mxu0 0.0
        %2070 = vmatpush1.msra.mxu0 0.0
        %2071 = vmatprep.subr.mxu0 0.0
        %2072 = vmatpush1.msra.mxu0 0.0
        %2073 = vmatprep.mubr.f32.mxu0 0.0
        %2074 = vmatmul.mubr.f32.gmra.mrb[0].mxu0 %v1934
        %v2075 = vpop.f32.mrb[0].mxu0
        %v2076 = vadd.f32 %v2006, %v2075
        %v2077 = vpop.f32.mrb[0].mxu0
        %2078 = vdwg.mxu0
        %v2079 = vld [vmem:[%s9] sm:$0xff]
        %v2080 = vld [vmem:[%s9 + $0x8] sm:$0xff]
        %v2081 = vld [vmem:[%s9 + $0x10] sm:$0xff]
        %v2082 = vld [vmem:[%s9 + $0x18] sm:$0xff]
        %v2083 = vld [vmem:[%s9 + $0x20] sm:$0xff]
        %v2084 = vld [vmem:[%s9 + $0x28] sm:$0xff]
        %v2085 = vld [vmem:[%s9 + $0x30] sm:$0xff]
        %v2086 = vld [vmem:[%s9 + $0x38] sm:$0xff]
        %v2087 = vld [vmem:[%s9 + $0x40] sm:$0xff]
        %v2088 = vld [vmem:[%s9 + $0x48] sm:$0xff]
        %v2089 = vld [vmem:[%s9 + $0x50] sm:$0xff]
        %v2090 = vld [vmem:[%s9 + $0x58] sm:$0xff]
        %v2091 = vld [vmem:[%s9 + $0x60] sm:$0xff]
        %v2092 = vld [vmem:[%s9 + $0x68] sm:$0xff]
        %v2093 = vld [vmem:[%s9 + $0x70] sm:$0xff]
        %v2094 = vld [vmem:[%s9 + $0x78] sm:$0xff]
        %v2095 = vld [vmem:[%s9 + $0x80] sm:$0xff]
        %v2096 = vld [vmem:[%s9 + $0x88] sm:$0xff]
        %v2097 = vld [vmem:[%s9 + $0x90] sm:$0xff]
        %v2098 = vld [vmem:[%s9 + $0x98] sm:$0xff]
        %v2099 = vld [vmem:[%s9 + $0xa0] sm:$0xff]
        %v2100 = vld [vmem:[%s9 + $0xa8] sm:$0xff]
        %v2101 = vld [vmem:[%s9 + $0xb0] sm:$0xff]
        %v2102 = vld [vmem:[%s9 + $0xb8] sm:$0xff]
        %v2103 = vld [vmem:[%s9 + $0xc0] sm:$0xff]
        %v2104 = vld [vmem:[%s9 + $0xc8] sm:$0xff]
        %v2105 = vld [vmem:[%s9 + $0xd0] sm:$0xff]
        %v2106 = vld [vmem:[%s9 + $0xd8] sm:$0xff]
        %v2107 = vld [vmem:[%s9 + $0xe0] sm:$0xff]
        %v2108 = vld [vmem:[%s9 + $0xe8] sm:$0xff]
        %v2109 = vld [vmem:[%s9 + $0xf0] sm:$0xff]
        %v2110 = vld [vmem:[%s9 + $0xf8] sm:$0xff]
        %v2111 = vld [vmem:[%s9 + $0x100] sm:$0xff]
        %v2112 = vld [vmem:[%s9 + $0x108] sm:$0xff]
        %v2113 = vld [vmem:[%s9 + $0x110] sm:$0xff]
        %v2114 = vld [vmem:[%s9 + $0x118] sm:$0xff]
        %v2115 = vld [vmem:[%s9 + $0x120] sm:$0xff]
        %v2116 = vld [vmem:[%s9 + $0x128] sm:$0xf]
        %v2118 = vsel %vm809, %v732, 0
        %v2121 = vsel %vm813, %v2116, 0
        %2123 = vmatprep.subr.mxu0 0.0
        %2124 = vmatpush1.msra.mxu0 %v2079
        %2125 = vmatprep.subr.mxu0 0.0
        %2126 = vmatpush1.msra.mxu0 %v2080
        %2127 = vmatprep.subr.mxu0 0.0
        %2128 = vmatpush1.msra.mxu0 %v2081
        %2129 = vmatprep.subr.mxu0 0.0
        %2130 = vmatpush1.msra.mxu0 %v2082
        %2131 = vmatprep.subr.mxu0 0.0
        %2132 = vmatpush1.msra.mxu0 %v2083
        %2133 = vmatprep.subr.mxu0 0.0
        %2134 = vmatpush1.msra.mxu0 %v2084
        %2135 = vmatprep.subr.mxu0 0.0
        %2136 = vmatpush1.msra.mxu0 %v2085
        %2137 = vmatprep.subr.mxu0 0.0
        %2138 = vmatpush1.msra.mxu0 %v2086
        %2139 = vmatprep.subr.mxu0 0.0
        %2140 = vmatpush1.msra.mxu0 %v2087
        %2141 = vmatprep.subr.mxu0 0.0
        %2142 = vmatpush1.msra.mxu0 %v2088
        %2143 = vmatprep.subr.mxu0 0.0
        %2144 = vmatpush1.msra.mxu0 %v2089
        %2145 = vmatprep.subr.mxu0 0.0
        %2146 = vmatpush1.msra.mxu0 %v2090
        %2147 = vmatprep.subr.mxu0 0.0
        %2148 = vmatpush1.msra.mxu0 %v2091
        %2149 = vmatprep.subr.mxu0 0.0
        %2150 = vmatpush1.msra.mxu0 %v2092
        %2151 = vmatprep.subr.mxu0 0.0
        %2152 = vmatpush1.msra.mxu0 %v2093
        %2153 = vmatprep.subr.mxu0 0.0
        %2154 = vmatpush1.msra.mxu0 %v2094
        %2155 = vmatprep.subr.mxu0 0.0
        %2156 = vmatpush1.msra.mxu0 %v2095
        %2157 = vmatprep.subr.mxu0 0.0
        %2158 = vmatpush1.msra.mxu0 %v2096
        %2159 = vmatprep.subr.mxu0 0.0
        %2160 = vmatpush1.msra.mxu0 %v2097
        %2161 = vmatprep.subr.mxu0 0.0
        %2162 = vmatpush1.msra.mxu0 %v2098
        %2163 = vmatprep.subr.mxu0 0.0
        %2164 = vmatpush1.msra.mxu0 %v2099
        %2165 = vmatprep.subr.mxu0 0.0
        %2166 = vmatpush1.msra.mxu0 %v2100
        %2167 = vmatprep.subr.mxu0 0.0
        %2168 = vmatpush1.msra.mxu0 %v2101
        %2169 = vmatprep.subr.mxu0 0.0
        %2170 = vmatpush1.msra.mxu0 %v2102
        %2171 = vmatprep.subr.mxu0 0.0
        %2172 = vmatpush1.msra.mxu0 %v2103
        %2173 = vmatprep.subr.mxu0 0.0
        %2174 = vmatpush1.msra.mxu0 %v2104
        %2175 = vmatprep.subr.mxu0 0.0
        %2176 = vmatpush1.msra.mxu0 %v2105
        %2177 = vmatprep.subr.mxu0 0.0
        %2178 = vmatpush1.msra.mxu0 %v2106
        %2179 = vmatprep.subr.mxu0 0.0
        %2180 = vmatpush1.msra.mxu0 %v2107
        %2181 = vmatprep.subr.mxu0 0.0
        %2182 = vmatpush1.msra.mxu0 %v2108
        %2183 = vmatprep.subr.mxu0 0.0
        %2184 = vmatpush1.msra.mxu0 %v2109
        %2185 = vmatprep.subr.mxu0 0.0
        %2186 = vmatpush1.msra.mxu0 %v2110
        %2187 = vmatprep.mubr.f32.mxu0 %v731
        %2188 = vmatmul.mubr.f32.gmra.mrb[0].mxu0 %v730
        %v2189 = vpop.f32.mrb[0].mxu0
        %v2190 = vadd.f32 0.0, %v2189
        %v2191 = vpop.f32.mrb[0].mxu0
        %2192 = vdwg.mxu0
        %2193 = vmatprep.subr.mxu0 0.0
        %2194 = vmatpush1.msra.mxu0 %v2111
        %2195 = vmatprep.subr.mxu0 0.0
        %2196 = vmatpush1.msra.mxu0 %v2112
        %2197 = vmatprep.subr.mxu0 0.0
        %2198 = vmatpush1.msra.mxu0 %v2113
        %2199 = vmatprep.subr.mxu0 0.0
        %2200 = vmatpush1.msra.mxu0 %v2114
        %2201 = vmatprep.subr.mxu0 0.0
        %2202 = vmatpush1.msra.mxu0 %v2115
        %2203 = vmatprep.subr.mxu0 0.0
        %2204 = vmatpush1.msra.mxu0 %v2121
        %2205 = vmatprep.subr.mxu0 0.0
        %2206 = vmatpush1.msra.mxu0 0.0
        %2207 = vmatprep.subr.mxu0 0.0
        %2208 = vmatpush1.msra.mxu0 0.0
        %2209 = vmatprep.subr.mxu0 0.0
        %2210 = vmatpush1.msra.mxu0 0.0
        %2211 = vmatprep.subr.mxu0 0.0
        %2212 = vmatpush1.msra.mxu0 0.0
        %2213 = vmatprep.subr.mxu0 0.0
        %2214 = vmatpush1.msra.mxu0 0.0
        %2215 = vmatprep.subr.mxu0 0.0
        %2216 = vmatpush1.msra.mxu0 0.0
        %2217 = vmatprep.subr.mxu0 0.0
        %2218 = vmatpush1.msra.mxu0 0.0
        %2219 = vmatprep.subr.mxu0 0.0
        %2220 = vmatpush1.msra.mxu0 0.0
        %2221 = vmatprep.subr.mxu0 0.0
        %2222 = vmatpush1.msra.mxu0 0.0
        %2223 = vmatprep.subr.mxu0 0.0
        %2224 = vmatpush1.msra.mxu0 0.0
        %2225 = vmatprep.subr.mxu0 0.0
        %2226 = vmatpush1.msra.mxu0 0.0
        %2227 = vmatprep.subr.mxu0 0.0
        %2228 = vmatpush1.msra.mxu0 0.0
        %2229 = vmatprep.subr.mxu0 0.0
        %2230 = vmatpush1.msra.mxu0 0.0
        %2231 = vmatprep.subr.mxu0 0.0
        %2232 = vmatpush1.msra.mxu0 0.0
        %2233 = vmatprep.subr.mxu0 0.0
        %2234 = vmatpush1.msra.mxu0 0.0
        %2235 = vmatprep.subr.mxu0 0.0
        %2236 = vmatpush1.msra.mxu0 0.0
        %2237 = vmatprep.subr.mxu0 0.0
        %2238 = vmatpush1.msra.mxu0 0.0
        %2239 = vmatprep.subr.mxu0 0.0
        %2240 = vmatpush1.msra.mxu0 0.0
        %2241 = vmatprep.subr.mxu0 0.0
        %2242 = vmatpush1.msra.mxu0 0.0
        %2243 = vmatprep.subr.mxu0 0.0
        %2244 = vmatpush1.msra.mxu0 0.0
        %2245 = vmatprep.subr.mxu0 0.0
        %2246 = vmatpush1.msra.mxu0 0.0
        %2247 = vmatprep.subr.mxu0 0.0
        %2248 = vmatpush1.msra.mxu0 0.0
        %2249 = vmatprep.subr.mxu0 0.0
        %2250 = vmatpush1.msra.mxu0 0.0
        %2251 = vmatprep.subr.mxu0 0.0
        %2252 = vmatpush1.msra.mxu0 0.0
        %2253 = vmatprep.subr.mxu0 0.0
        %2254 = vmatpush1.msra.mxu0 0.0
        %2255 = vmatprep.subr.mxu0 0.0
        %2256 = vmatpush1.msra.mxu0 0.0
        %2257 = vmatprep.mubr.f32.mxu0 0.0
        %2258 = vmatmul.mubr.f32.gmra.mrb[0].mxu0 %v2118
        %v2259 = vpop.f32.mrb[0].mxu0
        %v2260 = vadd.f32 %v2190, %v2259
        %v2261 = vpop.f32.mrb[0].mxu0
        %2262 = vdwg.mxu0
        %v2263 = vld [vmem:[%s726] sm:$0xff]
        %v2264 = vld [vmem:[%s10] sm:$0xff]
        %v2265 = vld [vmem:[%s10 + $0x8] sm:$0xff]
        %v2266 = vld [vmem:[%s10 + $0x10] sm:$0xff]
        %v2267 = vld [vmem:[%s10 + $0x18] sm:$0xff]
        %v2268 = vld [vmem:[%s10 + $0x20] sm:$0xff]
        %v2269 = vld [vmem:[%s10 + $0x28] sm:$0xff]
        %v2270 = vld [vmem:[%s10 + $0x30] sm:$0xff]
        %v2271 = vld [vmem:[%s10 + $0x38] sm:$0xff]
        %v2272 = vld [vmem:[%s10 + $0x40] sm:$0xff]
        %v2273 = vld [vmem:[%s10 + $0x48] sm:$0xff]
        %v2274 = vld [vmem:[%s10 + $0x50] sm:$0xff]
        %v2275 = vld [vmem:[%s10 + $0x58] sm:$0xff]
        %v2276 = vld [vmem:[%s10 + $0x60] sm:$0xff]
        %v2277 = vld [vmem:[%s10 + $0x68] sm:$0xff]
        %v2278 = vld [vmem:[%s10 + $0x70] sm:$0xff]
        %v2279 = vld [vmem:[%s10 + $0x78] sm:$0xff]
        %v2280 = vld [vmem:[%s10 + $0x80] sm:$0xff]
        %v2281 = vld [vmem:[%s10 + $0x88] sm:$0xff]
        %v2282 = vld [vmem:[%s10 + $0x90] sm:$0xff]
        %v2283 = vld [vmem:[%s10 + $0x98] sm:$0xff]
        %v2284 = vld [vmem:[%s10 + $0xa0] sm:$0xff]
        %v2285 = vld [vmem:[%s10 + $0xa8] sm:$0xff]
        %v2286 = vld [vmem:[%s10 + $0xb0] sm:$0xff]
        %v2287 = vld [vmem:[%s10 + $0xb8] sm:$0xff]
        %v2288 = vld [vmem:[%s11] sm:$0x7]
        %v2289 = vld [vmem:[%s12] sm:$0x7]
        %vm2290 = vcmp.eq.f32.partialorder %v2263, 0.0
        %v2292 = vsel %vm993, %v2076, 0
        %v2295 = vsel %vm993, %v2260, 0
        %2297 = vmatprep.subr.mxu0 0.0
        %2298 = vmatpush1.xpose.msra.mxu0 %v2295
        %2299 = vmatprep.subr.mxu0 0.0
        %2300 = vmatpush1.xpose.msra.mxu0 0.0
        %2301 = vmatprep.subr.mxu0 0.0
        %2302 = vmatpush1.xpose.msra.mxu0 0.0
        %2303 = vmatprep.subr.mxu0 0.0
        %2304 = vmatpush1.xpose.msra.mxu0 0.0
        %2305 = vmatprep.subr.mxu0 0.0
        %2306 = vmatpush1.xpose.msra.mxu0 0.0
        %2307 = vmatprep.subr.mxu0 0.0
        %2308 = vmatpush1.xpose.msra.mxu0 0.0
        %2309 = vmatprep.subr.mxu0 0.0
        %2310 = vmatpush1.xpose.msra.mxu0 0.0
        %2311 = vmatprep.subr.mxu0 0.0
        %2312 = vmatpush1.xpose.msra.mxu0 0.0
        %2313 = vmatprep.subr.mxu0 0.0
        %2314 = vmatpush1.xpose.msra.mxu0 0.0
        %2315 = vmatprep.subr.mxu0 0.0
        %2316 = vmatpush1.xpose.msra.mxu0 0.0
        %2317 = vmatprep.subr.mxu0 0.0
        %2318 = vmatpush1.xpose.msra.mxu0 0.0
        %2319 = vmatprep.subr.mxu0 0.0
        %2320 = vmatpush1.xpose.msra.mxu0 0.0
        %2321 = vmatprep.subr.mxu0 0.0
        %2322 = vmatpush1.xpose.msra.mxu0 0.0
        %2323 = vmatprep.subr.mxu0 0.0
        %2324 = vmatpush1.xpose.msra.mxu0 0.0
        %2325 = vmatprep.subr.mxu0 0.0
        %2326 = vmatpush1.xpose.msra.mxu0 0.0
        %2327 = vmatprep.subr.mxu0 0.0
        %2328 = vmatpush1.xpose.msra.mxu0 0.0
        %2329 = vmatprep.subr.mxu0 0.0
        %2330 = vmatpush1.xpose.msra.mxu0 0.0
        %2331 = vmatprep.subr.mxu0 0.0
        %2332 = vmatpush1.xpose.msra.mxu0 0.0
        %2333 = vmatprep.subr.mxu0 0.0
        %2334 = vmatpush1.xpose.msra.mxu0 0.0
        %2335 = vmatprep.subr.mxu0 0.0
        %2336 = vmatpush1.xpose.msra.mxu0 0.0
        %2337 = vmatprep.subr.mxu0 0.0
        %2338 = vmatpush1.xpose.msra.mxu0 0.0
        %2339 = vmatprep.subr.mxu0 0.0
        %2340 = vmatpush1.xpose.msra.mxu0 0.0
        %2341 = vmatprep.subr.mxu0 0.0
        %2342 = vmatpush1.xpose.msra.mxu0 0.0
        %2343 = vmatprep.subr.mxu0 0.0
        %2344 = vmatpush1.xpose.msra.mxu0 0.0
        %2345 = vmatprep.subr.mxu0 0.0
        %2346 = vmatpush1.xpose.msra.mxu0 0.0
        %2347 = vmatprep.subr.mxu0 0.0
        %2348 = vmatpush1.xpose.msra.mxu0 0.0
        %2349 = vmatprep.subr.mxu0 0.0
        %2350 = vmatpush1.xpose.msra.mxu0 0.0
        %2351 = vmatprep.subr.mxu0 0.0
        %2352 = vmatpush1.xpose.msra.mxu0 0.0
        %2353 = vmatprep.subr.mxu0 0.0
        %2354 = vmatpush1.xpose.msra.mxu0 0.0
        %2355 = vmatprep.subr.mxu0 0.0
        %2356 = vmatpush1.xpose.msra.mxu0 0.0
        %2357 = vmatprep.subr.mxu0 0.0
        %2358 = vmatpush1.xpose.msra.mxu0 0.0
        %2359 = vmatprep.subr.mxu0 0.0
        %2360 = vmatpush1.xpose.msra.mxu0 0.0
        %2361 = vmatprep.mubr.f32.mxu0 0.0
        %2362 = vmatmul.mubr.f32.gmra.mrb[0].mxu0 %v2292
        %v2363 = vpop.f32.mrb[0].mxu0
        %v2364 = vadd.f32 0.0, %v2363
        %v2365 = vpop.f32.mrb[0].mxu0
        %2366 = vdwg.mxu0
        %v2367 = vmul.f32 %v2364, 0.25
        %v2368 = vsel %vm2290, -10000000.0, %v2367
        %v2369 = vsel %vm1070, %v2368, -inf
        %2370 = vmax.xlane.f32.xlu0 %v2369
        %v2371 = vpop.xlane.xlu0 %2370
        %v2372 = vsub.f32 %v2368, %v2371
        %v2373 = vmul.f32 %v2372, 1.442695
        %v2374 = vpow.pop %v2373
        %v2375 = vsel %vm1070, %v2374, 0.0
        %2376 = vadd.xlane.f32.xlu0 %v2375
        %v2377 = vpop.xlane.xlu0 %2376
        %v2378 = vrcp.pop %v2377
        %v2379 = vmul.f32 %v2374, %v2378
        %2380 = vrot.lane.b32.xlu0 %v2260, 64
        %v2381 = vpop.permute.xlu0 %2380
        %v2384 = vsel %vm1070, %v2379, 0
        %2386 = vmatprep.subr.mxu0 0.0
        %2387 = vmatpush1.msra.mxu0 %v2381
        %2388 = vmatprep.subr.mxu0 0.0
        %2389 = vmatpush1.msra.mxu0 0.0
        %2390 = vmatprep.subr.mxu0 0.0
        %2391 = vmatpush1.msra.mxu0 0.0
        %2392 = vmatprep.subr.mxu0 0.0
        %2393 = vmatpush1.msra.mxu0 0.0
        %2394 = vmatprep.subr.mxu0 0.0
        %2395 = vmatpush1.msra.mxu0 0.0
        %2396 = vmatprep.subr.mxu0 0.0
        %2397 = vmatpush1.msra.mxu0 0.0
        %2398 = vmatprep.subr.mxu0 0.0
        %2399 = vmatpush1.msra.mxu0 0.0
        %2400 = vmatprep.subr.mxu0 0.0
        %2401 = vmatpush1.msra.mxu0 0.0
        %2402 = vmatprep.subr.mxu0 0.0
        %2403 = vmatpush1.msra.mxu0 0.0
        %2404 = vmatprep.subr.mxu0 0.0
        %2405 = vmatpush1.msra.mxu0 0.0
        %2406 = vmatprep.subr.mxu0 0.0
        %2407 = vmatpush1.msra.mxu0 0.0
        %2408 = vmatprep.subr.mxu0 0.0
        %2409 = vmatpush1.msra.mxu0 0.0
        %2410 = vmatprep.subr.mxu0 0.0
        %2411 = vmatpush1.msra.mxu0 0.0
        %2412 = vmatprep.subr.mxu0 0.0
        %2413 = vmatpush1.msra.mxu0 0.0
        %2414 = vmatprep.subr.mxu0 0.0
        %2415 = vmatpush1.msra.mxu0 0.0
        %2416 = vmatprep.subr.mxu0 0.0
        %2417 = vmatpush1.msra.mxu0 0.0
        %2418 = vmatprep.subr.mxu0 0.0
        %2419 = vmatpush1.msra.mxu0 0.0
        %2420 = vmatprep.subr.mxu0 0.0
        %2421 = vmatpush1.msra.mxu0 0.0
        %2422 = vmatprep.subr.mxu0 0.0
        %2423 = vmatpush1.msra.mxu0 0.0
        %2424 = vmatprep.subr.mxu0 0.0
        %2425 = vmatpush1.msra.mxu0 0.0
        %2426 = vmatprep.subr.mxu0 0.0
        %2427 = vmatpush1.msra.mxu0 0.0
        %2428 = vmatprep.subr.mxu0 0.0
        %2429 = vmatpush1.msra.mxu0 0.0
        %2430 = vmatprep.subr.mxu0 0.0
        %2431 = vmatpush1.msra.mxu0 0.0
        %2432 = vmatprep.subr.mxu0 0.0
        %2433 = vmatpush1.msra.mxu0 0.0
        %2434 = vmatprep.subr.mxu0 0.0
        %2435 = vmatpush1.msra.mxu0 0.0
        %2436 = vmatprep.subr.mxu0 0.0
        %2437 = vmatpush1.msra.mxu0 0.0
        %2438 = vmatprep.subr.mxu0 0.0
        %2439 = vmatpush1.msra.mxu0 0.0
        %2440 = vmatprep.subr.mxu0 0.0
        %2441 = vmatpush1.msra.mxu0 0.0
        %2442 = vmatprep.subr.mxu0 0.0
        %2443 = vmatpush1.msra.mxu0 0.0
        %2444 = vmatprep.subr.mxu0 0.0
        %2445 = vmatpush1.msra.mxu0 0.0
        %2446 = vmatprep.subr.mxu0 0.0
        %2447 = vmatpush1.msra.mxu0 0.0
        %2448 = vmatprep.subr.mxu0 0.0
        %2449 = vmatpush1.msra.mxu0 0.0
        %2450 = vmatprep.mubr.f32.mxu0 0.0
        %2451 = vmatmul.mubr.f32.gmra.mrb[0].mxu0 %v2384
        %v2452 = vpop.f32.mrb[0].mxu0
        %v2453 = vadd.f32 0.0, %v2452
        %v2454 = vpop.f32.mrb[0].mxu0
        %2455 = vdwg.mxu0
        %2456 = vrot.lane.b32.xlu0 %v2076, 112
        %v2457 = vpop.permute.xlu0 %2456
        %2458 = vrot.lane.b32.xlu0 %v2260, 112
        %v2459 = vpop.permute.xlu0 %2458
        %v2460 = vsel %vm993, %v2457, 0
        %v2462 = vsel %vm993, %v2459, 0
        %2464 = vmatprep.subr.mxu0 0.0
        %2465 = vmatpush1.xpose.msra.mxu0 %v2462
        %2466 = vmatprep.subr.mxu0 0.0
        %2467 = vmatpush1.xpose.msra.mxu0 0.0
        %2468 = vmatprep.subr.mxu0 0.0
        %2469 = vmatpush1.xpose.msra.mxu0 0.0
        %2470 = vmatprep.subr.mxu0 0.0
        %2471 = vmatpush1.xpose.msra.mxu0 0.0
        %2472 = vmatprep.subr.mxu0 0.0
        %2473 = vmatpush1.xpose.msra.mxu0 0.0
        %2474 = vmatprep.subr.mxu0 0.0
        %2475 = vmatpush1.xpose.msra.mxu0 0.0
        %2476 = vmatprep.subr.mxu0 0.0
        %2477 = vmatpush1.xpose.msra.mxu0 0.0
        %2478 = vmatprep.subr.mxu0 0.0
        %2479 = vmatpush1.xpose.msra.mxu0 0.0
        %2480 = vmatprep.subr.mxu0 0.0
        %2481 = vmatpush1.xpose.msra.mxu0 0.0
        %2482 = vmatprep.subr.mxu0 0.0
        %2483 = vmatpush1.xpose.msra.mxu0 0.0
        %2484 = vmatprep.subr.mxu0 0.0
        %2485 = vmatpush1.xpose.msra.mxu0 0.0
        %2486 = vmatprep.subr.mxu0 0.0
        %2487 = vmatpush1.xpose.msra.mxu0 0.0
        %2488 = vmatprep.subr.mxu0 0.0
        %2489 = vmatpush1.xpose.msra.mxu0 0.0
        %2490 = vmatprep.subr.mxu0 0.0
        %2491 = vmatpush1.xpose.msra.mxu0 0.0
        %2492 = vmatprep.subr.mxu0 0.0
        %2493 = vmatpush1.xpose.msra.mxu0 0.0
        %2494 = vmatprep.subr.mxu0 0.0
        %2495 = vmatpush1.xpose.msra.mxu0 0.0
        %2496 = vmatprep.subr.mxu0 0.0
        %2497 = vmatpush1.xpose.msra.mxu0 0.0
        %2498 = vmatprep.subr.mxu0 0.0
        %2499 = vmatpush1.xpose.msra.mxu0 0.0
        %2500 = vmatprep.subr.mxu0 0.0
        %2501 = vmatpush1.xpose.msra.mxu0 0.0
        %2502 = vmatprep.subr.mxu0 0.0
        %2503 = vmatpush1.xpose.msra.mxu0 0.0
        %2504 = vmatprep.subr.mxu0 0.0
        %2505 = vmatpush1.xpose.msra.mxu0 0.0
        %2506 = vmatprep.subr.mxu0 0.0
        %2507 = vmatpush1.xpose.msra.mxu0 0.0
        %2508 = vmatprep.subr.mxu0 0.0
        %2509 = vmatpush1.xpose.msra.mxu0 0.0
        %2510 = vmatprep.subr.mxu0 0.0
        %2511 = vmatpush1.xpose.msra.mxu0 0.0
        %2512 = vmatprep.subr.mxu0 0.0
        %2513 = vmatpush1.xpose.msra.mxu0 0.0
        %2514 = vmatprep.subr.mxu0 0.0
        %2515 = vmatpush1.xpose.msra.mxu0 0.0
        %2516 = vmatprep.subr.mxu0 0.0
        %2517 = vmatpush1.xpose.msra.mxu0 0.0
        %2518 = vmatprep.subr.mxu0 0.0
        %2519 = vmatpush1.xpose.msra.mxu0 0.0
        %2520 = vmatprep.subr.mxu0 0.0
        %2521 = vmatpush1.xpose.msra.mxu0 0.0
        %2522 = vmatprep.subr.mxu0 0.0
        %2523 = vmatpush1.xpose.msra.mxu0 0.0
        %2524 = vmatprep.subr.mxu0 0.0
        %2525 = vmatpush1.xpose.msra.mxu0 0.0
        %2526 = vmatprep.subr.mxu0 0.0
        %2527 = vmatpush1.xpose.msra.mxu0 0.0
        %2528 = vmatprep.mubr.f32.mxu0 0.0
        %2529 = vmatmul.mubr.f32.gmra.mrb[0].mxu0 %v2460
        %v2530 = vpop.f32.mrb[0].mxu0
        %v2531 = vadd.f32 0.0, %v2530
        %v2532 = vpop.f32.mrb[0].mxu0
        %2533 = vdwg.mxu0
        %v2534 = vmul.f32 %v2531, 0.25
        %v2535 = vsel %vm2290, -10000000.0, %v2534
        %v2536 = vsel %vm1070, %v2535, -inf
        %2537 = vmax.xlane.f32.xlu0 %v2536
        %v2538 = vpop.xlane.xlu0 %2537
        %v2539 = vsub.f32 %v2535, %v2538
        %v2540 = vmul.f32 %v2539, 1.442695
        %v2541 = vpow.pop %v2540
        %v2542 = vsel %vm1070, %v2541, 0.0
        %2543 = vadd.xlane.f32.xlu0 %v2542
        %v2544 = vpop.xlane.xlu0 %2543
        %v2545 = vrcp.pop %v2544
        %v2546 = vmul.f32 %v2541, %v2545
        %2547 = vrot.lane.b32.xlu0 %v2260, 48
        %v2548 = vpop.permute.xlu0 %2547
        %v2551 = vsel %vm1070, %v2546, 0
        %2553 = vmatprep.subr.mxu0 0.0
        %2554 = vmatpush1.msra.mxu0 %v2548
        %2555 = vmatprep.subr.mxu0 0.0
        %2556 = vmatpush1.msra.mxu0 0.0
        %2557 = vmatprep.subr.mxu0 0.0
        %2558 = vmatpush1.msra.mxu0 0.0
        %2559 = vmatprep.subr.mxu0 0.0
        %2560 = vmatpush1.msra.mxu0 0.0
        %2561 = vmatprep.subr.mxu0 0.0
        %2562 = vmatpush1.msra.mxu0 0.0
        %2563 = vmatprep.subr.mxu0 0.0
        %2564 = vmatpush1.msra.mxu0 0.0
        %2565 = vmatprep.subr.mxu0 0.0
        %2566 = vmatpush1.msra.mxu0 0.0
        %2567 = vmatprep.subr.mxu0 0.0
        %2568 = vmatpush1.msra.mxu0 0.0
        %2569 = vmatprep.subr.mxu0 0.0
        %2570 = vmatpush1.msra.mxu0 0.0
        %2571 = vmatprep.subr.mxu0 0.0
        %2572 = vmatpush1.msra.mxu0 0.0
        %2573 = vmatprep.subr.mxu0 0.0
        %2574 = vmatpush1.msra.mxu0 0.0
        %2575 = vmatprep.subr.mxu0 0.0
        %2576 = vmatpush1.msra.mxu0 0.0
        %2577 = vmatprep.subr.mxu0 0.0
        %2578 = vmatpush1.msra.mxu0 0.0
        %2579 = vmatprep.subr.mxu0 0.0
        %2580 = vmatpush1.msra.mxu0 0.0
        %2581 = vmatprep.subr.mxu0 0.0
        %2582 = vmatpush1.msra.mxu0 0.0
        %2583 = vmatprep.subr.mxu0 0.0
        %2584 = vmatpush1.msra.mxu0 0.0
        %2585 = vmatprep.subr.mxu0 0.0
        %2586 = vmatpush1.msra.mxu0 0.0
        %2587 = vmatprep.subr.mxu0 0.0
        %2588 = vmatpush1.msra.mxu0 0.0
        %2589 = vmatprep.subr.mxu0 0.0
        %2590 = vmatpush1.msra.mxu0 0.0
        %2591 = vmatprep.subr.mxu0 0.0
        %2592 = vmatpush1.msra.mxu0 0.0
        %2593 = vmatprep.subr.mxu0 0.0
        %2594 = vmatpush1.msra.mxu0 0.0
        %2595 = vmatprep.subr.mxu0 0.0
        %2596 = vmatpush1.msra.mxu0 0.0
        %2597 = vmatprep.subr.mxu0 0.0
        %2598 = vmatpush1.msra.mxu0 0.0
        %2599 = vmatprep.subr.mxu0 0.0
        %2600 = vmatpush1.msra.mxu0 0.0
        %2601 = vmatprep.subr.mxu0 0.0
        %2602 = vmatpush1.msra.mxu0 0.0
        %2603 = vmatprep.subr.mxu0 0.0
        %2604 = vmatpush1.msra.mxu0 0.0
        %2605 = vmatprep.subr.mxu0 0.0
        %2606 = vmatpush1.msra.mxu0 0.0
        %2607 = vmatprep.subr.mxu0 0.0
        %2608 = vmatpush1.msra.mxu0 0.0
        %2609 = vmatprep.subr.mxu0 0.0
        %2610 = vmatpush1.msra.mxu0 0.0
        %2611 = vmatprep.subr.mxu0 0.0
        %2612 = vmatpush1.msra.mxu0 0.0
        %2613 = vmatprep.subr.mxu0 0.0
        %2614 = vmatpush1.msra.mxu0 0.0
        %2615 = vmatprep.subr.mxu0 0.0
        %2616 = vmatpush1.msra.mxu0 0.0
        %2617 = vmatprep.mubr.f32.mxu0 0.0
        %2618 = vmatmul.mubr.f32.gmra.mrb[0].mxu0 %v2551
        %v2619 = vpop.f32.mrb[0].mxu0
        %v2620 = vadd.f32 0.0, %v2619
        %v2621 = vpop.f32.mrb[0].mxu0
        %2622 = vdwg.mxu0
        %2623 = vrot.lane.b32.xlu0 %v2076, 96
        %v2624 = vpop.permute.xlu0 %2623
        %2625 = vrot.lane.b32.xlu0 %v2260, 96
        %v2626 = vpop.permute.xlu0 %2625
        %v2627 = vsel %vm993, %v2624, 0
        %v2629 = vsel %vm993, %v2626, 0
        %2631 = vmatprep.subr.mxu0 0.0
        %2632 = vmatpush1.xpose.msra.mxu0 %v2629
        %2633 = vmatprep.subr.mxu0 0.0
        %2634 = vmatpush1.xpose.msra.mxu0 0.0
        %2635 = vmatprep.subr.mxu0 0.0
        %2636 = vmatpush1.xpose.msra.mxu0 0.0
        %2637 = vmatprep.subr.mxu0 0.0
        %2638 = vmatpush1.xpose.msra.mxu0 0.0
        %2639 = vmatprep.subr.mxu0 0.0
        %2640 = vmatpush1.xpose.msra.mxu0 0.0
        %2641 = vmatprep.subr.mxu0 0.0
        %2642 = vmatpush1.xpose.msra.mxu0 0.0
        %2643 = vmatprep.subr.mxu0 0.0
        %2644 = vmatpush1.xpose.msra.mxu0 0.0
        %2645 = vmatprep.subr.mxu0 0.0
        %2646 = vmatpush1.xpose.msra.mxu0 0.0
        %2647 = vmatprep.subr.mxu0 0.0
        %2648 = vmatpush1.xpose.msra.mxu0 0.0
        %2649 = vmatprep.subr.mxu0 0.0
        %2650 = vmatpush1.xpose.msra.mxu0 0.0
        %2651 = vmatprep.subr.mxu0 0.0
        %2652 = vmatpush1.xpose.msra.mxu0 0.0
        %2653 = vmatprep.subr.mxu0 0.0
        %2654 = vmatpush1.xpose.msra.mxu0 0.0
        %2655 = vmatprep.subr.mxu0 0.0
        %2656 = vmatpush1.xpose.msra.mxu0 0.0
        %2657 = vmatprep.subr.mxu0 0.0
        %2658 = vmatpush1.xpose.msra.mxu0 0.0
        %2659 = vmatprep.subr.mxu0 0.0
        %2660 = vmatpush1.xpose.msra.mxu0 0.0
        %2661 = vmatprep.subr.mxu0 0.0
        %2662 = vmatpush1.xpose.msra.mxu0 0.0
        %2663 = vmatprep.subr.mxu0 0.0
        %2664 = vmatpush1.xpose.msra.mxu0 0.0
        %2665 = vmatprep.subr.mxu0 0.0
        %2666 = vmatpush1.xpose.msra.mxu0 0.0
        %2667 = vmatprep.subr.mxu0 0.0
        %2668 = vmatpush1.xpose.msra.mxu0 0.0
        %2669 = vmatprep.subr.mxu0 0.0
        %2670 = vmatpush1.xpose.msra.mxu0 0.0
        %2671 = vmatprep.subr.mxu0 0.0
        %2672 = vmatpush1.xpose.msra.mxu0 0.0
        %2673 = vmatprep.subr.mxu0 0.0
        %2674 = vmatpush1.xpose.msra.mxu0 0.0
        %2675 = vmatprep.subr.mxu0 0.0
        %2676 = vmatpush1.xpose.msra.mxu0 0.0
        %2677 = vmatprep.subr.mxu0 0.0
        %2678 = vmatpush1.xpose.msra.mxu0 0.0
        %2679 = vmatprep.subr.mxu0 0.0
        %2680 = vmatpush1.xpose.msra.mxu0 0.0
        %2681 = vmatprep.subr.mxu0 0.0
        %2682 = vmatpush1.xpose.msra.mxu0 0.0
        %2683 = vmatprep.subr.mxu0 0.0
        %2684 = vmatpush1.xpose.msra.mxu0 0.0
        %2685 = vmatprep.subr.mxu0 0.0
        %2686 = vmatpush1.xpose.msra.mxu0 0.0
        %2687 = vmatprep.subr.mxu0 0.0
        %2688 = vmatpush1.xpose.msra.mxu0 0.0
        %2689 = vmatprep.subr.mxu0 0.0
        %2690 = vmatpush1.xpose.msra.mxu0 0.0
        %2691 = vmatprep.subr.mxu0 0.0
        %2692 = vmatpush1.xpose.msra.mxu0 0.0
        %2693 = vmatprep.subr.mxu0 0.0
        %2694 = vmatpush1.xpose.msra.mxu0 0.0
        %2695 = vmatprep.mubr.f32.mxu0 0.0
        %2696 = vmatmul.mubr.f32.gmra.mrb[0].mxu0 %v2627
        %v2697 = vpop.f32.mrb[0].mxu0
        %v2698 = vadd.f32 0.0, %v2697
        %v2699 = vpop.f32.mrb[0].mxu0
        %2700 = vdwg.mxu0
        %v2701 = vmul.f32 %v2698, 0.25
        %v2702 = vsel %vm2290, -10000000.0, %v2701
        %v2703 = vsel %vm1070, %v2702, -inf
        %2704 = vmax.xlane.f32.xlu0 %v2703
        %v2705 = vpop.xlane.xlu0 %2704
        %v2706 = vsub.f32 %v2702, %v2705
        %v2707 = vmul.f32 %v2706, 1.442695
        %v2708 = vpow.pop %v2707
        %v2709 = vsel %vm1070, %v2708, 0.0
        %2710 = vadd.xlane.f32.xlu0 %v2709
        %v2711 = vpop.xlane.xlu0 %2710
        %v2712 = vrcp.pop %v2711
        %v2713 = vmul.f32 %v2708, %v2712
        %2714 = vrot.lane.b32.xlu0 %v2260, 32
        %v2715 = vpop.permute.xlu0 %2714
        %v2718 = vsel %vm1070, %v2713, 0
        %2720 = vmatprep.subr.mxu0 0.0
        %2721 = vmatpush1.msra.mxu0 %v2715
        %2722 = vmatprep.subr.mxu0 0.0
        %2723 = vmatpush1.msra.mxu0 0.0
        %2724 = vmatprep.subr.mxu0 0.0
        %2725 = vmatpush1.msra.mxu0 0.0
        %2726 = vmatprep.subr.mxu0 0.0
        %2727 = vmatpush1.msra.mxu0 0.0
        %2728 = vmatprep.subr.mxu0 0.0
        %2729 = vmatpush1.msra.mxu0 0.0
        %2730 = vmatprep.subr.mxu0 0.0
        %2731 = vmatpush1.msra.mxu0 0.0
        %2732 = vmatprep.subr.mxu0 0.0
        %2733 = vmatpush1.msra.mxu0 0.0
        %2734 = vmatprep.subr.mxu0 0.0
        %2735 = vmatpush1.msra.mxu0 0.0
        %2736 = vmatprep.subr.mxu0 0.0
        %2737 = vmatpush1.msra.mxu0 0.0
        %2738 = vmatprep.subr.mxu0 0.0
        %2739 = vmatpush1.msra.mxu0 0.0
        %2740 = vmatprep.subr.mxu0 0.0
        %2741 = vmatpush1.msra.mxu0 0.0
        %2742 = vmatprep.subr.mxu0 0.0
        %2743 = vmatpush1.msra.mxu0 0.0
        %2744 = vmatprep.subr.mxu0 0.0
        %2745 = vmatpush1.msra.mxu0 0.0
        %2746 = vmatprep.subr.mxu0 0.0
        %2747 = vmatpush1.msra.mxu0 0.0
        %2748 = vmatprep.subr.mxu0 0.0
        %2749 = vmatpush1.msra.mxu0 0.0
        %2750 = vmatprep.subr.mxu0 0.0
        %2751 = vmatpush1.msra.mxu0 0.0
        %2752 = vmatprep.subr.mxu0 0.0
        %2753 = vmatpush1.msra.mxu0 0.0
        %2754 = vmatprep.subr.mxu0 0.0
        %2755 = vmatpush1.msra.mxu0 0.0
        %2756 = vmatprep.subr.mxu0 0.0
        %2757 = vmatpush1.msra.mxu0 0.0
        %2758 = vmatprep.subr.mxu0 0.0
        %2759 = vmatpush1.msra.mxu0 0.0
        %2760 = vmatprep.subr.mxu0 0.0
        %2761 = vmatpush1.msra.mxu0 0.0
        %2762 = vmatprep.subr.mxu0 0.0
        %2763 = vmatpush1.msra.mxu0 0.0
        %2764 = vmatprep.subr.mxu0 0.0
        %2765 = vmatpush1.msra.mxu0 0.0
        %2766 = vmatprep.subr.mxu0 0.0
        %2767 = vmatpush1.msra.mxu0 0.0
        %2768 = vmatprep.subr.mxu0 0.0
        %2769 = vmatpush1.msra.mxu0 0.0
        %2770 = vmatprep.subr.mxu0 0.0
        %2771 = vmatpush1.msra.mxu0 0.0
        %2772 = vmatprep.subr.mxu0 0.0
        %2773 = vmatpush1.msra.mxu0 0.0
        %2774 = vmatprep.subr.mxu0 0.0
        %2775 = vmatpush1.msra.mxu0 0.0
        %2776 = vmatprep.subr.mxu0 0.0
        %2777 = vmatpush1.msra.mxu0 0.0
        %2778 = vmatprep.subr.mxu0 0.0
        %2779 = vmatpush1.msra.mxu0 0.0
        %2780 = vmatprep.subr.mxu0 0.0
        %2781 = vmatpush1.msra.mxu0 0.0
        %2782 = vmatprep.subr.mxu0 0.0
        %2783 = vmatpush1.msra.mxu0 0.0
        %2784 = vmatprep.mubr.f32.mxu0 0.0
        %2785 = vmatmul.mubr.f32.gmra.mrb[0].mxu0 %v2718
        %v2786 = vpop.f32.mrb[0].mxu0
        %v2787 = vadd.f32 0.0, %v2786
        %v2788 = vpop.f32.mrb[0].mxu0
        %2789 = vdwg.mxu0
        %2790 = vrot.lane.b32.xlu0 %v2076, 80
        %v2791 = vpop.permute.xlu0 %2790
        %2792 = vrot.lane.b32.xlu0 %v2260, 80
        %v2793 = vpop.permute.xlu0 %2792
        %v2794 = vsel %vm993, %v2791, 0
        %v2796 = vsel %vm993, %v2793, 0
        %2798 = vmatprep.subr.mxu0 0.0
        %2799 = vmatpush1.xpose.msra.mxu0 %v2796
        %2800 = vmatprep.subr.mxu0 0.0
        %2801 = vmatpush1.xpose.msra.mxu0 0.0
        %2802 = vmatprep.subr.mxu0 0.0
        %2803 = vmatpush1.xpose.msra.mxu0 0.0
        %2804 = vmatprep.subr.mxu0 0.0
        %2805 = vmatpush1.xpose.msra.mxu0 0.0
        %2806 = vmatprep.subr.mxu0 0.0
        %2807 = vmatpush1.xpose.msra.mxu0 0.0
        %2808 = vmatprep.subr.mxu0 0.0
        %2809 = vmatpush1.xpose.msra.mxu0 0.0
        %2810 = vmatprep.subr.mxu0 0.0
        %2811 = vmatpush1.xpose.msra.mxu0 0.0
        %2812 = vmatprep.subr.mxu0 0.0
        %2813 = vmatpush1.xpose.msra.mxu0 0.0
        %2814 = vmatprep.subr.mxu0 0.0
        %2815 = vmatpush1.xpose.msra.mxu0 0.0
        %2816 = vmatprep.subr.mxu0 0.0
        %2817 = vmatpush1.xpose.msra.mxu0 0.0
        %2818 = vmatprep.subr.mxu0 0.0
        %2819 = vmatpush1.xpose.msra.mxu0 0.0
        %2820 = vmatprep.subr.mxu0 0.0
        %2821 = vmatpush1.xpose.msra.mxu0 0.0
        %2822 = vmatprep.subr.mxu0 0.0
        %2823 = vmatpush1.xpose.msra.mxu0 0.0
        %2824 = vmatprep.subr.mxu0 0.0
        %2825 = vmatpush1.xpose.msra.mxu0 0.0
        %2826 = vmatprep.subr.mxu0 0.0
        %2827 = vmatpush1.xpose.msra.mxu0 0.0
        %2828 = vmatprep.subr.mxu0 0.0
        %2829 = vmatpush1.xpose.msra.mxu0 0.0
        %2830 = vmatprep.subr.mxu0 0.0
        %2831 = vmatpush1.xpose.msra.mxu0 0.0
        %2832 = vmatprep.subr.mxu0 0.0
        %2833 = vmatpush1.xpose.msra.mxu0 0.0
        %2834 = vmatprep.subr.mxu0 0.0
        %2835 = vmatpush1.xpose.msra.mxu0 0.0
        %2836 = vmatprep.subr.mxu0 0.0
        %2837 = vmatpush1.xpose.msra.mxu0 0.0
        %2838 = vmatprep.subr.mxu0 0.0
        %2839 = vmatpush1.xpose.msra.mxu0 0.0
        %2840 = vmatprep.subr.mxu0 0.0
        %2841 = vmatpush1.xpose.msra.mxu0 0.0
        %2842 = vmatprep.subr.mxu0 0.0
        %2843 = vmatpush1.xpose.msra.mxu0 0.0
        %2844 = vmatprep.subr.mxu0 0.0
        %2845 = vmatpush1.xpose.msra.mxu0 0.0
        %2846 = vmatprep.subr.mxu0 0.0
        %2847 = vmatpush1.xpose.msra.mxu0 0.0
        %2848 = vmatprep.subr.mxu0 0.0
        %2849 = vmatpush1.xpose.msra.mxu0 0.0
        %2850 = vmatprep.subr.mxu0 0.0
        %2851 = vmatpush1.xpose.msra.mxu0 0.0
        %2852 = vmatprep.subr.mxu0 0.0
        %2853 = vmatpush1.xpose.msra.mxu0 0.0
        %2854 = vmatprep.subr.mxu0 0.0
        %2855 = vmatpush1.xpose.msra.mxu0 0.0
        %2856 = vmatprep.subr.mxu0 0.0
        %2857 = vmatpush1.xpose.msra.mxu0 0.0
        %2858 = vmatprep.subr.mxu0 0.0
        %2859 = vmatpush1.xpose.msra.mxu0 0.0
        %2860 = vmatprep.subr.mxu0 0.0
        %2861 = vmatpush1.xpose.msra.mxu0 0.0
        %2862 = vmatprep.mubr.f32.mxu0 0.0
        %2863 = vmatmul.mubr.f32.gmra.mrb[0].mxu0 %v2794
        %v2864 = vpop.f32.mrb[0].mxu0
        %v2865 = vadd.f32 0.0, %v2864
        %v2866 = vpop.f32.mrb[0].mxu0
        %2867 = vdwg.mxu0
        %v2868 = vmul.f32 %v2865, 0.25
        %v2869 = vsel %vm2290, -10000000.0, %v2868
        %v2870 = vsel %vm1070, %v2869, -inf
        %2871 = vmax.xlane.f32.xlu0 %v2870
        %v2872 = vpop.xlane.xlu0 %2871
        %v2873 = vsub.f32 %v2869, %v2872
        %v2874 = vmul.f32 %v2873, 1.442695
        %v2875 = vpow.pop %v2874
        %v2876 = vsel %vm1070, %v2875, 0.0
        %2877 = vadd.xlane.f32.xlu0 %v2876
        %v2878 = vpop.xlane.xlu0 %2877
        %v2879 = vrcp.pop %v2878
        %v2880 = vmul.f32 %v2875, %v2879
        %2881 = vrot.lane.b32.xlu0 %v2260, 16
        %v2882 = vpop.permute.xlu0 %2881
        %v2885 = vsel %vm1070, %v2880, 0
        %2887 = vmatprep.subr.mxu0 0.0
        %2888 = vmatpush1.msra.mxu0 %v2882
        %2889 = vmatprep.subr.mxu0 0.0
        %2890 = vmatpush1.msra.mxu0 0.0
        %2891 = vmatprep.subr.mxu0 0.0
        %2892 = vmatpush1.msra.mxu0 0.0
        %2893 = vmatprep.subr.mxu0 0.0
        %2894 = vmatpush1.msra.mxu0 0.0
        %2895 = vmatprep.subr.mxu0 0.0
        %2896 = vmatpush1.msra.mxu0 0.0
        %2897 = vmatprep.subr.mxu0 0.0
        %2898 = vmatpush1.msra.mxu0 0.0
        %2899 = vmatprep.subr.mxu0 0.0
        %2900 = vmatpush1.msra.mxu0 0.0
        %2901 = vmatprep.subr.mxu0 0.0
        %2902 = vmatpush1.msra.mxu0 0.0
        %2903 = vmatprep.subr.mxu0 0.0
        %2904 = vmatpush1.msra.mxu0 0.0
        %2905 = vmatprep.subr.mxu0 0.0
        %2906 = vmatpush1.msra.mxu0 0.0
        %2907 = vmatprep.subr.mxu0 0.0
        %2908 = vmatpush1.msra.mxu0 0.0
        %2909 = vmatprep.subr.mxu0 0.0
        %2910 = vmatpush1.msra.mxu0 0.0
        %2911 = vmatprep.subr.mxu0 0.0
        %2912 = vmatpush1.msra.mxu0 0.0
        %2913 = vmatprep.subr.mxu0 0.0
        %2914 = vmatpush1.msra.mxu0 0.0
        %2915 = vmatprep.subr.mxu0 0.0
        %2916 = vmatpush1.msra.mxu0 0.0
        %2917 = vmatprep.subr.mxu0 0.0
        %2918 = vmatpush1.msra.mxu0 0.0
        %2919 = vmatprep.subr.mxu0 0.0
        %2920 = vmatpush1.msra.mxu0 0.0
        %2921 = vmatprep.subr.mxu0 0.0
        %2922 = vmatpush1.msra.mxu0 0.0
        %2923 = vmatprep.subr.mxu0 0.0
        %2924 = vmatpush1.msra.mxu0 0.0
        %2925 = vmatprep.subr.mxu0 0.0
        %2926 = vmatpush1.msra.mxu0 0.0
        %2927 = vmatprep.subr.mxu0 0.0
        %2928 = vmatpush1.msra.mxu0 0.0
        %2929 = vmatprep.subr.mxu0 0.0
        %2930 = vmatpush1.msra.mxu0 0.0
        %2931 = vmatprep.subr.mxu0 0.0
        %2932 = vmatpush1.msra.mxu0 0.0
        %2933 = vmatprep.subr.mxu0 0.0
        %2934 = vmatpush1.msra.mxu0 0.0
        %2935 = vmatprep.subr.mxu0 0.0
        %2936 = vmatpush1.msra.mxu0 0.0
        %2937 = vmatprep.subr.mxu0 0.0
        %2938 = vmatpush1.msra.mxu0 0.0
        %2939 = vmatprep.subr.mxu0 0.0
        %2940 = vmatpush1.msra.mxu0 0.0
        %2941 = vmatprep.subr.mxu0 0.0
        %2942 = vmatpush1.msra.mxu0 0.0
        %2943 = vmatprep.subr.mxu0 0.0
        %2944 = vmatpush1.msra.mxu0 0.0
        %2945 = vmatprep.subr.mxu0 0.0
        %2946 = vmatpush1.msra.mxu0 0.0
        %2947 = vmatprep.subr.mxu0 0.0
        %2948 = vmatpush1.msra.mxu0 0.0
        %2949 = vmatprep.subr.mxu0 0.0
        %2950 = vmatpush1.msra.mxu0 0.0
        %2951 = vmatprep.mubr.f32.mxu0 0.0
        %2952 = vmatmul.mubr.f32.gmra.mrb[0].mxu0 %v2885
        %v2953 = vpop.f32.mrb[0].mxu0
        %v2954 = vadd.f32 0.0, %v2953
        %v2955 = vpop.f32.mrb[0].mxu0
        %2956 = vdwg.mxu0
        %2958 = vrot.lane.b32.xlu0 %v2620, 16
        %v2959 = vpop.permute.xlu0 %2958
        %2962 = vrot.lane.b32.xlu0 %v2787, 32
        %v2963 = vpop.permute.xlu0 %2962
        %2966 = vrot.lane.b32.xlu0 %v2954, 48
        %v2967 = vpop.permute.xlu0 %2966
        %v2969 = vsel %vm993, %v2453, %v2959
        %v2970 = vsel %vm1670, %v2969, %v2963
        %v2971 = vsel %vm1672, %v2970, %v2967
        %v2973 = vsel %vm1674, %v2971, 0
        %2975 = vmatprep.subr.mxu0 %v2265
        %2976 = vmatpush1.msra.mxu0 %v2264
        %2977 = vmatprep.subr.mxu0 %v2268
        %2978 = vmatpush1.msra.mxu0 %v2267
        %2979 = vmatprep.subr.mxu0 %v2271
        %2980 = vmatpush1.msra.mxu0 %v2270
        %2981 = vmatprep.subr.mxu0 %v2274
        %2982 = vmatpush1.msra.mxu0 %v2273
        %2983 = vmatprep.subr.mxu0 %v2277
        %2984 = vmatpush1.msra.mxu0 %v2276
        %2985 = vmatprep.subr.mxu0 %v2280
        %2986 = vmatpush1.msra.mxu0 %v2279
        %2987 = vmatprep.subr.mxu0 %v2283
        %2988 = vmatpush1.msra.mxu0 %v2282
        %2989 = vmatprep.subr.mxu0 %v2286
        %2990 = vmatpush1.msra.mxu0 %v2285
        %2991 = vmatprep.subr.mxu0 0.0
        %2992 = vmatpush1.msra.mxu0 0.0
        %2993 = vmatprep.subr.mxu0 0.0
        %2994 = vmatpush1.msra.mxu0 0.0
        %2995 = vmatprep.subr.mxu0 0.0
        %2996 = vmatpush1.msra.mxu0 0.0
        %2997 = vmatprep.subr.mxu0 0.0
        %2998 = vmatpush1.msra.mxu0 0.0
        %2999 = vmatprep.subr.mxu0 0.0
        %3000 = vmatpush1.msra.mxu0 0.0
        %3001 = vmatprep.subr.mxu0 0.0
        %3002 = vmatpush1.msra.mxu0 0.0
        %3003 = vmatprep.subr.mxu0 0.0
        %3004 = vmatpush1.msra.mxu0 0.0
        %3005 = vmatprep.subr.mxu0 0.0
        %3006 = vmatpush1.msra.mxu0 0.0
        %3007 = vmatprep.subr.mxu0 0.0
        %3008 = vmatpush1.msra.mxu0 0.0
        %3009 = vmatprep.subr.mxu0 0.0
        %3010 = vmatpush1.msra.mxu0 0.0
        %3011 = vmatprep.subr.mxu0 0.0
        %3012 = vmatpush1.msra.mxu0 0.0
        %3013 = vmatprep.subr.mxu0 0.0
        %3014 = vmatpush1.msra.mxu0 0.0
        %3015 = vmatprep.subr.mxu0 0.0
        %3016 = vmatpush1.msra.mxu0 0.0
        %3017 = vmatprep.subr.mxu0 0.0
        %3018 = vmatpush1.msra.mxu0 0.0
        %3019 = vmatprep.subr.mxu0 0.0
        %3020 = vmatpush1.msra.mxu0 0.0
        %3021 = vmatprep.subr.mxu0 0.0
        %3022 = vmatpush1.msra.mxu0 0.0
        %3023 = vmatprep.subr.mxu0 0.0
        %3024 = vmatpush1.msra.mxu0 0.0
        %3025 = vmatprep.subr.mxu0 0.0
        %3026 = vmatpush1.msra.mxu0 0.0
        %3027 = vmatprep.subr.mxu0 0.0
        %3028 = vmatpush1.msra.mxu0 0.0
        %3029 = vmatprep.subr.mxu0 0.0
        %3030 = vmatpush1.msra.mxu0 0.0
        %3031 = vmatprep.subr.mxu0 0.0
        %3032 = vmatpush1.msra.mxu0 0.0
        %3033 = vmatprep.subr.mxu0 0.0
        %3034 = vmatpush1.msra.mxu0 0.0
        %3035 = vmatprep.subr.mxu0 0.0
        %3036 = vmatpush1.msra.mxu0 0.0
        %3037 = vmatprep.subr.mxu0 0.0
        %3038 = vmatpush1.msra.mxu0 0.0
        %3039 = vmatprep.mubr.f32.mxu0 0.0
        %3040 = vmatmul.mubr.f32.gmra.mrb[0].mxu0 %v2973
        %v3041 = vpop.f32.mrb[0].mxu0
        %v3042 = vadd.f32 %v1878, %v3041
        %v3043 = vpop.f32.mrb[0].mxu0
        %v3044 = vadd.f32 %v1879, %v3043
        %3045 = vdwg.mxu0
        %3046 = vmatprep.subr.mxu0 0.0
        %3047 = vmatpush1.msra.mxu0 %v2266
        %3048 = vmatprep.subr.mxu0 0.0
        %3049 = vmatpush1.msra.mxu0 %v2269
        %3050 = vmatprep.subr.mxu0 0.0
        %3051 = vmatpush1.msra.mxu0 %v2272
        %3052 = vmatprep.subr.mxu0 0.0
        %3053 = vmatpush1.msra.mxu0 %v2275
        %3054 = vmatprep.subr.mxu0 0.0
        %3055 = vmatpush1.msra.mxu0 %v2278
        %3056 = vmatprep.subr.mxu0 0.0
        %3057 = vmatpush1.msra.mxu0 %v2281
        %3058 = vmatprep.subr.mxu0 0.0
        %3059 = vmatpush1.msra.mxu0 %v2284
        %3060 = vmatprep.subr.mxu0 0.0
        %3061 = vmatpush1.msra.mxu0 %v2287
        %3062 = vmatprep.subr.mxu0 0.0
        %3063 = vmatpush1.msra.mxu0 0.0
        %3064 = vmatprep.subr.mxu0 0.0
        %3065 = vmatpush1.msra.mxu0 0.0
        %3066 = vmatprep.subr.mxu0 0.0
        %3067 = vmatpush1.msra.mxu0 0.0
        %3068 = vmatprep.subr.mxu0 0.0
        %3069 = vmatpush1.msra.mxu0 0.0
        %3070 = vmatprep.subr.mxu0 0.0
        %3071 = vmatpush1.msra.mxu0 0.0
        %3072 = vmatprep.subr.mxu0 0.0
        %3073 = vmatpush1.msra.mxu0 0.0
        %3074 = vmatprep.subr.mxu0 0.0
        %3075 = vmatpush1.msra.mxu0 0.0
        %3076 = vmatprep.subr.mxu0 0.0
        %3077 = vmatpush1.msra.mxu0 0.0
        %3078 = vmatprep.subr.mxu0 0.0
        %3079 = vmatpush1.msra.mxu0 0.0
        %3080 = vmatprep.subr.mxu0 0.0
        %3081 = vmatpush1.msra.mxu0 0.0
        %3082 = vmatprep.subr.mxu0 0.0
        %3083 = vmatpush1.msra.mxu0 0.0
        %3084 = vmatprep.subr.mxu0 0.0
        %3085 = vmatpush1.msra.mxu0 0.0
        %3086 = vmatprep.subr.mxu0 0.0
        %3087 = vmatpush1.msra.mxu0 0.0
        %3088 = vmatprep.subr.mxu0 0.0
        %3089 = vmatpush1.msra.mxu0 0.0
        %3090 = vmatprep.subr.mxu0 0.0
        %3091 = vmatpush1.msra.mxu0 0.0
        %3092 = vmatprep.subr.mxu0 0.0
        %3093 = vmatpush1.msra.mxu0 0.0
        %3094 = vmatprep.subr.mxu0 0.0
        %3095 = vmatpush1.msra.mxu0 0.0
        %3096 = vmatprep.subr.mxu0 0.0
        %3097 = vmatpush1.msra.mxu0 0.0
        %3098 = vmatprep.subr.mxu0 0.0
        %3099 = vmatpush1.msra.mxu0 0.0
        %3100 = vmatprep.subr.mxu0 0.0
        %3101 = vmatpush1.msra.mxu0 0.0
        %3102 = vmatprep.subr.mxu0 0.0
        %3103 = vmatpush1.msra.mxu0 0.0
        %3104 = vmatprep.subr.mxu0 0.0
        %3105 = vmatpush1.msra.mxu0 0.0
        %3106 = vmatprep.subr.mxu0 0.0
        %3107 = vmatpush1.msra.mxu0 0.0
        %3108 = vmatprep.subr.mxu0 0.0
        %3109 = vmatpush1.msra.mxu0 0.0
        %3110 = vmatprep.mubr.f32.mxu0 0.0
        %3111 = vmatmul.mubr.f32.gmra.mrb[0].mxu0 %v2973
        %v3112 = vpop.f32.mrb[0].mxu0
        %v3113 = vadd.f32 %v1880, %v3112
        %v3114 = vpop.f32.mrb[0].mxu0
        %3115 = vdwg.mxu0
        %v3116 = vadd.f32 %v3042, %v3044
        %v3117 = vsel %vm809, %v3113, 0.0
        %v3118 = vadd.f32 %v3116, %v3117
        %3119 = vadd.xlane.f32.xlu0 %v3118
        %v3120 = vpop.xlane.xlu0 %3119
        %v3121 = vmul.f32 %v3120, %v1824
        %v3122 = vsub.f32 %v3042, %v3121
        %v3123 = vsub.f32 %v3044, %v3121
        %v3124 = vsub.f32 %v3113, %v3121
        %v3125 = vmul.f32 %v3122, %v3122
        %v3126 = vmul.f32 %v3123, %v3123
        %v3127 = vmul.f32 %v3124, %v3124
        %v3128 = vadd.f32 %v3125, %v3126
        %v3129 = vsel %vm809, %v3127, 0.0
        %v3130 = vadd.f32 %v3128, %v3129
        %3131 = vadd.xlane.f32.xlu0 %v3130
        %v3132 = vpop.xlane.xlu0 %3131
        %v3133 = vmul.f32 %v3132, %v1824
        %v3134 = vadd.f32 %v3133, 1e-06
        %v3135 = vrsqrt.pop %v3134
        %v3136 = vmul.f32 %v3122, %v3135
        %v3137 = vmul.f32 %v3123, %v3135
        %v3138 = vmul.f32 %v3124, %v3135
        %v3140 = vlaneseq
        %v3141 = vshrl.u32 %v3140, 7
        %v3142 = vsub.s32 0, %v3141
        %v3143 = vrot.slane %v2288, %v3142
        %v3144 = vlaneseq
        %v3145 = vshrl.u32 %v3144, 7
        %v3146 = vsub.s32 1, %v3145
        %v3147 = vrot.slane %v2288, %v3146
        %v3148 = vlaneseq
        %v3149 = vshrl.u32 %v3148, 7
        %v3150 = vsub.s32 2, %v3149
        %v3151 = vrot.slane %v2288, %v3150
        %v3155 = vmul.f32 %v3136, %v3143
        %v3156 = vmul.f32 %v3137, %v3147
        %v3157 = vmul.f32 %v3138, %v3151
        %v3159 = vlaneseq
        %v3160 = vshrl.u32 %v3159, 7
        %v3161 = vsub.s32 0, %v3160
        %v3162 = vrot.slane %v2289, %v3161
        %v3163 = vlaneseq
        %v3164 = vshrl.u32 %v3163, 7
        %v3165 = vsub.s32 1, %v3164
        %v3166 = vrot.slane %v2289, %v3165
        %v3167 = vlaneseq
        %v3168 = vshrl.u32 %v3167, 7
        %v3169 = vsub.s32 2, %v3168
        %v3170 = vrot.slane %v2289, %v3169
        %v3174 = vadd.f32 %v3155, %v3162
        %v3175 = vadd.f32 %v3156, %v3166
        %v3176 = vadd.f32 %v3157, %v3170
        %3177 = vrot.lane.b32.xlu0 %v2546, 8
        %v3178 = vpop.permute.xlu0 %3177
        %3180 = vrot.lane.b32.xlu0 %v2713, 16
        %v3181 = vpop.permute.xlu0 %3180
        %3183 = vrot.lane.b32.xlu0 %v2880, 24
        %v3184 = vpop.permute.xlu0 %3183
        %v3186 = vsel %vm1070, %v2379, %v3178
        %v3187 = vsel %vm993, %v3186, %v3181
        %v3188 = vsel %vm1892, %v3187, %v3184
        %3189 = vst.msk [vmem:[%s708] sm:$0xff] %vm1670, %v3188
        %v3190 = vld [vmem:[%s13] sm:$0xff]
        %v3191 = vld [vmem:[%s13 + $0x8] sm:$0xff]
        %v3192 = vld [vmem:[%s13 + $0x10] sm:$0xff]
        %v3193 = vld [vmem:[%s13 + $0x18] sm:$0xff]
        %v3194 = vld [vmem:[%s13 + $0x20] sm:$0xff]
        %v3195 = vld [vmem:[%s13 + $0x28] sm:$0xff]
        %v3196 = vld [vmem:[%s13 + $0x30] sm:$0xff]
        %v3197 = vld [vmem:[%s13 + $0x38] sm:$0xff]
        %v3198 = vld [vmem:[%s13 + $0x40] sm:$0xff]
        %v3199 = vld [vmem:[%s13 + $0x48] sm:$0xff]
        %v3200 = vld [vmem:[%s13 + $0x50] sm:$0xff]
        %v3201 = vld [vmem:[%s13 + $0x58] sm:$0xff]
        %v3202 = vld [vmem:[%s13 + $0x60] sm:$0xff]
        %v3203 = vld [vmem:[%s13 + $0x68] sm:$0xff]
        %v3204 = vld [vmem:[%s13 + $0x70] sm:$0xff]
        %v3205 = vld [vmem:[%s13 + $0x78] sm:$0xff]
        %v3206 = vld [vmem:[%s13 + $0x80] sm:$0xff]
        %v3207 = vld [vmem:[%s13 + $0x88] sm:$0xff]
        %v3208 = vld [vmem:[%s13 + $0x90] sm:$0xff]
        %v3209 = vld [vmem:[%s13 + $0x98] sm:$0xff]
        %v3210 = vld [vmem:[%s13 + $0xa0] sm:$0xff]
        %v3211 = vld [vmem:[%s13 + $0xa8] sm:$0xff]
        %v3212 = vld [vmem:[%s13 + $0xb0] sm:$0xff]
        %v3213 = vld [vmem:[%s13 + $0xb8] sm:$0xff]
        %v3214 = vld [vmem:[%s13 + $0xc0] sm:$0xff]
        %v3215 = vld [vmem:[%s13 + $0xc8] sm:$0xff]
        %v3216 = vld [vmem:[%s13 + $0xd0] sm:$0xff]
        %v3217 = vld [vmem:[%s13 + $0xd8] sm:$0xff]
        %v3218 = vld [vmem:[%s13 + $0xe0] sm:$0xff]
        %v3219 = vld [vmem:[%s13 + $0xe8] sm:$0xff]
        %v3220 = vld [vmem:[%s13 + $0xf0] sm:$0xff]
        %v3221 = vld [vmem:[%s13 + $0xf8] sm:$0xff]
        %v3222 = vld [vmem:[%s13 + $0x100] sm:$0xff]
        %v3223 = vld [vmem:[%s13 + $0x108] sm:$0xff]
        %v3224 = vld [vmem:[%s13 + $0x110] sm:$0xff]
        %v3225 = vld [vmem:[%s13 + $0x118] sm:$0xff]
        %v3226 = vld [vmem:[%s13 + $0x120] sm:$0xff]
        %v3227 = vld [vmem:[%s13 + $0x128] sm:$0xf]
        %v3228 = vld [vmem:[%s14] sm:$0x1]
        %v3230 = vlaneseq
        %v3231 = vshrl.u32 %v3230, 7
        %v3232 = vsub.s32 0, %v3231
        %v3233 = vrot.slane %v3228, %v3232
        %v3236 = vsel %vm809, %v3176, 0
        %v3239 = vsel %vm813, %v3227, 0
        %3241 = vmatprep.subr.mxu0 0.0
        %3242 = vmatpush1.msra.mxu0 %v3190
        %3243 = vmatprep.subr.mxu0 0.0
        %3244 = vmatpush1.msra.mxu0 %v3191
        %3245 = vmatprep.subr.mxu0 0.0
        %3246 = vmatpush1.msra.mxu0 %v3192
        %3247 = vmatprep.subr.mxu0 0.0
        %3248 = vmatpush1.msra.mxu0 %v3193
        %3249 = vmatprep.subr.mxu0 0.0
        %3250 = vmatpush1.msra.mxu0 %v3194
        %3251 = vmatprep.subr.mxu0 0.0
        %3252 = vmatpush1.msra.mxu0 %v3195
        %3253 = vmatprep.subr.mxu0 0.0
        %3254 = vmatpush1.msra.mxu0 %v3196
        %3255 = vmatprep.subr.mxu0 0.0
        %3256 = vmatpush1.msra.mxu0 %v3197
        %3257 = vmatprep.subr.mxu0 0.0
        %3258 = vmatpush1.msra.mxu0 %v3198
        %3259 = vmatprep.subr.mxu0 0.0
        %3260 = vmatpush1.msra.mxu0 %v3199
        %3261 = vmatprep.subr.mxu0 0.0
        %3262 = vmatpush1.msra.mxu0 %v3200
        %3263 = vmatprep.subr.mxu0 0.0
        %3264 = vmatpush1.msra.mxu0 %v3201
        %3265 = vmatprep.subr.mxu0 0.0
        %3266 = vmatpush1.msra.mxu0 %v3202
        %3267 = vmatprep.subr.mxu0 0.0
        %3268 = vmatpush1.msra.mxu0 %v3203
        %3269 = vmatprep.subr.mxu0 0.0
        %3270 = vmatpush1.msra.mxu0 %v3204
        %3271 = vmatprep.subr.mxu0 0.0
        %3272 = vmatpush1.msra.mxu0 %v3205
        %3273 = vmatprep.subr.mxu0 0.0
        %3274 = vmatpush1.msra.mxu0 %v3206
        %3275 = vmatprep.subr.mxu0 0.0
        %3276 = vmatpush1.msra.mxu0 %v3207
        %3277 = vmatprep.subr.mxu0 0.0
        %3278 = vmatpush1.msra.mxu0 %v3208
        %3279 = vmatprep.subr.mxu0 0.0
        %3280 = vmatpush1.msra.mxu0 %v3209
        %3281 = vmatprep.subr.mxu0 0.0
        %3282 = vmatpush1.msra.mxu0 %v3210
        %3283 = vmatprep.subr.mxu0 0.0
        %3284 = vmatpush1.msra.mxu0 %v3211
        %3285 = vmatprep.subr.mxu0 0.0
        %3286 = vmatpush1.msra.mxu0 %v3212
        %3287 = vmatprep.subr.mxu0 0.0
        %3288 = vmatpush1.msra.mxu0 %v3213
        %3289 = vmatprep.subr.mxu0 0.0
        %3290 = vmatpush1.msra.mxu0 %v3214
        %3291 = vmatprep.subr.mxu0 0.0
        %3292 = vmatpush1.msra.mxu0 %v3215
        %3293 = vmatprep.subr.mxu0 0.0
        %3294 = vmatpush1.msra.mxu0 %v3216
        %3295 = vmatprep.subr.mxu0 0.0
        %3296 = vmatpush1.msra.mxu0 %v3217
        %3297 = vmatprep.subr.mxu0 0.0
        %3298 = vmatpush1.msra.mxu0 %v3218
        %3299 = vmatprep.subr.mxu0 0.0
        %3300 = vmatpush1.msra.mxu0 %v3219
        %3301 = vmatprep.subr.mxu0 0.0
        %3302 = vmatpush1.msra.mxu0 %v3220
        %3303 = vmatprep.subr.mxu0 0.0
        %3304 = vmatpush1.msra.mxu0 %v3221
        %3305 = vmatprep.mubr.f32.mxu0 %v3175
        %3306 = vmatmul.mubr.f32.gmra.mrb[0].mxu0 %v3174
        %v3307 = vpop.f32.mrb[0].mxu0
        %v3308 = vadd.f32 %v3233, %v3307
        %v3309 = vpop.f32.mrb[0].mxu0
        %3310 = vdwg.mxu0
        %3311 = vmatprep.subr.mxu0 0.0
        %3312 = vmatpush1.msra.mxu0 %v3222
        %3313 = vmatprep.subr.mxu0 0.0
        %3314 = vmatpush1.msra.mxu0 %v3223
        %3315 = vmatprep.subr.mxu0 0.0
        %3316 = vmatpush1.msra.mxu0 %v3224
        %3317 = vmatprep.subr.mxu0 0.0
        %3318 = vmatpush1.msra.mxu0 %v3225
        %3319 = vmatprep.subr.mxu0 0.0
        %3320 = vmatpush1.msra.mxu0 %v3226
        %3321 = vmatprep.subr.mxu0 0.0
        %3322 = vmatpush1.msra.mxu0 %v3239
        %3323 = vmatprep.subr.mxu0 0.0
        %3324 = vmatpush1.msra.mxu0 0.0
        %3325 = vmatprep.subr.mxu0 0.0
        %3326 = vmatpush1.msra.mxu0 0.0
        %3327 = vmatprep.subr.mxu0 0.0
        %3328 = vmatpush1.msra.mxu0 0.0
        %3329 = vmatprep.subr.mxu0 0.0
        %3330 = vmatpush1.msra.mxu0 0.0
        %3331 = vmatprep.subr.mxu0 0.0
        %3332 = vmatpush1.msra.mxu0 0.0
        %3333 = vmatprep.subr.mxu0 0.0
        %3334 = vmatpush1.msra.mxu0 0.0
        %3335 = vmatprep.subr.mxu0 0.0
        %3336 = vmatpush1.msra.mxu0 0.0
        %3337 = vmatprep.subr.mxu0 0.0
        %3338 = vmatpush1.msra.mxu0 0.0
        %3339 = vmatprep.subr.mxu0 0.0
        %3340 = vmatpush1.msra.mxu0 0.0
        %3341 = vmatprep.subr.mxu0 0.0
        %3342 = vmatpush1.msra.mxu0 0.0
        %3343 = vmatprep.subr.mxu0 0.0
        %3344 = vmatpush1.msra.mxu0 0.0
        %3345 = vmatprep.subr.mxu0 0.0
        %3346 = vmatpush1.msra.mxu0 0.0
        %3347 = vmatprep.subr.mxu0 0.0
        %3348 = vmatpush1.msra.mxu0 0.0
        %3349 = vmatprep.subr.mxu0 0.0
        %3350 = vmatpush1.msra.mxu0 0.0
        %3351 = vmatprep.subr.mxu0 0.0
        %3352 = vmatpush1.msra.mxu0 0.0
        %3353 = vmatprep.subr.mxu0 0.0
        %3354 = vmatpush1.msra.mxu0 0.0
        %3355 = vmatprep.subr.mxu0 0.0
        %3356 = vmatpush1.msra.mxu0 0.0
        %3357 = vmatprep.subr.mxu0 0.0
        %3358 = vmatpush1.msra.mxu0 0.0
        %3359 = vmatprep.subr.mxu0 0.0
        %3360 = vmatpush1.msra.mxu0 0.0
        %3361 = vmatprep.subr.mxu0 0.0
        %3362 = vmatpush1.msra.mxu0 0.0
        %3363 = vmatprep.subr.mxu0 0.0
        %3364 = vmatpush1.msra.mxu0 0.0
        %3365 = vmatprep.subr.mxu0 0.0
        %3366 = vmatpush1.msra.mxu0 0.0
        %3367 = vmatprep.subr.mxu0 0.0
        %3368 = vmatpush1.msra.mxu0 0.0
        %3369 = vmatprep.subr.mxu0 0.0
        %3370 = vmatpush1.msra.mxu0 0.0
        %3371 = vmatprep.subr.mxu0 0.0
        %3372 = vmatpush1.msra.mxu0 0.0
        %3373 = vmatprep.subr.mxu0 0.0
        %3374 = vmatpush1.msra.mxu0 0.0
        %3375 = vmatprep.mubr.f32.mxu0 0.0
        %3376 = vmatmul.mubr.f32.gmra.mrb[0].mxu0 %v3236
        %v3377 = vpop.f32.mrb[0].mxu0
        %v3378 = vadd.f32 %v3308, %v3377
        %v3379 = vpop.f32.mrb[0].mxu0
        %3380 = vdwg.mxu0
        %v3381 = vmax.f32 %v3378, 0.0
        %v3382 = vld [vmem:[%s15] sm:$0xff]
        %v3383 = vld [vmem:[%s15 + $0x8] sm:$0xff]
        %v3384 = vld [vmem:[%s15 + $0x10] sm:$0xff]
        %v3385 = vld [vmem:[%s15 + $0x18] sm:$0xff]
        %v3386 = vld [vmem:[%s15 + $0x20] sm:$0xff]
        %v3387 = vld [vmem:[%s15 + $0x28] sm:$0xff]
        %v3388 = vld [vmem:[%s15 + $0x30] sm:$0xff]
        %v3389 = vld [vmem:[%s15 + $0x38] sm:$0xff]
        %v3390 = vld [vmem:[%s15 + $0x40] sm:$0xff]
        %v3391 = vld [vmem:[%s15 + $0x48] sm:$0xff]
        %v3392 = vld [vmem:[%s15 + $0x50] sm:$0xff]
        %v3393 = vld [vmem:[%s15 + $0x58] sm:$0xff]
        %v3394 = vld [vmem:[%s15 + $0x60] sm:$0xff]
        %v3395 = vld [vmem:[%s15 + $0x68] sm:$0xff]
        %v3396 = vld [vmem:[%s15 + $0x70] sm:$0xff]
        %v3397 = vld [vmem:[%s15 + $0x78] sm:$0xff]
        %v3398 = vld [vmem:[%s15 + $0x80] sm:$0xff]
        %v3399 = vld [vmem:[%s15 + $0x88] sm:$0xff]
        %v3400 = vld [vmem:[%s15 + $0x90] sm:$0xff]
        %v3401 = vld [vmem:[%s15 + $0x98] sm:$0xff]
        %v3402 = vld [vmem:[%s15 + $0xa0] sm:$0xff]
        %v3403 = vld [vmem:[%s15 + $0xa8] sm:$0xff]
        %v3404 = vld [vmem:[%s15 + $0xb0] sm:$0xff]
        %v3405 = vld [vmem:[%s15 + $0xb8] sm:$0xff]
        %v3406 = vld [vmem:[%s16] sm:$0x7]
        %v3408 = vlaneseq
        %v3409 = vshrl.u32 %v3408, 7
        %v3410 = vsub.s32 0, %v3409
        %v3411 = vrot.slane %v3406, %v3410
        %v3412 = vlaneseq
        %v3413 = vshrl.u32 %v3412, 7
        %v3414 = vsub.s32 1, %v3413
        %v3415 = vrot.slane %v3406, %v3414
        %v3416 = vlaneseq
        %v3417 = vshrl.u32 %v3416, 7
        %v3418 = vsub.s32 2, %v3417
        %v3419 = vrot.slane %v3406, %v3418
        %v3424 = vsel %vm1674, %v3381, 0
        %3426 = vmatprep.subr.mxu0 %v3383
        %3427 = vmatpush1.msra.mxu0 %v3382
        %3428 = vmatprep.subr.mxu0 %v3386
        %3429 = vmatpush1.msra.mxu0 %v3385
        %3430 = vmatprep.subr.mxu0 %v3389
        %3431 = vmatpush1.msra.mxu0 %v3388
        %3432 = vmatprep.subr.mxu0 %v3392
        %3433 = vmatpush1.msra.mxu0 %v3391
        %3434 = vmatprep.subr.mxu0 %v3395
        %3435 = vmatpush1.msra.mxu0 %v3394
        %3436 = vmatprep.subr.mxu0 %v3398
        %3437 = vmatpush1.msra.mxu0 %v3397
        %3438 = vmatprep.subr.mxu0 %v3401
        %3439 = vmatpush1.msra.mxu0 %v3400
        %3440 = vmatprep.subr.mxu0 %v3404
        %3441 = vmatpush1.msra.mxu0 %v3403
        %3442 = vmatprep.subr.mxu0 0.0
        %3443 = vmatpush1.msra.mxu0 0.0
        %3444 = vmatprep.subr.mxu0 0.0
        %3445 = vmatpush1.msra.mxu0 0.0
        %3446 = vmatprep.subr.mxu0 0.0
        %3447 = vmatpush1.msra.mxu0 0.0
        %3448 = vmatprep.subr.mxu0 0.0
        %3449 = vmatpush1.msra.mxu0 0.0
        %3450 = vmatprep.subr.mxu0 0.0
        %3451 = vmatpush1.msra.mxu0 0.0
        %3452 = vmatprep.subr.mxu0 0.0
        %3453 = vmatpush1.msra.mxu0 0.0
        %3454 = vmatprep.subr.mxu0 0.0
        %3455 = vmatpush1.msra.mxu0 0.0
        %3456 = vmatprep.subr.mxu0 0.0
        %3457 = vmatpush1.msra.mxu0 0.0
        %3458 = vmatprep.subr.mxu0 0.0
        %3459 = vmatpush1.msra.mxu0 0.0
        %3460 = vmatprep.subr.mxu0 0.0
        %3461 = vmatpush1.msra.mxu0 0.0
        %3462 = vmatprep.subr.mxu0 0.0
        %3463 = vmatpush1.msra.mxu0 0.0
        %3464 = vmatprep.subr.mxu0 0.0
        %3465 = vmatpush1.msra.mxu0 0.0
        %3466 = vmatprep.subr.mxu0 0.0
        %3467 = vmatpush1.msra.mxu0 0.0
        %3468 = vmatprep.subr.mxu0 0.0
        %3469 = vmatpush1.msra.mxu0 0.0
        %3470 = vmatprep.subr.mxu0 0.0
        %3471 = vmatpush1.msra.mxu0 0.0
        %3472 = vmatprep.subr.mxu0 0.0
        %3473 = vmatpush1.msra.mxu0 0.0
        %3474 = vmatprep.subr.mxu0 0.0
        %3475 = vmatpush1.msra.mxu0 0.0
        %3476 = vmatprep.subr.mxu0 0.0
        %3477 = vmatpush1.msra.mxu0 0.0
        %3478 = vmatprep.subr.mxu0 0.0
        %3479 = vmatpush1.msra.mxu0 0.0
        %3480 = vmatprep.subr.mxu0 0.0
        %3481 = vmatpush1.msra.mxu0 0.0
        %3482 = vmatprep.subr.mxu0 0.0
        %3483 = vmatpush1.msra.mxu0 0.0
        %3484 = vmatprep.subr.mxu0 0.0
        %3485 = vmatpush1.msra.mxu0 0.0
        %3486 = vmatprep.subr.mxu0 0.0
        %3487 = vmatpush1.msra.mxu0 0.0
        %3488 = vmatprep.subr.mxu0 0.0
        %3489 = vmatpush1.msra.mxu0 0.0
        %3490 = vmatprep.mubr.f32.mxu0 0.0
        %3491 = vmatmul.mubr.f32.gmra.mrb[0].mxu0 %v3424
        %v3492 = vpop.f32.mrb[0].mxu0
        %v3493 = vadd.f32 %v3411, %v3492
        %v3494 = vpop.f32.mrb[0].mxu0
        %v3495 = vadd.f32 %v3415, %v3494
        %3496 = vdwg.mxu0
        %3497 = vmatprep.subr.mxu0 0.0
        %3498 = vmatpush1.msra.mxu0 %v3384
        %3499 = vmatprep.subr.mxu0 0.0
        %3500 = vmatpush1.msra.mxu0 %v3387
        %3501 = vmatprep.subr.mxu0 0.0
        %3502 = vmatpush1.msra.mxu0 %v3390
        %3503 = vmatprep.subr.mxu0 0.0
        %3504 = vmatpush1.msra.mxu0 %v3393
        %3505 = vmatprep.subr.mxu0 0.0
        %3506 = vmatpush1.msra.mxu0 %v3396
        %3507 = vmatprep.subr.mxu0 0.0
        %3508 = vmatpush1.msra.mxu0 %v3399
        %3509 = vmatprep.subr.mxu0 0.0
        %3510 = vmatpush1.msra.mxu0 %v3402
        %3511 = vmatprep.subr.mxu0 0.0
        %3512 = vmatpush1.msra.mxu0 %v3405
        %3513 = vmatprep.subr.mxu0 0.0
        %3514 = vmatpush1.msra.mxu0 0.0
        %3515 = vmatprep.subr.mxu0 0.0
        %3516 = vmatpush1.msra.mxu0 0.0
        %3517 = vmatprep.subr.mxu0 0.0
        %3518 = vmatpush1.msra.mxu0 0.0
        %3519 = vmatprep.subr.mxu0 0.0
        %3520 = vmatpush1.msra.mxu0 0.0
        %3521 = vmatprep.subr.mxu0 0.0
        %3522 = vmatpush1.msra.mxu0 0.0
        %3523 = vmatprep.subr.mxu0 0.0
        %3524 = vmatpush1.msra.mxu0 0.0
        %3525 = vmatprep.subr.mxu0 0.0
        %3526 = vmatpush1.msra.mxu0 0.0
        %3527 = vmatprep.subr.mxu0 0.0
        %3528 = vmatpush1.msra.mxu0 0.0
        %3529 = vmatprep.subr.mxu0 0.0
        %3530 = vmatpush1.msra.mxu0 0.0
        %3531 = vmatprep.subr.mxu0 0.0
        %3532 = vmatpush1.msra.mxu0 0.0
        %3533 = vmatprep.subr.mxu0 0.0
        %3534 = vmatpush1.msra.mxu0 0.0
        %3535 = vmatprep.subr.mxu0 0.0
        %3536 = vmatpush1.msra.mxu0 0.0
        %3537 = vmatprep.subr.mxu0 0.0
        %3538 = vmatpush1.msra.mxu0 0.0
        %3539 = vmatprep.subr.mxu0 0.0
        %3540 = vmatpush1.msra.mxu0 0.0
        %3541 = vmatprep.subr.mxu0 0.0
        %3542 = vmatpush1.msra.mxu0 0.0
        %3543 = vmatprep.subr.mxu0 0.0
        %3544 = vmatpush1.msra.mxu0 0.0
        %3545 = vmatprep.subr.mxu0 0.0
        %3546 = vmatpush1.msra.mxu0 0.0
        %3547 = vmatprep.subr.mxu0 0.0
        %3548 = vmatpush1.msra.mxu0 0.0
        %3549 = vmatprep.subr.mxu0 0.0
        %3550 = vmatpush1.msra.mxu0 0.0
        %3551 = vmatprep.subr.mxu0 0.0
        %3552 = vmatpush1.msra.mxu0 0.0
        %3553 = vmatprep.subr.mxu0 0.0
        %3554 = vmatpush1.msra.mxu0 0.0
        %3555 = vmatprep.subr.mxu0 0.0
        %3556 = vmatpush1.msra.mxu0 0.0
        %3557 = vmatprep.subr.mxu0 0.0
        %3558 = vmatpush1.msra.mxu0 0.0
        %3559 = vmatprep.subr.mxu0 0.0
        %3560 = vmatpush1.msra.mxu0 0.0
        %3561 = vmatprep.mubr.f32.mxu0 0.0
        %3562 = vmatmul.mubr.f32.gmra.mrb[0].mxu0 %v3424
        %v3563 = vpop.f32.mrb[0].mxu0
        %v3564 = vadd.f32 %v3419, %v3563
        %v3565 = vpop.f32.mrb[0].mxu0
        %3566 = vdwg.mxu0
        %v3567 = vadd.f32 %v3493, %v3174
        %v3568 = vadd.f32 %v3495, %v3175
        %v3569 = vadd.f32 %v3564, %v3176
        %v3570 = vld [vmem:[%s17] sm:$0x7]
        %v3571 = vld [vmem:[%s18] sm:$0x7]
        %v3572 = vadd.f32 %v3567, %v3568
        %v3573 = vsel %vm809, %v3569, 0.0
        %v3574 = vadd.f32 %v3572, %v3573
        %3575 = vadd.xlane.f32.xlu0 %v3574
        %v3576 = vpop.xlane.xlu0 %3575
        %v3577 = vmul.f32 %v3576, %v1824
        %v3578 = vsub.f32 %v3567, %v3577
        %v3579 = vsub.f32 %v3568, %v3577
        %v3580 = vsub.f32 %v3569, %v3577
        %v3581 = vmul.f32 %v3578, %v3578
        %v3582 = vmul.f32 %v3579, %v3579
        %v3583 = vmul.f32 %v3580, %v3580
        %v3584 = vadd.f32 %v3581, %v3582
        %v3585 = vsel %vm809, %v3583, 0.0
        %v3586 = vadd.f32 %v3584, %v3585
        %3587 = vadd.xlane.f32.xlu0 %v3586
        %v3588 = vpop.xlane.xlu0 %3587
        %v3589 = vmul.f32 %v3588, %v1824
        %v3590 = vadd.f32 %v3589, 1e-06
        %v3591 = vrsqrt.pop %v3590
        %v3592 = vmul.f32 %v3578, %v3591
        %v3593 = vmul.f32 %v3579, %v3591
        %v3594 = vmul.f32 %v3580, %v3591
        %v3596 = vlaneseq
        %v3597 = vshrl.u32 %v3596, 7
        %v3598 = vsub.s32 0, %v3597
        %v3599 = vrot.slane %v3570, %v3598
        %v3600 = vlaneseq
        %v3601 = vshrl.u32 %v3600, 7
        %v3602 = vsub.s32 1, %v3601
        %v3603 = vrot.slane %v3570, %v3602
        %v3604 = vlaneseq
        %v3605 = vshrl.u32 %v3604, 7
        %v3606 = vsub.s32 2, %v3605
        %v3607 = vrot.slane %v3570, %v3606
        %v3611 = vmul.f32 %v3592, %v3599
        %v3612 = vmul.f32 %v3593, %v3603
        %v3613 = vmul.f32 %v3594, %v3607
        %v3615 = vlaneseq
        %v3616 = vshrl.u32 %v3615, 7
        %v3617 = vsub.s32 0, %v3616
        %v3618 = vrot.slane %v3571, %v3617
        %v3619 = vlaneseq
        %v3620 = vshrl.u32 %v3619, 7
        %v3621 = vsub.s32 1, %v3620
        %v3622 = vrot.slane %v3571, %v3621
        %v3623 = vlaneseq
        %v3624 = vshrl.u32 %v3623, 7
        %v3625 = vsub.s32 2, %v3624
        %v3626 = vrot.slane %v3571, %v3625
        %v3630 = vadd.f32 %v3611, %v3618
        %v3631 = vadd.f32 %v3612, %v3622
        %v3632 = vadd.f32 %v3613, %v3626
        %3633 = vst [vmem:[%s694] sm:$0xff] %v3630
        %3634 = vst [vmem:[%s694 + $0x8] sm:$0xff] %v3631
        %3635 = vst.msk [vmem:[%s694 + $0x10] sm:$0xff] %vm809, %v3632
        %s3636 = sand.u32 %s466, 1
        %s3637 = scalar_lea.sflag [#allocation3], %s3636
        %s3638 = sand.u32 %s466, 1
        %s3639 = smul.addr %s3638, 24
        %s3640 = scalar_lea.vmem [#allocation2], %s3639
        %s3641 = sand.u32 %s39, 1
        %s3642 = scalar_lea.sflag [#allocation5], %s3641
        %s3643 = sand.u32 %s492, 1
        %s3644 = smul.addr %s3643, 8
        %s3645 = scalar_lea.vmem [#allocation4], %s3644
        %s3646 = sand.u32 %s39, 1
        %s3647 = scalar_lea.sflag [#allocation5], %s3646
        %s3648 = sand.u32 %s518, 1
        %s3649 = smul.addr %s3648, 8
        %s3650 = scalar_lea.vmem [#allocation6], %s3649
        // Predicated region
        $region97: #{tpu_custom_call.1} parent=95 // pred_check
          %p3651 = pneg %p476
        $region98: #{tpu_custom_call.1} parent=95 // pred_check_branch
          %3653 = sbr.rel (%p3651) target = $region100
        $region99: #{tpu_custom_call.1} parent=95 // pred_region
          %s3655 = ssub.s32 384, 384
          %3656 = vsyncadd %s3637, %s3655
          %s3657 = smul.addr %s39, 3
          %s3658 = smul.addr %s3657, 128
          %s3659 = scalar_lea.hbm %s19, %s3658
          %s3661 = sshll.u32 %s3640, 4
          %s3662 = int_to_ptr.vmem [resolvable:$true] %s3661
          %3664 = dma.vmem_to_hbm [thread:$0]  %s3662, 384, %s3659, %s3637
        $region100: #{tpu_custom_call.1} parent=95 // pred_fallthru
          _
        // Predicated region
        $region101: #{tpu_custom_call.1} parent=95 // pred_check
          %p3665 = pneg %p502
        $region102: #{tpu_custom_call.1} parent=95 // pred_check_branch
          %3667 = sbr.rel (%p3665) target = $region104
        $region103: #{tpu_custom_call.1} parent=95 // pred_region
          %s3669 = ssub.s32 128, 128
          %3670 = vsyncadd %s3642, %s3669
          %s3671 = smul.addr %s39, 128
          %s3672 = scalar_lea.hbm %s20, %s3671
          %s3674 = sshll.u32 %s3645, 4
          %s3675 = int_to_ptr.vmem [resolvable:$true] %s3674
          %3677 = dma.vmem_to_hbm [thread:$0]  %s3675, 128, %s3672, %s3642
        $region104: #{tpu_custom_call.1} parent=95 // pred_fallthru
          _
        // Predicated region
        $region105: #{tpu_custom_call.1} parent=95 // pred_check
          %p3678 = pneg %p528
        $region106: #{tpu_custom_call.1} parent=95 // pred_check_branch
          %3680 = sbr.rel (%p3678) target = $region108
        $region107: #{tpu_custom_call.1} parent=95 // pred_region
          %s3682 = ssub.s32 128, 128
          %3683 = vsyncadd %s3647, %s3682
          %s3684 = smul.addr %s39, 128
          %s3685 = scalar_lea.hbm %s21, %s3684
          %s3687 = sshll.u32 %s3650, 4
          %s3688 = int_to_ptr.vmem [resolvable:$true] %s3687
          %3690 = dma.vmem_to_hbm [thread:$0]  %s3688, 128, %s3685, %s3647
        $region108: #{tpu_custom_call.1} parent=95 // pred_fallthru
          _
      $region96: #{tpu_custom_call.1} parent=5 // pred_fallthru
        _
      %p3691 = scmp.le.s32.totalorder 2, %s34
      // Predicated region
      $region109: #{tpu_custom_call.1} parent=5 // pred_check
        %p3692 = pneg %p3691
      $region110: #{tpu_custom_call.1} parent=5 // pred_check_branch
        %3694 = sbr.rel (%p3692) target = $region112
      $region111: #{tpu_custom_call.1} parent=5 // pred_region
        %s3695 = ssub.s32 %s34, 2
        // Predicated region
        $region113: #{tpu_custom_call.1} parent=111 // pred_check
          %p3696 = pneg %p482
        $region114: #{tpu_custom_call.1} parent=111 // pred_check_branch
          %3698 = sbr.rel (%p3696) target = $region116
        $region115: #{tpu_custom_call.1} parent=111 // pred_region
          %s3699 = sand.u32 %s467, 1
          %s3700 = scalar_lea.sflag [#allocation3], %s3699
          %s3701 = sand.u32 %s467, 1
          %s3702 = smul.addr %s3701, 24
          %s3703 = scalar_lea.vmem [#allocation2], %s3702
          %3704 = dma.done %s3700, 384
        $region116: #{tpu_custom_call.1} parent=111 // pred_fallthru
          _
        // Predicated region
        $region117: #{tpu_custom_call.1} parent=111 // pred_check
          %p3705 = pneg %p508
        $region118: #{tpu_custom_call.1} parent=111 // pred_check_branch
          %3707 = sbr.rel (%p3705) target = $region120
        $region119: #{tpu_custom_call.1} parent=111 // pred_region
          %s3708 = sand.u32 %s40, 1
          %s3709 = scalar_lea.sflag [#allocation5], %s3708
          %s3710 = sand.u32 %s493, 1
          %s3711 = smul.addr %s3710, 8
          %s3712 = scalar_lea.vmem [#allocation4], %s3711
          %3713 = dma.done %s3709, 128
        $region120: #{tpu_custom_call.1} parent=111 // pred_fallthru
          _
        // Predicated region
        $region121: #{tpu_custom_call.1} parent=111 // pred_check
          %p3714 = pneg %p534
        $region122: #{tpu_custom_call.1} parent=111 // pred_check_branch
          %3716 = sbr.rel (%p3714) target = $region124
        $region123: #{tpu_custom_call.1} parent=111 // pred_region
          %s3717 = sand.u32 %s40, 1
          %s3718 = scalar_lea.sflag [#allocation5], %s3717
          %s3719 = sand.u32 %s519, 1
          %s3720 = smul.addr %s3719, 8
          %s3721 = scalar_lea.vmem [#allocation6], %s3720
          %3722 = dma.done %s3718, 128
        $region124: #{tpu_custom_call.1} parent=111 // pred_fallthru
          _
      $region112: #{tpu_custom_call.1} parent=5 // pred_fallthru
        _
    $region6: #{tpu_custom_call.1} parent=1 // loop_footer
      %s38 = sadd.s32 1, %s34
    $region7: #{tpu_custom_call.1} parent=1 // loop_footer_branch
      %33 = sbr.rel target = $region3
    $region8: #{tpu_custom_call.1} parent=1 // loop_exit
      _
    %3723 = vsyncpa [#allocation3], 1
    %s3724 = scalar_lea.sflag [#allocation3], 1
    %3725 = vsyncpa %s3724, 1
    %3726 = vsyncpa [#allocation5], 1
    %s3727 = scalar_lea.sflag [#allocation5], 1
    %3728 = vsyncpa %s3727, 1

</llo_original>
